<compile_context>
chip_gen: v5e
topology: v5e:2x2
jax: 0.10.0
libtpu: 0.0.40
codegen_flags: <defaults>
</compile_context>

<pallas_src>
import numpy as np
import jax
import jax.numpy as jnp
from jax.experimental import pallas as pl
from jax.experimental.pallas import tpu as pltpu


# ----------------------------------------------------------------------------
# Helpers
# ----------------------------------------------------------------------------
def _round_up(x, m):
    return ((x + m - 1) // m) * m


def _vmem_budget_bytes():
    """~70% of physical VMEM (generation aware: 64 MiB v7x, 128 MiB v5e/v6e)."""
    try:
        cap = int(pltpu.get_tpu_info().vmem_capacity_bytes)
    except Exception:
        cap = 128 << 20
    return int(cap * 0.70)


# ----------------------------------------------------------------------------
# Kernels
# ----------------------------------------------------------------------------
def _fused_kernel(x_ref, w1_ref, b1_ref, w3r_ref, b3_ref, o_ref):
    """Whole forward in one body (small K: x and W1 resident in VMEM)."""
    h = jnp.dot(x_ref[...], w1_ref[...], preferred_element_type=jnp.float32)
    h = jnp.maximum(h + b1_ref[...], 0.0)                          # fc1 + ReLU
    # fc3: VPU multiply + lane reduction (OUT == 1) -> no MXU drain at the tail.
    out = jnp.sum(h * w3r_ref[...], axis=-1, keepdims=True) + b3_ref[...]
    o_ref[...] = out.astype(o_ref.dtype)


def _tiled_kernel(x_ref, w1_ref, b1_ref, w3r_ref, o_ref, acc_ref):
    """K-tiled fc1 accumulation (grid = (num_hid_blocks, nk), K axis last)."""
    k = pl.program_id(1)

    @pl.when(k == 0)
    def _():
        acc_ref[...] = jnp.zeros_like(acc_ref)

    if len(x_ref.shape) == 3:          # x resident in VMEM as (nk, B, tk)
        x_tile = x_ref[k]              # pick the k-th K tile (no per-step DMA)
    else:                              # fallback: x streamed as (B, tk) tiles
        x_tile = x_ref[...]

    acc_ref[...] += jnp.dot(x_tile, w1_ref[...],
                            preferred_element_type=jnp.float32)

    @pl.when(k == pl.num_programs(1) - 1)
    def _():
        h = jnp.maximum(acc_ref[...] + b1_ref[...], 0.0)           # fc1 + ReLU
        # Partial fc3 for this HID block; bias b3 is added in the wrapper.
        o_ref[...] = jnp.sum(h * w3r_ref[...], axis=-1,
                             keepdims=True).astype(o_ref.dtype)


# ----------------------------------------------------------------------------
# One-time weight preparation (padding + dtype cast hoisted out of the call path)
# ----------------------------------------------------------------------------
def prepare_params(w1, b1, w3, b3, *, weight_dtype=jnp.bfloat16,
                   num_hid_blocks=1, tk=None, force_tiled=False, max_batch=8):
    """Pad HID to a lane-dense multiple of 128 (1000 -> 1024), pad K to a
    multiple of the chosen K tile, and cast W1 to `weight_dtype` (default bf16).
    Call ONCE per model; the returned dict is passed to model_vektor_forward.

    Weights are (in_features, out_features): the kernel computes x @ W + b
    (callers porting torch's (out, in) Linear weights must transpose first).
    """
    K, HID = w1.shape
    assert w3.shape == (HID, 1) and b1.shape == (HID,) and b3.shape == (1,), \
        "expected fc1 W:(K,HID), b:(HID,), fc3 W:(HID,1), b:(1,)"

    budget = _vmem_budget_bytes()
    wbytes = jnp.dtype(weight_dtype).itemsize
    use_bf16_x = jnp.dtype(weight_dtype) == jnp.dtype(jnp.bfloat16)
    x_dtype = jnp.bfloat16 if use_bf16_x else jnp.float32
    xbytes = jnp.dtype(x_dtype).itemsize

    num_hid_blocks = max(1, int(num_hid_blocks))
    HIDp = _round_up(HID, 128 * num_hid_blocks)
    hid_blk = HIDp // num_hid_blocks

    # Fused single-invocation path only when W1 (double-buffered) plus a small
    # x comfortably fit the generation-aware VMEM budget.
    w1_res = K * HIDp * wbytes
    fused = (not force_tiled) and \
        (2 * w1_res + 2 * max_batch * K * xbytes <= int(0.4 * budget))

    if fused:
        Kp, tk, nk = K, K, 1
    else:
        if tk is None:
            tk = 4096                              # 262144 % 4096 == 0
        tk = min(_round_up(max(tk, 128), 128), _round_up(K, 128))
        # Clamp tk so the double-buffered W1 tile stays within ~half the budget.
        while 2 * tk * hid_blk * wbytes > int(0.5 * budget) and tk > 512:
            tk //= 2
        Kp = _round_up(K, tk)
        nk = Kp // tk

    ph, pk = HIDp - HID, Kp - K
    w1p = jnp.pad(w1, ((0, pk), (0, ph))).astype(weight_dtype)        # zero pad
    b1p = jnp.pad(b1, (0, ph)).astype(jnp.float32).reshape(1, HIDp)   # pad = 0
    w3r = jnp.pad(w3.reshape(1, HID), ((0, 0), (0, ph))).astype(jnp.float32)
    b3r = b3.astype(jnp.float32).reshape(1, 1)

    return dict(w1=w1p, b1=b1p, w3=w3r, b3=b3r,
                K=K, Kp=Kp, HIDp=HIDp, hid_blk=hid_blk, tk=tk, nk=nk,
                num_hid_blocks=num_hid_blocks, fused=fused,
                x_dtype=x_dtype, wbytes=wbytes, xbytes=xbytes, budget=budget)


# ----------------------------------------------------------------------------
# Forward wrappers
# ----------------------------------------------------------------------------
def _forward_fused(x, p):
    B, Kp = x.shape
    HIDp = p["HIDp"]
    vmem_needed = (2 * Kp * HIDp * p["wbytes"] + 2 * B * Kp * p["xbytes"]
                   + 4 * (B * HIDp + 4 * HIDp + B))
    vmem_limit = int(min(vmem_needed + (8 << 20), p["budget"]))
    return pl.pallas_call(
        _fused_kernel,
        out_shape=jax.ShapeDtypeStruct((B, 1), jnp.float32),
        grid_spec=pltpu.PrefetchScalarGridSpec(
            num_scalar_prefetch=0,
            grid=(1,),
            in_specs=[
                pl.BlockSpec((B, Kp), lambda i: (0, 0)),       # x (resident)
                pl.BlockSpec((Kp, HIDp), lambda i: (0, 0)),    # W1 (resident, bf16)
                pl.BlockSpec((1, HIDp), lambda i: (0, 0)),     # b1 (f32)
                pl.BlockSpec((1, HIDp), lambda i: (0, 0)),     # W3 as a row (f32)
                pl.BlockSpec((1, 1), lambda i: (0, 0)),        # b3
            ],
            out_specs=pl.BlockSpec((B, 1), lambda i: (0, 0)),
        ),
        compiler_params=pltpu.CompilerParams(
            dimension_semantics=("arbitrary",),
            vmem_limit_bytes=vmem_limit,
        ),
    )(x, p["w1"], p["b1"], p["w3"], p["b3"])


def _forward_tiled(x, p):
    B, Kp = x.shape
    HIDp, hid_blk, tk, nk = p["HIDp"], p["hid_blk"], p["tk"], p["nk"]
    nh = p["num_hid_blocks"]
    xbytes = p["xbytes"]

    # Keep x fully resident in VMEM when it is small (typical: ~1 MB bf16 at
    # B=2, K=262144); this removes nk tiny per-step DMAs from the vector-misc
    # slot.  Large-B fallback streams (B, tk) tiles of x alongside W1.
    x_resident = B * Kp * xbytes <= (16 << 20)
    if x_resident:
        x_arr = jnp.transpose(x.reshape(B, nk, tk), (1, 0, 2))     # (nk, B, tk)
        x_spec = pl.BlockSpec((nk, B, tk), lambda h, k: (0, 0, 0))
        x_vmem = B * Kp * xbytes
    else:
        x_arr = x
        x_spec = pl.BlockSpec((B, tk), lambda h, k: (0, k))
        x_vmem = 2 * B * tk * xbytes

    vmem_needed = (2 * tk * hid_blk * p["wbytes"] + x_vmem
                   + 4 * (B * hid_blk + 4 * HIDp + nh * B))
    vmem_limit = int(min(vmem_needed + (8 << 20), p["budget"]))

    partials = pl.pallas_call(
        _tiled_kernel,
        out_shape=jax.ShapeDtypeStruct((nh, B, 1), jnp.float32),
        grid_spec=pltpu.PrefetchScalarGridSpec(
            num_scalar_prefetch=0,
            grid=(nh, nk),
            in_specs=[
                x_spec,
                pl.BlockSpec((tk, hid_blk), lambda h, k: (k, h)),   # W1 tile (bf16)
                pl.BlockSpec((1, hid_blk), lambda h, k: (0, h)),    # b1 block
                pl.BlockSpec((1, hid_blk), lambda h, k: (0, h)),    # W3 row block
            ],
            out_specs=pl.BlockSpec((None, B, 1), lambda h, k: (h, 0, 0)),
            scratch_shapes=[pltpu.VMEM((B, hid_blk), jnp.float32)],
        ),
        compiler_params=pltpu.CompilerParams(
            # HID axis is independent ("parallel": sharded across TCs on v7x);
            # K axis is the fc1 reduction ("arbitrary").
            dimension_semantics=("parallel", "arbitrary"),
            vmem_limit_bytes=vmem_limit,
        ),
    )(x_arr, p["w1"], p["b1"], p["w3"])
    # Sum the per-HID-block fc3 partials and add the fc3 bias (tiny JAX ops).
    return partials.sum(axis=0) + p["b3"]


def model_vektor_forward(x_nchw, params):
    """Model_vektor.forward: flatten -> fc1 -> ReLU -> fc3.  Returns (B, 1) f32."""
    p = params
    B = x_nchw.shape[0]
    K = int(np.prod(x_nchw.shape[1:]))
    assert K == p["K"], f"flattened features {K} != prepared fc1 in_features {p['K']}"
    x = x_nchw.reshape(B, K).astype(p["x_dtype"])    # == torch x.view(-1, num_flat)
    if p["Kp"] != K:
        x = jnp.pad(x, ((0, 0), (0, p["Kp"] - K)))   # zero cols hit zero W1 rows
    if p["fused"]:
        return _forward_fused(x, p)
    return _forward_tiled(x, p)


def _init_linear(key, fan_in, fan_out):
    """torch.nn.Linear-style init (uniform +-1/sqrt(fan_in)); W is (in, out)."""
    kw, kb = jax.random.split(key)
    bound = 1.0 / np.sqrt(fan_in)
    w = jax.random.uniform(kw, (fan_in, fan_out), jnp.float32, -bound, bound)
    b = jax.random.uniform(kb, (fan_out,), jnp.float32, -bound, bound)
    return w, b


if __name__ == "__main__":
    # Small shapes consistent with the module's forward (original fc1 is
    # 262144 -> 1000; here K = C*H*W = 1024).  fc2 is unused in forward.
    B, C, H, W = 2, 4, 16, 16
    K = C * H * W
    HID, OUT = 1000, 1

    key = jax.random.PRNGKey(0)
    kx, k1, k3 = jax.random.split(key, 3)
    x = jax.random.normal(kx, (B, C, H, W), jnp.float32)
    w1, b1 = _init_linear(k1, K, HID)
    w3, b3 = _init_linear(k3, HID, OUT)

    # Pure-JAX reference using the same bf16-quantized x / W1 the kernel sees,
    # with f32 accumulation (HIGHEST precision) to match the MXU f32 acc.
    xq = x.reshape(B, K).astype(jnp.bfloat16).astype(jnp.float32)
    w1q = w1.astype(jnp.bfloat16).astype(jnp.float32)
    h_ref = jnp.maximum(
        jnp.dot(xq, w1q, precision=jax.lax.Precision.HIGHEST) + b1, 0.0)
    ref = jnp.dot(h_ref, w3, precision=jax.lax.Precision.HIGHEST) + b3

    # 1) Fused single-invocation path (small K: W1 resident in VMEM).
    params = prepare_params(w1, b1, w3, b3)
    out = jax.block_until_ready(model_vektor_forward(x, params))
    np.testing.assert_allclose(np.asarray(out), np.asarray(ref),
                               rtol=1e-4, atol=1e-4)

    # 2) K-tiled streaming path (what the original K=262144 model uses).
    params_t = prepare_params(w1, b1, w3, b3, tk=256, force_tiled=True)
    out_t = jax.block_until_ready(model_vektor_forward(x, params_t))
    np.testing.assert_allclose(np.asarray(out_t), np.asarray(ref),
                               rtol=1e-4, atol=1e-4)

    # 3) K-tiled with a 2-way HID split ("parallel" axis -> both TCs on v7x).
    params_p = prepare_params(w1, b1, w3, b3, tk=256, force_tiled=True,
                              num_hid_blocks=2)
    out_p = jax.block_until_ready(model_vektor_forward(x, params_p))
    np.testing.assert_allclose(np.asarray(out_p), np.asarray(ref),
                               rtol=1e-4, atol=1e-4)

    print("KERNEL_OK")
</pallas_src>

<mosaic_0001>
module attributes {stable_mosaic.version = 11 : i64} {
  func.func @_fused_kernel(%arg0: i32, %arg1: memref<2x1024xbf16, #tpu.memory_space<vmem>>, %arg2: memref<1024x1024xbf16, #tpu.memory_space<vmem>>, %arg3: memref<1x1024xf32, #tpu.memory_space<vmem>>, %arg4: memref<1x1024xf32, #tpu.memory_space<vmem>>, %arg5: memref<1x1xf32, #tpu.memory_space<vmem>>, %arg6: memref<2x1xf32, #tpu.memory_space<vmem>>) attributes {dimension_semantics = [#tpu.dimension_semantics<arbitrary>], iteration_bounds = array<i64: 1>, scalar_prefetch = 0 : i64, scratch_operands = 0 : i64, tpu.core_type = #tpu.core_type<tc>, window_params = [{pipeline_mode = #tpu.pipeline_mode<synchronous>, transform_indices = @transform_0, window_bounds = array<i64: 2, 1024>}, {pipeline_mode = #tpu.pipeline_mode<synchronous>, transform_indices = @transform_1, window_bounds = array<i64: 1024, 1024>}, {pipeline_mode = #tpu.pipeline_mode<synchronous>, transform_indices = @transform_2, window_bounds = array<i64: 1, 1024>}, {pipeline_mode = #tpu.pipeline_mode<synchronous>, transform_indices = @transform_3, window_bounds = array<i64: 1, 1024>}, {pipeline_mode = #tpu.pipeline_mode<synchronous>, transform_indices = @transform_4, window_bounds = array<i64: 1, 1>}, {pipeline_mode = #tpu.pipeline_mode<synchronous>, transform_indices = @transform_5, window_bounds = array<i64: 2, 1>}]} {
    %c0 = arith.constant 0 : index
    %c0_0 = arith.constant 0 : index
    %0 = vector.load %arg1[%c0, %c0_0] : memref<2x1024xbf16, #tpu.memory_space<vmem>>, vector<2x1024xbf16>
    %c0_1 = arith.constant 0 : index
    %c0_2 = arith.constant 0 : index
    %1 = vector.load %arg2[%c0_1, %c0_2] : memref<1024x1024xbf16, #tpu.memory_space<vmem>>, vector<1024x1024xbf16>
    %cst = arith.constant dense<0.000000e+00> : vector<2x1024xf32>
    %2 = tpu.matmul %0, %1, %cst {dimension_numbers = #tpu.dot_dimension_numbers<[1], [0], [0], [1], [0, 0, 1, 1], [], []>} : vector<2x1024xbf16>, vector<1024x1024xbf16>, vector<2x1024xf32> -> vector<2x1024xf32>
    %c0_3 = arith.constant 0 : index
    %c0_4 = arith.constant 0 : index
    %3 = vector.load %arg3[%c0_3, %c0_4] : memref<1x1024xf32, #tpu.memory_space<vmem>>, vector<1x1024xf32>
    %4 = vector.broadcast %3 : vector<1x1024xf32> to vector<2x1024xf32>
    %5 = arith.addf %2, %4 : vector<2x1024xf32>
    %cst_5 = arith.constant 0.000000e+00 : f32
    %6 = vector.broadcast %cst_5 : f32 to vector<2x1024xf32>
    %7 = arith.maximumf %5, %6 : vector<2x1024xf32>
    %c0_6 = arith.constant 0 : index
    %c0_7 = arith.constant 0 : index
    %8 = vector.load %arg4[%c0_6, %c0_7] : memref<1x1024xf32, #tpu.memory_space<vmem>>, vector<1x1024xf32>
    %9 = vector.broadcast %8 : vector<1x1024xf32> to vector<2x1024xf32>
    %10 = arith.mulf %7, %9 : vector<2x1024xf32>
    %cst_8 = arith.constant dense<0.000000e+00> : vector<2xf32>
    %11 = vector.multi_reduction <add>, %10, %cst_8 [1] : vector<2x1024xf32> to vector<2xf32>
    %12 = vector.shape_cast %11 : vector<2xf32> to vector<2x1xf32>
    %c0_9 = arith.constant 0 : index
    %c0_10 = arith.constant 0 : index
    %13 = vector.load %arg5[%c0_9, %c0_10] : memref<1x1xf32, #tpu.memory_space<vmem>>, vector<1x1xf32>
    %14 = vector.broadcast %13 : vector<1x1xf32> to vector<2x1xf32>
    %15 = arith.addf %12, %14 : vector<2x1xf32>
    %c0_11 = arith.constant 0 : index
    %c0_12 = arith.constant 0 : index
    %16 = vector.load %arg6[%c0_11, %c0_12] : memref<2x1xf32, #tpu.memory_space<vmem>>, vector<2x1xf32>
    tpu.vector_store %arg6[%c0_11, %c0_12], %15 {strides = array<i32>} : memref<2x1xf32, #tpu.memory_space<vmem>>, vector<2x1xf32>,
    return
  }
  func.func @transform_0(%arg0: i32) -> (i32, i32) {
    %c0_i32 = arith.constant 0 : i32
    %c0_i32_0 = arith.constant 0 : i32
    %c0_i32_1 = arith.constant 0 : i32
    return %c0_i32, %c0_i32_0 : i32, i32
  }
  func.func @transform_1(%arg0: i32) -> (i32, i32) {
    %c0_i32 = arith.constant 0 : i32
    %c0_i32_0 = arith.constant 0 : i32
    %c0_i32_1 = arith.constant 0 : i32
    return %c0_i32, %c0_i32_0 : i32, i32
  }
  func.func @transform_2(%arg0: i32) -> (i32, i32) {
    %c0_i32 = arith.constant 0 : i32
    %c0_i32_0 = arith.constant 0 : i32
    %c0_i32_1 = arith.constant 0 : i32
    return %c0_i32, %c0_i32_0 : i32, i32
  }
  func.func @transform_3(%arg0: i32) -> (i32, i32) {
    %c0_i32 = arith.constant 0 : i32
    %c0_i32_0 = arith.constant 0 : i32
    %c0_i32_1 = arith.constant 0 : i32
    return %c0_i32, %c0_i32_0 : i32, i32
  }
  func.func @transform_4(%arg0: i32) -> (i32, i32) {
    %c0_i32 = arith.constant 0 : i32
    %c0_i32_0 = arith.constant 0 : i32
    %c0_i32_1 = arith.constant 0 : i32
    return %c0_i32, %c0_i32_0 : i32, i32
  }
  func.func @transform_5(%arg0: i32) -> (i32, i32) {
    %c0_i32 = arith.constant 0 : i32
    %c0_i32_0 = arith.constant 0 : i32
    %c0_i32_1 = arith.constant 0 : i32
    return %c0_i32, %c0_i32_0 : i32, i32
  }
}

</mosaic_0001>

<llo_original>
// kernel: tpu_custom_call.1
$region0: #{tpu_custom_call.1}
  #allocation0 [shape = 'u32[]', space=smem, size = 0x4, offset = 0x4, fixed_abs, tag = 'smem constant byte address 0x4 - core index']
  #allocation1 [shape = 'u32[72,128]{1,0:T(1,128)}', space=vmem, size = 0x9000, scoped, tag = 'internal scratch']
  #allocation2 [shape = 'f32[1,1]{1,0:T(1,128)S(1)}', space=vmem, size = 0x200, scoped, tag = 'scoped memory for tpu_custom_call.1']
  %s0 = inlined_call_operand.hbm [shape: bf16[2,1024], index: 0, kind: input, shape index: {}]
  %s1 = inlined_call_operand.hbm [shape: bf16[1024,1024], index: 1, kind: input, shape index: {}]
  %s2 = inlined_call_operand.hbm [shape: f32[1,1024], index: 2, kind: input, shape index: {}]
  %s3 = inlined_call_operand.hbm [shape: f32[1,1024], index: 3, kind: input, shape index: {}]
  %s4 = inlined_call_operand.<no memory space> [shape: f32[1,1], index: 4, kind: input, shape index: {}]
  %s5 = inlined_call_operand.vmem [shape: f32[2,1], index: 5, kind: output, shape index: {}]
  %s6 = sld [smem:[#allocation0]]
  $region46: #{tpu_custom_call.1} parent=0
    _
  %s8 = ssub.s32 1, %s6
  %s9 = scalar_select 0, %s8, %s6
  %v10 = vstv %s4
  %11 = vst [vmem:[#allocation2] sm:$0x1] %v10
  $region1: #{tpu_custom_call.1} parent=0
    #allocation3 [shape = 'u8[4096]{0}', space=vmem, size = 0x1000, scoped, tag = 'input window, operand 0, single buffered']
    #allocation4 [shape = 's32[1]{0}', space=sflag, size = 0x4, scoped, tag = 'scoped memory for tpu_custom_call.1']
    #allocation5 [shape = 'u8[2097152]{0}', space=vmem, size = 0x200000, scoped, tag = 'input window, operand 1, single buffered']
    #allocation6 [shape = 's32[1]{0}', space=sflag, size = 0x4, scoped, tag = 'scoped memory for tpu_custom_call.1']
    #allocation7 [shape = 'u8[4096]{0}', space=vmem, size = 0x1000, scoped, tag = 'input window, operand 2, single buffered']
    #allocation8 [shape = 'u8[4096]{0}', space=vmem, size = 0x1000, scoped, tag = 'input window, operand 3, single buffered']
    #allocation9 [shape = 's32[1]{0}', space=sflag, size = 0x4, scoped, tag = 'scoped memory for tpu_custom_call.1']
    %12 = vsyncpa [#allocation4], 0
    %13 = vsyncpa [#allocation6], 0
    %14 = vsyncpa [#allocation9], 0
    // Predicated region
    $region2: #{tpu_custom_call.1} parent=1 // pred_check
      _
    $region3: #{tpu_custom_call.1} parent=1 // pred_check_branch
      %16 = sbr.rel (0) target = $region5
    $region4: #{tpu_custom_call.1} parent=1 // pred_region
      %18 = vsyncadd [#allocation4], 0
      %s20 = sshll.u32 %s0, 4
      %s21 = int_to_ptr.hbm [resolvable:$true] %s20
      %s22 = sshll.u32 [#allocation3], 4
      %s23 = int_to_ptr.vmem [resolvable:$true] %s22
      %25 = dma.hbm_to_vmem [thread:$0]  %s21, 128, %s23, [#allocation4]
    $region5: #{tpu_custom_call.1} parent=1 // pred_fallthru
      _
    // Predicated region
    $region6: #{tpu_custom_call.1} parent=1 // pred_check
      _
    $region7: #{tpu_custom_call.1} parent=1 // pred_check_branch
      %27 = sbr.rel (0) target = $region9
    $region8: #{tpu_custom_call.1} parent=1 // pred_region
      %29 = vsyncadd [#allocation6], 0
      %s30 = sshll.u32 %s1, 4
      %s31 = int_to_ptr.hbm [resolvable:$true] %s30
      %s32 = sshll.u32 [#allocation5], 4
      %s33 = int_to_ptr.vmem [resolvable:$true] %s32
      %38 = dma.hbm_to_vmem [thread:$0]  %s31, 65536, %s33, [#allocation6], 512, 512, 32
    $region9: #{tpu_custom_call.1} parent=1 // pred_fallthru
      _
    // Predicated region
    $region10: #{tpu_custom_call.1} parent=1 // pred_check
      _
    $region11: #{tpu_custom_call.1} parent=1 // pred_check_branch
      %40 = sbr.rel (0) target = $region13
    $region12: #{tpu_custom_call.1} parent=1 // pred_region
      %42 = vsyncadd [#allocation6], 0
      %s44 = sshll.u32 %s2, 4
      %s45 = int_to_ptr.hbm [resolvable:$true] %s44
      %s46 = sshll.u32 [#allocation7], 4
      %s47 = int_to_ptr.vmem [resolvable:$true] %s46
      %49 = dma.hbm_to_vmem [thread:$0]  %s45, 128, %s47, [#allocation6]
    $region13: #{tpu_custom_call.1} parent=1 // pred_fallthru
      _
    // Predicated region
    $region14: #{tpu_custom_call.1} parent=1 // pred_check
      _
    $region15: #{tpu_custom_call.1} parent=1 // pred_check_branch
      %51 = sbr.rel (0) target = $region17
    $region16: #{tpu_custom_call.1} parent=1 // pred_region
      %53 = vsyncadd [#allocation9], 0
      %s55 = sshll.u32 %s3, 4
      %s56 = int_to_ptr.hbm [resolvable:$true] %s55
      %s57 = sshll.u32 [#allocation8], 4
      %s58 = int_to_ptr.vmem [resolvable:$true] %s57
      %60 = dma.hbm_to_vmem [thread:$0]  %s56, 128, %s58, [#allocation9]
    $region17: #{tpu_custom_call.1} parent=1 // pred_fallthru
      _
    // Predicated region
    $region18: #{tpu_custom_call.1} parent=1 // pred_check
      _
    $region19: #{tpu_custom_call.1} parent=1 // pred_check_branch
      %62 = sbr.rel (0) target = $region21
    $region20: #{tpu_custom_call.1} parent=1 // pred_region
      _
    $region21: #{tpu_custom_call.1} parent=1 // pred_fallthru
      _
    // Predicated region
    $region22: #{tpu_custom_call.1} parent=1 // pred_check
      _
    $region23: #{tpu_custom_call.1} parent=1 // pred_check_branch
      %64 = sbr.rel (0) target = $region25
    $region24: #{tpu_custom_call.1} parent=1 // pred_region
      %66 = dma.done [#allocation4], 128
    $region25: #{tpu_custom_call.1} parent=1 // pred_fallthru
      _
    // Predicated region
    $region26: #{tpu_custom_call.1} parent=1 // pred_check
      _
    $region27: #{tpu_custom_call.1} parent=1 // pred_check_branch
      %68 = sbr.rel (0) target = $region29
    $region28: #{tpu_custom_call.1} parent=1 // pred_region
      %70 = dma.done [#allocation6], 65536
    $region29: #{tpu_custom_call.1} parent=1 // pred_fallthru
      _
    // Predicated region
    $region30: #{tpu_custom_call.1} parent=1 // pred_check
      _
    $region31: #{tpu_custom_call.1} parent=1 // pred_check_branch
      %72 = sbr.rel (0) target = $region33
    $region32: #{tpu_custom_call.1} parent=1 // pred_region
      %74 = dma.done [#allocation6], 128
    $region33: #{tpu_custom_call.1} parent=1 // pred_fallthru
      _
    // Predicated region
    $region34: #{tpu_custom_call.1} parent=1 // pred_check
      _
    $region35: #{tpu_custom_call.1} parent=1 // pred_check_branch
      %76 = sbr.rel (0) target = $region37
    $region36: #{tpu_custom_call.1} parent=1 // pred_region
      %78 = dma.done [#allocation9], 128
    $region37: #{tpu_custom_call.1} parent=1 // pred_fallthru
      _
    %v79 = vld [vmem:[#allocation3] sm:$0xff]
    %v80 = vld [vmem:[#allocation5] sm:$0xff]
    %v81 = vld [vmem:[#allocation5 + $0x8] sm:$0xff]
    %v82 = vld [vmem:[#allocation5 + $0x10] sm:$0xff]
    %v83 = vld [vmem:[#allocation5 + $0x18] sm:$0xff]
    %v84 = vld [vmem:[#allocation5 + $0x20] sm:$0xff]
    %v85 = vld [vmem:[#allocation5 + $0x28] sm:$0xff]
    %v86 = vld [vmem:[#allocation5 + $0x30] sm:$0xff]
    %v87 = vld [vmem:[#allocation5 + $0x38] sm:$0xff]
    %v88 = vld [vmem:[#allocation5 + $0x40] sm:$0xff]
    %v89 = vld [vmem:[#allocation5 + $0x48] sm:$0xff]
    %v90 = vld [vmem:[#allocation5 + $0x50] sm:$0xff]
    %v91 = vld [vmem:[#allocation5 + $0x58] sm:$0xff]
    %v92 = vld [vmem:[#allocation5 + $0x60] sm:$0xff]
    %v93 = vld [vmem:[#allocation5 + $0x68] sm:$0xff]
    %v94 = vld [vmem:[#allocation5 + $0x70] sm:$0xff]
    %v95 = vld [vmem:[#allocation5 + $0x78] sm:$0xff]
    %v96 = vld [vmem:[#allocation5 + $0x80] sm:$0xff]
    %v97 = vld [vmem:[#allocation5 + $0x88] sm:$0xff]
    %v98 = vld [vmem:[#allocation5 + $0x90] sm:$0xff]
    %v99 = vld [vmem:[#allocation5 + $0x98] sm:$0xff]
    %v100 = vld [vmem:[#allocation5 + $0xa0] sm:$0xff]
    %v101 = vld [vmem:[#allocation5 + $0xa8] sm:$0xff]
    %v102 = vld [vmem:[#allocation5 + $0xb0] sm:$0xff]
    %v103 = vld [vmem:[#allocation5 + $0xb8] sm:$0xff]
    %v104 = vld [vmem:[#allocation5 + $0xc0] sm:$0xff]
    %v105 = vld [vmem:[#allocation5 + $0xc8] sm:$0xff]
    %v106 = vld [vmem:[#allocation5 + $0xd0] sm:$0xff]
    %v107 = vld [vmem:[#allocation5 + $0xd8] sm:$0xff]
    %v108 = vld [vmem:[#allocation5 + $0xe0] sm:$0xff]
    %v109 = vld [vmem:[#allocation5 + $0xe8] sm:$0xff]
    %v110 = vld [vmem:[#allocation5 + $0xf0] sm:$0xff]
    %v111 = vld [vmem:[#allocation5 + $0xf8] sm:$0xff]
    %v112 = vld [vmem:[#allocation5 + $0x100] sm:$0xff]
    %v113 = vld [vmem:[#allocation5 + $0x108] sm:$0xff]
    %v114 = vld [vmem:[#allocation5 + $0x110] sm:$0xff]
    %v115 = vld [vmem:[#allocation5 + $0x118] sm:$0xff]
    %v116 = vld [vmem:[#allocation5 + $0x120] sm:$0xff]
    %v117 = vld [vmem:[#allocation5 + $0x128] sm:$0xff]
    %v118 = vld [vmem:[#allocation5 + $0x130] sm:$0xff]
    %v119 = vld [vmem:[#allocation5 + $0x138] sm:$0xff]
    %v120 = vld [vmem:[#allocation5 + $0x140] sm:$0xff]
    %v121 = vld [vmem:[#allocation5 + $0x148] sm:$0xff]
    %v122 = vld [vmem:[#allocation5 + $0x150] sm:$0xff]
    %v123 = vld [vmem:[#allocation5 + $0x158] sm:$0xff]
    %v124 = vld [vmem:[#allocation5 + $0x160] sm:$0xff]
    %v125 = vld [vmem:[#allocation5 + $0x168] sm:$0xff]
    %v126 = vld [vmem:[#allocation5 + $0x170] sm:$0xff]
    %v127 = vld [vmem:[#allocation5 + $0x178] sm:$0xff]
    %v128 = vld [vmem:[#allocation5 + $0x180] sm:$0xff]
    %v129 = vld [vmem:[#allocation5 + $0x188] sm:$0xff]
    %v130 = vld [vmem:[#allocation5 + $0x190] sm:$0xff]
    %v131 = vld [vmem:[#allocation5 + $0x198] sm:$0xff]
    %v132 = vld [vmem:[#allocation5 + $0x1a0] sm:$0xff]
    %v133 = vld [vmem:[#allocation5 + $0x1a8] sm:$0xff]
    %v134 = vld [vmem:[#allocation5 + $0x1b0] sm:$0xff]
    %v135 = vld [vmem:[#allocation5 + $0x1b8] sm:$0xff]
    %v136 = vld [vmem:[#allocation5 + $0x1c0] sm:$0xff]
    %v137 = vld [vmem:[#allocation5 + $0x1c8] sm:$0xff]
    %v138 = vld [vmem:[#allocation5 + $0x1d0] sm:$0xff]
    %v139 = vld [vmem:[#allocation5 + $0x1d8] sm:$0xff]
    %v140 = vld [vmem:[#allocation5 + $0x1e0] sm:$0xff]
    %v141 = vld [vmem:[#allocation5 + $0x1e8] sm:$0xff]
    %v142 = vld [vmem:[#allocation5 + $0x1f0] sm:$0xff]
    %v143 = vld [vmem:[#allocation5 + $0x1f8] sm:$0xff]
    %v144 = vld [vmem:[#allocation5 + $0x200] sm:$0xff]
    %v145 = vld [vmem:[#allocation5 + $0x208] sm:$0xff]
    %v146 = vld [vmem:[#allocation5 + $0x210] sm:$0xff]
    %v147 = vld [vmem:[#allocation5 + $0x218] sm:$0xff]
    %v148 = vld [vmem:[#allocation5 + $0x220] sm:$0xff]
    %v149 = vld [vmem:[#allocation5 + $0x228] sm:$0xff]
    %v150 = vld [vmem:[#allocation5 + $0x230] sm:$0xff]
    %v151 = vld [vmem:[#allocation5 + $0x238] sm:$0xff]
    %v152 = vld [vmem:[#allocation5 + $0x240] sm:$0xff]
    %v153 = vld [vmem:[#allocation5 + $0x248] sm:$0xff]
    %v154 = vld [vmem:[#allocation5 + $0x250] sm:$0xff]
    %v155 = vld [vmem:[#allocation5 + $0x258] sm:$0xff]
    %v156 = vld [vmem:[#allocation5 + $0x260] sm:$0xff]
    %v157 = vld [vmem:[#allocation5 + $0x268] sm:$0xff]
    %v158 = vld [vmem:[#allocation5 + $0x270] sm:$0xff]
    %v159 = vld [vmem:[#allocation5 + $0x278] sm:$0xff]
    %v160 = vld [vmem:[#allocation5 + $0x280] sm:$0xff]
    %v161 = vld [vmem:[#allocation5 + $0x288] sm:$0xff]
    %v162 = vld [vmem:[#allocation5 + $0x290] sm:$0xff]
    %v163 = vld [vmem:[#allocation5 + $0x298] sm:$0xff]
    %v164 = vld [vmem:[#allocation5 + $0x2a0] sm:$0xff]
    %v165 = vld [vmem:[#allocation5 + $0x2a8] sm:$0xff]
    %v166 = vld [vmem:[#allocation5 + $0x2b0] sm:$0xff]
    %v167 = vld [vmem:[#allocation5 + $0x2b8] sm:$0xff]
    %v168 = vld [vmem:[#allocation5 + $0x2c0] sm:$0xff]
    %v169 = vld [vmem:[#allocation5 + $0x2c8] sm:$0xff]
    %v170 = vld [vmem:[#allocation5 + $0x2d0] sm:$0xff]
    %v171 = vld [vmem:[#allocation5 + $0x2d8] sm:$0xff]
    %v172 = vld [vmem:[#allocation5 + $0x2e0] sm:$0xff]
    %v173 = vld [vmem:[#allocation5 + $0x2e8] sm:$0xff]
    %v174 = vld [vmem:[#allocation5 + $0x2f0] sm:$0xff]
    %v175 = vld [vmem:[#allocation5 + $0x2f8] sm:$0xff]
    %v176 = vld [vmem:[#allocation5 + $0x300] sm:$0xff]
    %v177 = vld [vmem:[#allocation5 + $0x308] sm:$0xff]
    %v178 = vld [vmem:[#allocation5 + $0x310] sm:$0xff]
    %v179 = vld [vmem:[#allocation5 + $0x318] sm:$0xff]
    %v180 = vld [vmem:[#allocation5 + $0x320] sm:$0xff]
    %v181 = vld [vmem:[#allocation5 + $0x328] sm:$0xff]
    %v182 = vld [vmem:[#allocation5 + $0x330] sm:$0xff]
    %v183 = vld [vmem:[#allocation5 + $0x338] sm:$0xff]
    %v184 = vld [vmem:[#allocation5 + $0x340] sm:$0xff]
    %v185 = vld [vmem:[#allocation5 + $0x348] sm:$0xff]
    %v186 = vld [vmem:[#allocation5 + $0x350] sm:$0xff]
    %v187 = vld [vmem:[#allocation5 + $0x358] sm:$0xff]
    %v188 = vld [vmem:[#allocation5 + $0x360] sm:$0xff]
    %v189 = vld [vmem:[#allocation5 + $0x368] sm:$0xff]
    %v190 = vld [vmem:[#allocation5 + $0x370] sm:$0xff]
    %v191 = vld [vmem:[#allocation5 + $0x378] sm:$0xff]
    %v192 = vld [vmem:[#allocation5 + $0x380] sm:$0xff]
    %v193 = vld [vmem:[#allocation5 + $0x388] sm:$0xff]
    %v194 = vld [vmem:[#allocation5 + $0x390] sm:$0xff]
    %v195 = vld [vmem:[#allocation5 + $0x398] sm:$0xff]
    %v196 = vld [vmem:[#allocation5 + $0x3a0] sm:$0xff]
    %v197 = vld [vmem:[#allocation5 + $0x3a8] sm:$0xff]
    %v198 = vld [vmem:[#allocation5 + $0x3b0] sm:$0xff]
    %v199 = vld [vmem:[#allocation5 + $0x3b8] sm:$0xff]
    %v200 = vld [vmem:[#allocation5 + $0x3c0] sm:$0xff]
    %v201 = vld [vmem:[#allocation5 + $0x3c8] sm:$0xff]
    %v202 = vld [vmem:[#allocation5 + $0x3d0] sm:$0xff]
    %v203 = vld [vmem:[#allocation5 + $0x3d8] sm:$0xff]
    %v204 = vld [vmem:[#allocation5 + $0x3e0] sm:$0xff]
    %v205 = vld [vmem:[#allocation5 + $0x3e8] sm:$0xff]
    %v206 = vld [vmem:[#allocation5 + $0x3f0] sm:$0xff]
    %v207 = vld [vmem:[#allocation5 + $0x3f8] sm:$0xff]
    %v208 = vld [vmem:[#allocation5 + $0x400] sm:$0xff]
    %v209 = vld [vmem:[#allocation5 + $0x408] sm:$0xff]
    %v210 = vld [vmem:[#allocation5 + $0x410] sm:$0xff]
    %v211 = vld [vmem:[#allocation5 + $0x418] sm:$0xff]
    %v212 = vld [vmem:[#allocation5 + $0x420] sm:$0xff]
    %v213 = vld [vmem:[#allocation5 + $0x428] sm:$0xff]
    %v214 = vld [vmem:[#allocation5 + $0x430] sm:$0xff]
    %v215 = vld [vmem:[#allocation5 + $0x438] sm:$0xff]
    %v216 = vld [vmem:[#allocation5 + $0x440] sm:$0xff]
    %v217 = vld [vmem:[#allocation5 + $0x448] sm:$0xff]
    %v218 = vld [vmem:[#allocation5 + $0x450] sm:$0xff]
    %v219 = vld [vmem:[#allocation5 + $0x458] sm:$0xff]
    %v220 = vld [vmem:[#allocation5 + $0x460] sm:$0xff]
    %v221 = vld [vmem:[#allocation5 + $0x468] sm:$0xff]
    %v222 = vld [vmem:[#allocation5 + $0x470] sm:$0xff]
    %v223 = vld [vmem:[#allocation5 + $0x478] sm:$0xff]
    %v224 = vld [vmem:[#allocation5 + $0x480] sm:$0xff]
    %v225 = vld [vmem:[#allocation5 + $0x488] sm:$0xff]
    %v226 = vld [vmem:[#allocation5 + $0x490] sm:$0xff]
    %v227 = vld [vmem:[#allocation5 + $0x498] sm:$0xff]
    %v228 = vld [vmem:[#allocation5 + $0x4a0] sm:$0xff]
    %v229 = vld [vmem:[#allocation5 + $0x4a8] sm:$0xff]
    %v230 = vld [vmem:[#allocation5 + $0x4b0] sm:$0xff]
    %v231 = vld [vmem:[#allocation5 + $0x4b8] sm:$0xff]
    %v232 = vld [vmem:[#allocation5 + $0x4c0] sm:$0xff]
    %v233 = vld [vmem:[#allocation5 + $0x4c8] sm:$0xff]
    %v234 = vld [vmem:[#allocation5 + $0x4d0] sm:$0xff]
    %v235 = vld [vmem:[#allocation5 + $0x4d8] sm:$0xff]
    %v236 = vld [vmem:[#allocation5 + $0x4e0] sm:$0xff]
    %v237 = vld [vmem:[#allocation5 + $0x4e8] sm:$0xff]
    %v238 = vld [vmem:[#allocation5 + $0x4f0] sm:$0xff]
    %v239 = vld [vmem:[#allocation5 + $0x4f8] sm:$0xff]
    %v240 = vld [vmem:[#allocation5 + $0x500] sm:$0xff]
    %v241 = vld [vmem:[#allocation5 + $0x508] sm:$0xff]
    %v242 = vld [vmem:[#allocation5 + $0x510] sm:$0xff]
    %v243 = vld [vmem:[#allocation5 + $0x518] sm:$0xff]
    %v244 = vld [vmem:[#allocation5 + $0x520] sm:$0xff]
    %v245 = vld [vmem:[#allocation5 + $0x528] sm:$0xff]
    %v246 = vld [vmem:[#allocation5 + $0x530] sm:$0xff]
    %v247 = vld [vmem:[#allocation5 + $0x538] sm:$0xff]
    %v248 = vld [vmem:[#allocation5 + $0x540] sm:$0xff]
    %v249 = vld [vmem:[#allocation5 + $0x548] sm:$0xff]
    %v250 = vld [vmem:[#allocation5 + $0x550] sm:$0xff]
    %v251 = vld [vmem:[#allocation5 + $0x558] sm:$0xff]
    %v252 = vld [vmem:[#allocation5 + $0x560] sm:$0xff]
    %v253 = vld [vmem:[#allocation5 + $0x568] sm:$0xff]
    %v254 = vld [vmem:[#allocation5 + $0x570] sm:$0xff]
    %v255 = vld [vmem:[#allocation5 + $0x578] sm:$0xff]
    %v256 = vld [vmem:[#allocation5 + $0x580] sm:$0xff]
    %v257 = vld [vmem:[#allocation5 + $0x588] sm:$0xff]
    %v258 = vld [vmem:[#allocation5 + $0x590] sm:$0xff]
    %v259 = vld [vmem:[#allocation5 + $0x598] sm:$0xff]
    %v260 = vld [vmem:[#allocation5 + $0x5a0] sm:$0xff]
    %v261 = vld [vmem:[#allocation5 + $0x5a8] sm:$0xff]
    %v262 = vld [vmem:[#allocation5 + $0x5b0] sm:$0xff]
    %v263 = vld [vmem:[#allocation5 + $0x5b8] sm:$0xff]
    %v264 = vld [vmem:[#allocation5 + $0x5c0] sm:$0xff]
    %v265 = vld [vmem:[#allocation5 + $0x5c8] sm:$0xff]
    %v266 = vld [vmem:[#allocation5 + $0x5d0] sm:$0xff]
    %v267 = vld [vmem:[#allocation5 + $0x5d8] sm:$0xff]
    %v268 = vld [vmem:[#allocation5 + $0x5e0] sm:$0xff]
    %v269 = vld [vmem:[#allocation5 + $0x5e8] sm:$0xff]
    %v270 = vld [vmem:[#allocation5 + $0x5f0] sm:$0xff]
    %v271 = vld [vmem:[#allocation5 + $0x5f8] sm:$0xff]
    %v272 = vld [vmem:[#allocation5 + $0x600] sm:$0xff]
    %v273 = vld [vmem:[#allocation5 + $0x608] sm:$0xff]
    %v274 = vld [vmem:[#allocation5 + $0x610] sm:$0xff]
    %v275 = vld [vmem:[#allocation5 + $0x618] sm:$0xff]
    %v276 = vld [vmem:[#allocation5 + $0x620] sm:$0xff]
    %v277 = vld [vmem:[#allocation5 + $0x628] sm:$0xff]
    %v278 = vld [vmem:[#allocation5 + $0x630] sm:$0xff]
    %v279 = vld [vmem:[#allocation5 + $0x638] sm:$0xff]
    %v280 = vld [vmem:[#allocation5 + $0x640] sm:$0xff]
    %v281 = vld [vmem:[#allocation5 + $0x648] sm:$0xff]
    %v282 = vld [vmem:[#allocation5 + $0x650] sm:$0xff]
    %v283 = vld [vmem:[#allocation5 + $0x658] sm:$0xff]
    %v284 = vld [vmem:[#allocation5 + $0x660] sm:$0xff]
    %v285 = vld [vmem:[#allocation5 + $0x668] sm:$0xff]
    %v286 = vld [vmem:[#allocation5 + $0x670] sm:$0xff]
    %v287 = vld [vmem:[#allocation5 + $0x678] sm:$0xff]
    %v288 = vld [vmem:[#allocation5 + $0x680] sm:$0xff]
    %v289 = vld [vmem:[#allocation5 + $0x688] sm:$0xff]
    %v290 = vld [vmem:[#allocation5 + $0x690] sm:$0xff]
    %v291 = vld [vmem:[#allocation5 + $0x698] sm:$0xff]
    %v292 = vld [vmem:[#allocation5 + $0x6a0] sm:$0xff]
    %v293 = vld [vmem:[#allocation5 + $0x6a8] sm:$0xff]
    %v294 = vld [vmem:[#allocation5 + $0x6b0] sm:$0xff]
    %v295 = vld [vmem:[#allocation5 + $0x6b8] sm:$0xff]
    %v296 = vld [vmem:[#allocation5 + $0x6c0] sm:$0xff]
    %v297 = vld [vmem:[#allocation5 + $0x6c8] sm:$0xff]
    %v298 = vld [vmem:[#allocation5 + $0x6d0] sm:$0xff]
    %v299 = vld [vmem:[#allocation5 + $0x6d8] sm:$0xff]
    %v300 = vld [vmem:[#allocation5 + $0x6e0] sm:$0xff]
    %v301 = vld [vmem:[#allocation5 + $0x6e8] sm:$0xff]
    %v302 = vld [vmem:[#allocation5 + $0x6f0] sm:$0xff]
    %v303 = vld [vmem:[#allocation5 + $0x6f8] sm:$0xff]
    %v304 = vld [vmem:[#allocation5 + $0x700] sm:$0xff]
    %v305 = vld [vmem:[#allocation5 + $0x708] sm:$0xff]
    %v306 = vld [vmem:[#allocation5 + $0x710] sm:$0xff]
    %v307 = vld [vmem:[#allocation5 + $0x718] sm:$0xff]
    %v308 = vld [vmem:[#allocation5 + $0x720] sm:$0xff]
    %v309 = vld [vmem:[#allocation5 + $0x728] sm:$0xff]
    %v310 = vld [vmem:[#allocation5 + $0x730] sm:$0xff]
    %v311 = vld [vmem:[#allocation5 + $0x738] sm:$0xff]
    %v312 = vld [vmem:[#allocation5 + $0x740] sm:$0xff]
    %v313 = vld [vmem:[#allocation5 + $0x748] sm:$0xff]
    %v314 = vld [vmem:[#allocation5 + $0x750] sm:$0xff]
    %v315 = vld [vmem:[#allocation5 + $0x758] sm:$0xff]
    %v316 = vld [vmem:[#allocation5 + $0x760] sm:$0xff]
    %v317 = vld [vmem:[#allocation5 + $0x768] sm:$0xff]
    %v318 = vld [vmem:[#allocation5 + $0x770] sm:$0xff]
    %v319 = vld [vmem:[#allocation5 + $0x778] sm:$0xff]
    %v320 = vld [vmem:[#allocation5 + $0x780] sm:$0xff]
    %v321 = vld [vmem:[#allocation5 + $0x788] sm:$0xff]
    %v322 = vld [vmem:[#allocation5 + $0x790] sm:$0xff]
    %v323 = vld [vmem:[#allocation5 + $0x798] sm:$0xff]
    %v324 = vld [vmem:[#allocation5 + $0x7a0] sm:$0xff]
    %v325 = vld [vmem:[#allocation5 + $0x7a8] sm:$0xff]
    %v326 = vld [vmem:[#allocation5 + $0x7b0] sm:$0xff]
    %v327 = vld [vmem:[#allocation5 + $0x7b8] sm:$0xff]
    %v328 = vld [vmem:[#allocation5 + $0x7c0] sm:$0xff]
    %v329 = vld [vmem:[#allocation5 + $0x7c8] sm:$0xff]
    %v330 = vld [vmem:[#allocation5 + $0x7d0] sm:$0xff]
    %v331 = vld [vmem:[#allocation5 + $0x7d8] sm:$0xff]
    %v332 = vld [vmem:[#allocation5 + $0x7e0] sm:$0xff]
    %v333 = vld [vmem:[#allocation5 + $0x7e8] sm:$0xff]
    %v334 = vld [vmem:[#allocation5 + $0x7f0] sm:$0xff]
    %v335 = vld [vmem:[#allocation5 + $0x7f8] sm:$0xff]
    %v336 = vld [vmem:[#allocation5 + $0x800] sm:$0xff]
    %v337 = vld [vmem:[#allocation5 + $0x808] sm:$0xff]
    %v338 = vld [vmem:[#allocation5 + $0x810] sm:$0xff]
    %v339 = vld [vmem:[#allocation5 + $0x818] sm:$0xff]
    %v340 = vld [vmem:[#allocation5 + $0x820] sm:$0xff]
    %v341 = vld [vmem:[#allocation5 + $0x828] sm:$0xff]
    %v342 = vld [vmem:[#allocation5 + $0x830] sm:$0xff]
    %v343 = vld [vmem:[#allocation5 + $0x838] sm:$0xff]
    %v344 = vld [vmem:[#allocation5 + $0x840] sm:$0xff]
    %v345 = vld [vmem:[#allocation5 + $0x848] sm:$0xff]
    %v346 = vld [vmem:[#allocation5 + $0x850] sm:$0xff]
    %v347 = vld [vmem:[#allocation5 + $0x858] sm:$0xff]
    %v348 = vld [vmem:[#allocation5 + $0x860] sm:$0xff]
    %v349 = vld [vmem:[#allocation5 + $0x868] sm:$0xff]
    %v350 = vld [vmem:[#allocation5 + $0x870] sm:$0xff]
    %v351 = vld [vmem:[#allocation5 + $0x878] sm:$0xff]
    %v352 = vld [vmem:[#allocation5 + $0x880] sm:$0xff]
    %v353 = vld [vmem:[#allocation5 + $0x888] sm:$0xff]
    %v354 = vld [vmem:[#allocation5 + $0x890] sm:$0xff]
    %v355 = vld [vmem:[#allocation5 + $0x898] sm:$0xff]
    %v356 = vld [vmem:[#allocation5 + $0x8a0] sm:$0xff]
    %v357 = vld [vmem:[#allocation5 + $0x8a8] sm:$0xff]
    %v358 = vld [vmem:[#allocation5 + $0x8b0] sm:$0xff]
    %v359 = vld [vmem:[#allocation5 + $0x8b8] sm:$0xff]
    %v360 = vld [vmem:[#allocation5 + $0x8c0] sm:$0xff]
    %v361 = vld [vmem:[#allocation5 + $0x8c8] sm:$0xff]
    %v362 = vld [vmem:[#allocation5 + $0x8d0] sm:$0xff]
    %v363 = vld [vmem:[#allocation5 + $0x8d8] sm:$0xff]
    %v364 = vld [vmem:[#allocation5 + $0x8e0] sm:$0xff]
    %v365 = vld [vmem:[#allocation5 + $0x8e8] sm:$0xff]
    %v366 = vld [vmem:[#allocation5 + $0x8f0] sm:$0xff]
    %v367 = vld [vmem:[#allocation5 + $0x8f8] sm:$0xff]
    %v368 = vld [vmem:[#allocation5 + $0x900] sm:$0xff]
    %v369 = vld [vmem:[#allocation5 + $0x908] sm:$0xff]
    %v370 = vld [vmem:[#allocation5 + $0x910] sm:$0xff]
    %v371 = vld [vmem:[#allocation5 + $0x918] sm:$0xff]
    %v372 = vld [vmem:[#allocation5 + $0x920] sm:$0xff]
    %v373 = vld [vmem:[#allocation5 + $0x928] sm:$0xff]
    %v374 = vld [vmem:[#allocation5 + $0x930] sm:$0xff]
    %v375 = vld [vmem:[#allocation5 + $0x938] sm:$0xff]
    %v376 = vld [vmem:[#allocation5 + $0x940] sm:$0xff]
    %v377 = vld [vmem:[#allocation5 + $0x948] sm:$0xff]
    %v378 = vld [vmem:[#allocation5 + $0x950] sm:$0xff]
    %v379 = vld [vmem:[#allocation5 + $0x958] sm:$0xff]
    %v380 = vld [vmem:[#allocation5 + $0x960] sm:$0xff]
    %v381 = vld [vmem:[#allocation5 + $0x968] sm:$0xff]
    %v382 = vld [vmem:[#allocation5 + $0x970] sm:$0xff]
    %v383 = vld [vmem:[#allocation5 + $0x978] sm:$0xff]
    %v384 = vld [vmem:[#allocation5 + $0x980] sm:$0xff]
    %v385 = vld [vmem:[#allocation5 + $0x988] sm:$0xff]
    %v386 = vld [vmem:[#allocation5 + $0x990] sm:$0xff]
    %v387 = vld [vmem:[#allocation5 + $0x998] sm:$0xff]
    %v388 = vld [vmem:[#allocation5 + $0x9a0] sm:$0xff]
    %v389 = vld [vmem:[#allocation5 + $0x9a8] sm:$0xff]
    %v390 = vld [vmem:[#allocation5 + $0x9b0] sm:$0xff]
    %v391 = vld [vmem:[#allocation5 + $0x9b8] sm:$0xff]
    %v392 = vld [vmem:[#allocation5 + $0x9c0] sm:$0xff]
    %v393 = vld [vmem:[#allocation5 + $0x9c8] sm:$0xff]
    %v394 = vld [vmem:[#allocation5 + $0x9d0] sm:$0xff]
    %v395 = vld [vmem:[#allocation5 + $0x9d8] sm:$0xff]
    %v396 = vld [vmem:[#allocation5 + $0x9e0] sm:$0xff]
    %v397 = vld [vmem:[#allocation5 + $0x9e8] sm:$0xff]
    %v398 = vld [vmem:[#allocation5 + $0x9f0] sm:$0xff]
    %v399 = vld [vmem:[#allocation5 + $0x9f8] sm:$0xff]
    %v400 = vld [vmem:[#allocation5 + $0xa00] sm:$0xff]
    %v401 = vld [vmem:[#allocation5 + $0xa08] sm:$0xff]
    %v402 = vld [vmem:[#allocation5 + $0xa10] sm:$0xff]
    %v403 = vld [vmem:[#allocation5 + $0xa18] sm:$0xff]
    %v404 = vld [vmem:[#allocation5 + $0xa20] sm:$0xff]
    %v405 = vld [vmem:[#allocation5 + $0xa28] sm:$0xff]
    %v406 = vld [vmem:[#allocation5 + $0xa30] sm:$0xff]
    %v407 = vld [vmem:[#allocation5 + $0xa38] sm:$0xff]
    %v408 = vld [vmem:[#allocation5 + $0xa40] sm:$0xff]
    %v409 = vld [vmem:[#allocation5 + $0xa48] sm:$0xff]
    %v410 = vld [vmem:[#allocation5 + $0xa50] sm:$0xff]
    %v411 = vld [vmem:[#allocation5 + $0xa58] sm:$0xff]
    %v412 = vld [vmem:[#allocation5 + $0xa60] sm:$0xff]
    %v413 = vld [vmem:[#allocation5 + $0xa68] sm:$0xff]
    %v414 = vld [vmem:[#allocation5 + $0xa70] sm:$0xff]
    %v415 = vld [vmem:[#allocation5 + $0xa78] sm:$0xff]
    %v416 = vld [vmem:[#allocation5 + $0xa80] sm:$0xff]
    %v417 = vld [vmem:[#allocation5 + $0xa88] sm:$0xff]
    %v418 = vld [vmem:[#allocation5 + $0xa90] sm:$0xff]
    %v419 = vld [vmem:[#allocation5 + $0xa98] sm:$0xff]
    %v420 = vld [vmem:[#allocation5 + $0xaa0] sm:$0xff]
    %v421 = vld [vmem:[#allocation5 + $0xaa8] sm:$0xff]
    %v422 = vld [vmem:[#allocation5 + $0xab0] sm:$0xff]
    %v423 = vld [vmem:[#allocation5 + $0xab8] sm:$0xff]
    %v424 = vld [vmem:[#allocation5 + $0xac0] sm:$0xff]
    %v425 = vld [vmem:[#allocation5 + $0xac8] sm:$0xff]
    %v426 = vld [vmem:[#allocation5 + $0xad0] sm:$0xff]
    %v427 = vld [vmem:[#allocation5 + $0xad8] sm:$0xff]
    %v428 = vld [vmem:[#allocation5 + $0xae0] sm:$0xff]
    %v429 = vld [vmem:[#allocation5 + $0xae8] sm:$0xff]
    %v430 = vld [vmem:[#allocation5 + $0xaf0] sm:$0xff]
    %v431 = vld [vmem:[#allocation5 + $0xaf8] sm:$0xff]
    %v432 = vld [vmem:[#allocation5 + $0xb00] sm:$0xff]
    %v433 = vld [vmem:[#allocation5 + $0xb08] sm:$0xff]
    %v434 = vld [vmem:[#allocation5 + $0xb10] sm:$0xff]
    %v435 = vld [vmem:[#allocation5 + $0xb18] sm:$0xff]
    %v436 = vld [vmem:[#allocation5 + $0xb20] sm:$0xff]
    %v437 = vld [vmem:[#allocation5 + $0xb28] sm:$0xff]
    %v438 = vld [vmem:[#allocation5 + $0xb30] sm:$0xff]
    %v439 = vld [vmem:[#allocation5 + $0xb38] sm:$0xff]
    %v440 = vld [vmem:[#allocation5 + $0xb40] sm:$0xff]
    %v441 = vld [vmem:[#allocation5 + $0xb48] sm:$0xff]
    %v442 = vld [vmem:[#allocation5 + $0xb50] sm:$0xff]
    %v443 = vld [vmem:[#allocation5 + $0xb58] sm:$0xff]
    %v444 = vld [vmem:[#allocation5 + $0xb60] sm:$0xff]
    %v445 = vld [vmem:[#allocation5 + $0xb68] sm:$0xff]
    %v446 = vld [vmem:[#allocation5 + $0xb70] sm:$0xff]
    %v447 = vld [vmem:[#allocation5 + $0xb78] sm:$0xff]
    %v448 = vld [vmem:[#allocation5 + $0xb80] sm:$0xff]
    %v449 = vld [vmem:[#allocation5 + $0xb88] sm:$0xff]
    %v450 = vld [vmem:[#allocation5 + $0xb90] sm:$0xff]
    %v451 = vld [vmem:[#allocation5 + $0xb98] sm:$0xff]
    %v452 = vld [vmem:[#allocation5 + $0xba0] sm:$0xff]
    %v453 = vld [vmem:[#allocation5 + $0xba8] sm:$0xff]
    %v454 = vld [vmem:[#allocation5 + $0xbb0] sm:$0xff]
    %v455 = vld [vmem:[#allocation5 + $0xbb8] sm:$0xff]
    %v456 = vld [vmem:[#allocation5 + $0xbc0] sm:$0xff]
    %v457 = vld [vmem:[#allocation5 + $0xbc8] sm:$0xff]
    %v458 = vld [vmem:[#allocation5 + $0xbd0] sm:$0xff]
    %v459 = vld [vmem:[#allocation5 + $0xbd8] sm:$0xff]
    %v460 = vld [vmem:[#allocation5 + $0xbe0] sm:$0xff]
    %v461 = vld [vmem:[#allocation5 + $0xbe8] sm:$0xff]
    %v462 = vld [vmem:[#allocation5 + $0xbf0] sm:$0xff]
    %v463 = vld [vmem:[#allocation5 + $0xbf8] sm:$0xff]
    %v464 = vld [vmem:[#allocation5 + $0xc00] sm:$0xff]
    %v465 = vld [vmem:[#allocation5 + $0xc08] sm:$0xff]
    %v466 = vld [vmem:[#allocation5 + $0xc10] sm:$0xff]
    %v467 = vld [vmem:[#allocation5 + $0xc18] sm:$0xff]
    %v468 = vld [vmem:[#allocation5 + $0xc20] sm:$0xff]
    %v469 = vld [vmem:[#allocation5 + $0xc28] sm:$0xff]
    %v470 = vld [vmem:[#allocation5 + $0xc30] sm:$0xff]
    %v471 = vld [vmem:[#allocation5 + $0xc38] sm:$0xff]
    %v472 = vld [vmem:[#allocation5 + $0xc40] sm:$0xff]
    %v473 = vld [vmem:[#allocation5 + $0xc48] sm:$0xff]
    %v474 = vld [vmem:[#allocation5 + $0xc50] sm:$0xff]
    %v475 = vld [vmem:[#allocation5 + $0xc58] sm:$0xff]
    %v476 = vld [vmem:[#allocation5 + $0xc60] sm:$0xff]
    %v477 = vld [vmem:[#allocation5 + $0xc68] sm:$0xff]
    %v478 = vld [vmem:[#allocation5 + $0xc70] sm:$0xff]
    %v479 = vld [vmem:[#allocation5 + $0xc78] sm:$0xff]
    %v480 = vld [vmem:[#allocation5 + $0xc80] sm:$0xff]
    %v481 = vld [vmem:[#allocation5 + $0xc88] sm:$0xff]
    %v482 = vld [vmem:[#allocation5 + $0xc90] sm:$0xff]
    %v483 = vld [vmem:[#allocation5 + $0xc98] sm:$0xff]
    %v484 = vld [vmem:[#allocation5 + $0xca0] sm:$0xff]
    %v485 = vld [vmem:[#allocation5 + $0xca8] sm:$0xff]
    %v486 = vld [vmem:[#allocation5 + $0xcb0] sm:$0xff]
    %v487 = vld [vmem:[#allocation5 + $0xcb8] sm:$0xff]
    %v488 = vld [vmem:[#allocation5 + $0xcc0] sm:$0xff]
    %v489 = vld [vmem:[#allocation5 + $0xcc8] sm:$0xff]
    %v490 = vld [vmem:[#allocation5 + $0xcd0] sm:$0xff]
    %v491 = vld [vmem:[#allocation5 + $0xcd8] sm:$0xff]
    %v492 = vld [vmem:[#allocation5 + $0xce0] sm:$0xff]
    %v493 = vld [vmem:[#allocation5 + $0xce8] sm:$0xff]
    %v494 = vld [vmem:[#allocation5 + $0xcf0] sm:$0xff]
    %v495 = vld [vmem:[#allocation5 + $0xcf8] sm:$0xff]
    %v496 = vld [vmem:[#allocation5 + $0xd00] sm:$0xff]
    %v497 = vld [vmem:[#allocation5 + $0xd08] sm:$0xff]
    %v498 = vld [vmem:[#allocation5 + $0xd10] sm:$0xff]
    %v499 = vld [vmem:[#allocation5 + $0xd18] sm:$0xff]
    %v500 = vld [vmem:[#allocation5 + $0xd20] sm:$0xff]
    %v501 = vld [vmem:[#allocation5 + $0xd28] sm:$0xff]
    %v502 = vld [vmem:[#allocation5 + $0xd30] sm:$0xff]
    %v503 = vld [vmem:[#allocation5 + $0xd38] sm:$0xff]
    %v504 = vld [vmem:[#allocation5 + $0xd40] sm:$0xff]
    %v505 = vld [vmem:[#allocation5 + $0xd48] sm:$0xff]
    %v506 = vld [vmem:[#allocation5 + $0xd50] sm:$0xff]
    %v507 = vld [vmem:[#allocation5 + $0xd58] sm:$0xff]
    %v508 = vld [vmem:[#allocation5 + $0xd60] sm:$0xff]
    %v509 = vld [vmem:[#allocation5 + $0xd68] sm:$0xff]
    %v510 = vld [vmem:[#allocation5 + $0xd70] sm:$0xff]
    %v511 = vld [vmem:[#allocation5 + $0xd78] sm:$0xff]
    %v512 = vld [vmem:[#allocation5 + $0xd80] sm:$0xff]
    %v513 = vld [vmem:[#allocation5 + $0xd88] sm:$0xff]
    %v514 = vld [vmem:[#allocation5 + $0xd90] sm:$0xff]
    %v515 = vld [vmem:[#allocation5 + $0xd98] sm:$0xff]
    %v516 = vld [vmem:[#allocation5 + $0xda0] sm:$0xff]
    %v517 = vld [vmem:[#allocation5 + $0xda8] sm:$0xff]
    %v518 = vld [vmem:[#allocation5 + $0xdb0] sm:$0xff]
    %v519 = vld [vmem:[#allocation5 + $0xdb8] sm:$0xff]
    %v520 = vld [vmem:[#allocation5 + $0xdc0] sm:$0xff]
    %v521 = vld [vmem:[#allocation5 + $0xdc8] sm:$0xff]
    %v522 = vld [vmem:[#allocation5 + $0xdd0] sm:$0xff]
    %v523 = vld [vmem:[#allocation5 + $0xdd8] sm:$0xff]
    %v524 = vld [vmem:[#allocation5 + $0xde0] sm:$0xff]
    %v525 = vld [vmem:[#allocation5 + $0xde8] sm:$0xff]
    %v526 = vld [vmem:[#allocation5 + $0xdf0] sm:$0xff]
    %v527 = vld [vmem:[#allocation5 + $0xdf8] sm:$0xff]
    %v528 = vld [vmem:[#allocation5 + $0xe00] sm:$0xff]
    %v529 = vld [vmem:[#allocation5 + $0xe08] sm:$0xff]
    %v530 = vld [vmem:[#allocation5 + $0xe10] sm:$0xff]
    %v531 = vld [vmem:[#allocation5 + $0xe18] sm:$0xff]
    %v532 = vld [vmem:[#allocation5 + $0xe20] sm:$0xff]
    %v533 = vld [vmem:[#allocation5 + $0xe28] sm:$0xff]
    %v534 = vld [vmem:[#allocation5 + $0xe30] sm:$0xff]
    %v535 = vld [vmem:[#allocation5 + $0xe38] sm:$0xff]
    %v536 = vld [vmem:[#allocation5 + $0xe40] sm:$0xff]
    %v537 = vld [vmem:[#allocation5 + $0xe48] sm:$0xff]
    %v538 = vld [vmem:[#allocation5 + $0xe50] sm:$0xff]
    %v539 = vld [vmem:[#allocation5 + $0xe58] sm:$0xff]
    %v540 = vld [vmem:[#allocation5 + $0xe60] sm:$0xff]
    %v541 = vld [vmem:[#allocation5 + $0xe68] sm:$0xff]
    %v542 = vld [vmem:[#allocation5 + $0xe70] sm:$0xff]
    %v543 = vld [vmem:[#allocation5 + $0xe78] sm:$0xff]
    %v544 = vld [vmem:[#allocation5 + $0xe80] sm:$0xff]
    %v545 = vld [vmem:[#allocation5 + $0xe88] sm:$0xff]
    %v546 = vld [vmem:[#allocation5 + $0xe90] sm:$0xff]
    %v547 = vld [vmem:[#allocation5 + $0xe98] sm:$0xff]
    %v548 = vld [vmem:[#allocation5 + $0xea0] sm:$0xff]
    %v549 = vld [vmem:[#allocation5 + $0xea8] sm:$0xff]
    %v550 = vld [vmem:[#allocation5 + $0xeb0] sm:$0xff]
    %v551 = vld [vmem:[#allocation5 + $0xeb8] sm:$0xff]
    %v552 = vld [vmem:[#allocation5 + $0xec0] sm:$0xff]
    %v553 = vld [vmem:[#allocation5 + $0xec8] sm:$0xff]
    %v554 = vld [vmem:[#allocation5 + $0xed0] sm:$0xff]
    %v555 = vld [vmem:[#allocation5 + $0xed8] sm:$0xff]
    %v556 = vld [vmem:[#allocation5 + $0xee0] sm:$0xff]
    %v557 = vld [vmem:[#allocation5 + $0xee8] sm:$0xff]
    %v558 = vld [vmem:[#allocation5 + $0xef0] sm:$0xff]
    %v559 = vld [vmem:[#allocation5 + $0xef8] sm:$0xff]
    %v560 = vld [vmem:[#allocation5 + $0xf00] sm:$0xff]
    %v561 = vld [vmem:[#allocation5 + $0xf08] sm:$0xff]
    %v562 = vld [vmem:[#allocation5 + $0xf10] sm:$0xff]
    %v563 = vld [vmem:[#allocation5 + $0xf18] sm:$0xff]
    %v564 = vld [vmem:[#allocation5 + $0xf20] sm:$0xff]
    %v565 = vld [vmem:[#allocation5 + $0xf28] sm:$0xff]
    %v566 = vld [vmem:[#allocation5 + $0xf30] sm:$0xff]
    %v567 = vld [vmem:[#allocation5 + $0xf38] sm:$0xff]
    %v568 = vld [vmem:[#allocation5 + $0xf40] sm:$0xff]
    %v569 = vld [vmem:[#allocation5 + $0xf48] sm:$0xff]
    %v570 = vld [vmem:[#allocation5 + $0xf50] sm:$0xff]
    %v571 = vld [vmem:[#allocation5 + $0xf58] sm:$0xff]
    %v572 = vld [vmem:[#allocation5 + $0xf60] sm:$0xff]
    %v573 = vld [vmem:[#allocation5 + $0xf68] sm:$0xff]
    %v574 = vld [vmem:[#allocation5 + $0xf70] sm:$0xff]
    %v575 = vld [vmem:[#allocation5 + $0xf78] sm:$0xff]
    %v576 = vld [vmem:[#allocation5 + $0xf80] sm:$0xff]
    %v577 = vld [vmem:[#allocation5 + $0xf88] sm:$0xff]
    %v578 = vld [vmem:[#allocation5 + $0xf90] sm:$0xff]
    %v579 = vld [vmem:[#allocation5 + $0xf98] sm:$0xff]
    %v580 = vld [vmem:[#allocation5 + $0xfa0] sm:$0xff]
    %v581 = vld [vmem:[#allocation5 + $0xfa8] sm:$0xff]
    %v582 = vld [vmem:[#allocation5 + $0xfb0] sm:$0xff]
    %v583 = vld [vmem:[#allocation5 + $0xfb8] sm:$0xff]
    %v584 = vld [vmem:[#allocation5 + $0xfc0] sm:$0xff]
    %v585 = vld [vmem:[#allocation5 + $0xfc8] sm:$0xff]
    %v586 = vld [vmem:[#allocation5 + $0xfd0] sm:$0xff]
    %v587 = vld [vmem:[#allocation5 + $0xfd8] sm:$0xff]
    %v588 = vld [vmem:[#allocation5 + $0xfe0] sm:$0xff]
    %v589 = vld [vmem:[#allocation5 + $0xfe8] sm:$0xff]
    %v590 = vld [vmem:[#allocation5 + $0xff0] sm:$0xff]
    %v591 = vld [vmem:[#allocation5 + $0xff8] sm:$0xff]
    %v592 = vld [vmem:[#allocation7] sm:$0xff]
    %v594 = vperm.slane %v592, 0
    %v595 = vperm.slane %v592, 1
    %v596 = vperm.slane %v592, 2
    %v597 = vperm.slane %v592, 3
    %v598 = vperm.slane %v592, 4
    %v599 = vperm.slane %v592, 5
    %v600 = vperm.slane %v592, 6
    %v601 = vperm.slane %v592, 7
    %611 = vst [vmem:[#allocation1] ss:$9 sm:$0xff] %v79
    %v612 = vld [vmem:[#allocation1] sm:$0xff]
    %v613 = vld [vmem:[#allocation1 + $0x9] sm:$0xff]
    %v614 = vld [vmem:[#allocation1 + $0x12] sm:$0xff]
    %v615 = vld [vmem:[#allocation1 + $0x1b] sm:$0xff]
    %v616 = vld [vmem:[#allocation1 + $0x24] sm:$0xff]
    %v617 = vld [vmem:[#allocation1 + $0x2d] sm:$0xff]
    %v618 = vld [vmem:[#allocation1 + $0x36] sm:$0xff]
    %v619 = vld [vmem:[#allocation1 + $0x3f] sm:$0xff]
    %v1140 = vunpack.c.l.b16 %v80
    %v1141 = vunpack.c.h.b16 %v80
    %v1142 = vunpack.c.l.b16 %v81
    %v1143 = vunpack.c.h.b16 %v81
    %v1144 = vunpack.c.l.b16 %v82
    %v1145 = vunpack.c.h.b16 %v82
    %v1146 = vunpack.c.l.b16 %v83
    %v1147 = vunpack.c.h.b16 %v83
    %v1148 = vunpack.c.l.b16 %v84
    %v1149 = vunpack.c.h.b16 %v84
    %v1150 = vunpack.c.l.b16 %v85
    %v1151 = vunpack.c.h.b16 %v85
    %v1152 = vunpack.c.l.b16 %v86
    %v1153 = vunpack.c.h.b16 %v86
    %v1154 = vunpack.c.l.b16 %v87
    %v1155 = vunpack.c.h.b16 %v87
    %v1156 = vunpack.c.l.b16 %v88
    %v1157 = vunpack.c.h.b16 %v88
    %v1158 = vunpack.c.l.b16 %v89
    %v1159 = vunpack.c.h.b16 %v89
    %v1160 = vunpack.c.l.b16 %v90
    %v1161 = vunpack.c.h.b16 %v90
    %v1162 = vunpack.c.l.b16 %v91
    %v1163 = vunpack.c.h.b16 %v91
    %v1164 = vunpack.c.l.b16 %v92
    %v1165 = vunpack.c.h.b16 %v92
    %v1166 = vunpack.c.l.b16 %v93
    %v1167 = vunpack.c.h.b16 %v93
    %v1168 = vunpack.c.l.b16 %v94
    %v1169 = vunpack.c.h.b16 %v94
    %v1170 = vunpack.c.l.b16 %v95
    %v1171 = vunpack.c.h.b16 %v95
    %v1172 = vunpack.c.l.b16 %v96
    %v1173 = vunpack.c.h.b16 %v96
    %v1174 = vunpack.c.l.b16 %v97
    %v1175 = vunpack.c.h.b16 %v97
    %v1176 = vunpack.c.l.b16 %v98
    %v1177 = vunpack.c.h.b16 %v98
    %v1178 = vunpack.c.l.b16 %v99
    %v1179 = vunpack.c.h.b16 %v99
    %v1180 = vunpack.c.l.b16 %v100
    %v1181 = vunpack.c.h.b16 %v100
    %v1182 = vunpack.c.l.b16 %v101
    %v1183 = vunpack.c.h.b16 %v101
    %v1184 = vunpack.c.l.b16 %v102
    %v1185 = vunpack.c.h.b16 %v102
    %v1186 = vunpack.c.l.b16 %v103
    %v1187 = vunpack.c.h.b16 %v103
    %v1188 = vunpack.c.l.b16 %v104
    %v1189 = vunpack.c.h.b16 %v104
    %v1190 = vunpack.c.l.b16 %v105
    %v1191 = vunpack.c.h.b16 %v105
    %v1192 = vunpack.c.l.b16 %v106
    %v1193 = vunpack.c.h.b16 %v106
    %v1194 = vunpack.c.l.b16 %v107
    %v1195 = vunpack.c.h.b16 %v107
    %v1196 = vunpack.c.l.b16 %v108
    %v1197 = vunpack.c.h.b16 %v108
    %v1198 = vunpack.c.l.b16 %v109
    %v1199 = vunpack.c.h.b16 %v109
    %v1200 = vunpack.c.l.b16 %v110
    %v1201 = vunpack.c.h.b16 %v110
    %v1202 = vunpack.c.l.b16 %v111
    %v1203 = vunpack.c.h.b16 %v111
    %v1204 = vunpack.c.l.b16 %v112
    %v1205 = vunpack.c.h.b16 %v112
    %v1206 = vunpack.c.l.b16 %v113
    %v1207 = vunpack.c.h.b16 %v113
    %v1208 = vunpack.c.l.b16 %v114
    %v1209 = vunpack.c.h.b16 %v114
    %v1210 = vunpack.c.l.b16 %v115
    %v1211 = vunpack.c.h.b16 %v115
    %v1212 = vunpack.c.l.b16 %v116
    %v1213 = vunpack.c.h.b16 %v116
    %v1214 = vunpack.c.l.b16 %v117
    %v1215 = vunpack.c.h.b16 %v117
    %v1216 = vunpack.c.l.b16 %v118
    %v1217 = vunpack.c.h.b16 %v118
    %v1218 = vunpack.c.l.b16 %v119
    %v1219 = vunpack.c.h.b16 %v119
    %v1220 = vunpack.c.l.b16 %v120
    %v1221 = vunpack.c.h.b16 %v120
    %v1222 = vunpack.c.l.b16 %v121
    %v1223 = vunpack.c.h.b16 %v121
    %v1224 = vunpack.c.l.b16 %v122
    %v1225 = vunpack.c.h.b16 %v122
    %v1226 = vunpack.c.l.b16 %v123
    %v1227 = vunpack.c.h.b16 %v123
    %v1228 = vunpack.c.l.b16 %v124
    %v1229 = vunpack.c.h.b16 %v124
    %v1230 = vunpack.c.l.b16 %v125
    %v1231 = vunpack.c.h.b16 %v125
    %v1232 = vunpack.c.l.b16 %v126
    %v1233 = vunpack.c.h.b16 %v126
    %v1234 = vunpack.c.l.b16 %v127
    %v1235 = vunpack.c.h.b16 %v127
    %v1236 = vunpack.c.l.b16 %v128
    %v1237 = vunpack.c.h.b16 %v128
    %v1238 = vunpack.c.l.b16 %v129
    %v1239 = vunpack.c.h.b16 %v129
    %v1240 = vunpack.c.l.b16 %v130
    %v1241 = vunpack.c.h.b16 %v130
    %v1242 = vunpack.c.l.b16 %v131
    %v1243 = vunpack.c.h.b16 %v131
    %v1244 = vunpack.c.l.b16 %v132
    %v1245 = vunpack.c.h.b16 %v132
    %v1246 = vunpack.c.l.b16 %v133
    %v1247 = vunpack.c.h.b16 %v133
    %v1248 = vunpack.c.l.b16 %v134
    %v1249 = vunpack.c.h.b16 %v134
    %v1250 = vunpack.c.l.b16 %v135
    %v1251 = vunpack.c.h.b16 %v135
    %v1252 = vunpack.c.l.b16 %v136
    %v1253 = vunpack.c.h.b16 %v136
    %v1254 = vunpack.c.l.b16 %v137
    %v1255 = vunpack.c.h.b16 %v137
    %v1256 = vunpack.c.l.b16 %v138
    %v1257 = vunpack.c.h.b16 %v138
    %v1258 = vunpack.c.l.b16 %v139
    %v1259 = vunpack.c.h.b16 %v139
    %v1260 = vunpack.c.l.b16 %v140
    %v1261 = vunpack.c.h.b16 %v140
    %v1262 = vunpack.c.l.b16 %v141
    %v1263 = vunpack.c.h.b16 %v141
    %v1264 = vunpack.c.l.b16 %v142
    %v1265 = vunpack.c.h.b16 %v142
    %v1266 = vunpack.c.l.b16 %v143
    %v1267 = vunpack.c.h.b16 %v143
    %v1268 = vunpack.c.l.b16 %v144
    %v1269 = vunpack.c.h.b16 %v144
    %v1270 = vunpack.c.l.b16 %v145
    %v1271 = vunpack.c.h.b16 %v145
    %v1272 = vunpack.c.l.b16 %v146
    %v1273 = vunpack.c.h.b16 %v146
    %v1274 = vunpack.c.l.b16 %v147
    %v1275 = vunpack.c.h.b16 %v147
    %v1276 = vunpack.c.l.b16 %v148
    %v1277 = vunpack.c.h.b16 %v148
    %v1278 = vunpack.c.l.b16 %v149
    %v1279 = vunpack.c.h.b16 %v149
    %v1280 = vunpack.c.l.b16 %v150
    %v1281 = vunpack.c.h.b16 %v150
    %v1282 = vunpack.c.l.b16 %v151
    %v1283 = vunpack.c.h.b16 %v151
    %v1284 = vunpack.c.l.b16 %v152
    %v1285 = vunpack.c.h.b16 %v152
    %v1286 = vunpack.c.l.b16 %v153
    %v1287 = vunpack.c.h.b16 %v153
    %v1288 = vunpack.c.l.b16 %v154
    %v1289 = vunpack.c.h.b16 %v154
    %v1290 = vunpack.c.l.b16 %v155
    %v1291 = vunpack.c.h.b16 %v155
    %v1292 = vunpack.c.l.b16 %v156
    %v1293 = vunpack.c.h.b16 %v156
    %v1294 = vunpack.c.l.b16 %v157
    %v1295 = vunpack.c.h.b16 %v157
    %v1296 = vunpack.c.l.b16 %v158
    %v1297 = vunpack.c.h.b16 %v158
    %v1298 = vunpack.c.l.b16 %v159
    %v1299 = vunpack.c.h.b16 %v159
    %v1300 = vunpack.c.l.b16 %v160
    %v1301 = vunpack.c.h.b16 %v160
    %v1302 = vunpack.c.l.b16 %v161
    %v1303 = vunpack.c.h.b16 %v161
    %v1304 = vunpack.c.l.b16 %v162
    %v1305 = vunpack.c.h.b16 %v162
    %v1306 = vunpack.c.l.b16 %v163
    %v1307 = vunpack.c.h.b16 %v163
    %v1308 = vunpack.c.l.b16 %v164
    %v1309 = vunpack.c.h.b16 %v164
    %v1310 = vunpack.c.l.b16 %v165
    %v1311 = vunpack.c.h.b16 %v165
    %v1312 = vunpack.c.l.b16 %v166
    %v1313 = vunpack.c.h.b16 %v166
    %v1314 = vunpack.c.l.b16 %v167
    %v1315 = vunpack.c.h.b16 %v167
    %v1316 = vunpack.c.l.b16 %v168
    %v1317 = vunpack.c.h.b16 %v168
    %v1318 = vunpack.c.l.b16 %v169
    %v1319 = vunpack.c.h.b16 %v169
    %v1320 = vunpack.c.l.b16 %v170
    %v1321 = vunpack.c.h.b16 %v170
    %v1322 = vunpack.c.l.b16 %v171
    %v1323 = vunpack.c.h.b16 %v171
    %v1324 = vunpack.c.l.b16 %v172
    %v1325 = vunpack.c.h.b16 %v172
    %v1326 = vunpack.c.l.b16 %v173
    %v1327 = vunpack.c.h.b16 %v173
    %v1328 = vunpack.c.l.b16 %v174
    %v1329 = vunpack.c.h.b16 %v174
    %v1330 = vunpack.c.l.b16 %v175
    %v1331 = vunpack.c.h.b16 %v175
    %v1332 = vunpack.c.l.b16 %v176
    %v1333 = vunpack.c.h.b16 %v176
    %v1334 = vunpack.c.l.b16 %v177
    %v1335 = vunpack.c.h.b16 %v177
    %v1336 = vunpack.c.l.b16 %v178
    %v1337 = vunpack.c.h.b16 %v178
    %v1338 = vunpack.c.l.b16 %v179
    %v1339 = vunpack.c.h.b16 %v179
    %v1340 = vunpack.c.l.b16 %v180
    %v1341 = vunpack.c.h.b16 %v180
    %v1342 = vunpack.c.l.b16 %v181
    %v1343 = vunpack.c.h.b16 %v181
    %v1344 = vunpack.c.l.b16 %v182
    %v1345 = vunpack.c.h.b16 %v182
    %v1346 = vunpack.c.l.b16 %v183
    %v1347 = vunpack.c.h.b16 %v183
    %v1348 = vunpack.c.l.b16 %v184
    %v1349 = vunpack.c.h.b16 %v184
    %v1350 = vunpack.c.l.b16 %v185
    %v1351 = vunpack.c.h.b16 %v185
    %v1352 = vunpack.c.l.b16 %v186
    %v1353 = vunpack.c.h.b16 %v186
    %v1354 = vunpack.c.l.b16 %v187
    %v1355 = vunpack.c.h.b16 %v187
    %v1356 = vunpack.c.l.b16 %v188
    %v1357 = vunpack.c.h.b16 %v188
    %v1358 = vunpack.c.l.b16 %v189
    %v1359 = vunpack.c.h.b16 %v189
    %v1360 = vunpack.c.l.b16 %v190
    %v1361 = vunpack.c.h.b16 %v190
    %v1362 = vunpack.c.l.b16 %v191
    %v1363 = vunpack.c.h.b16 %v191
    %v1364 = vunpack.c.l.b16 %v192
    %v1365 = vunpack.c.h.b16 %v192
    %v1366 = vunpack.c.l.b16 %v193
    %v1367 = vunpack.c.h.b16 %v193
    %v1368 = vunpack.c.l.b16 %v194
    %v1369 = vunpack.c.h.b16 %v194
    %v1370 = vunpack.c.l.b16 %v195
    %v1371 = vunpack.c.h.b16 %v195
    %v1372 = vunpack.c.l.b16 %v196
    %v1373 = vunpack.c.h.b16 %v196
    %v1374 = vunpack.c.l.b16 %v197
    %v1375 = vunpack.c.h.b16 %v197
    %v1376 = vunpack.c.l.b16 %v198
    %v1377 = vunpack.c.h.b16 %v198
    %v1378 = vunpack.c.l.b16 %v199
    %v1379 = vunpack.c.h.b16 %v199
    %v1380 = vunpack.c.l.b16 %v200
    %v1381 = vunpack.c.h.b16 %v200
    %v1382 = vunpack.c.l.b16 %v201
    %v1383 = vunpack.c.h.b16 %v201
    %v1384 = vunpack.c.l.b16 %v202
    %v1385 = vunpack.c.h.b16 %v202
    %v1386 = vunpack.c.l.b16 %v203
    %v1387 = vunpack.c.h.b16 %v203
    %v1388 = vunpack.c.l.b16 %v204
    %v1389 = vunpack.c.h.b16 %v204
    %v1390 = vunpack.c.l.b16 %v205
    %v1391 = vunpack.c.h.b16 %v205
    %v1392 = vunpack.c.l.b16 %v206
    %v1393 = vunpack.c.h.b16 %v206
    %v1394 = vunpack.c.l.b16 %v207
    %v1395 = vunpack.c.h.b16 %v207
    %v1396 = vunpack.c.l.b16 %v208
    %v1397 = vunpack.c.h.b16 %v208
    %v1398 = vunpack.c.l.b16 %v209
    %v1399 = vunpack.c.h.b16 %v209
    %v1400 = vunpack.c.l.b16 %v210
    %v1401 = vunpack.c.h.b16 %v210
    %v1402 = vunpack.c.l.b16 %v211
    %v1403 = vunpack.c.h.b16 %v211
    %v1404 = vunpack.c.l.b16 %v212
    %v1405 = vunpack.c.h.b16 %v212
    %v1406 = vunpack.c.l.b16 %v213
    %v1407 = vunpack.c.h.b16 %v213
    %v1408 = vunpack.c.l.b16 %v214
    %v1409 = vunpack.c.h.b16 %v214
    %v1410 = vunpack.c.l.b16 %v215
    %v1411 = vunpack.c.h.b16 %v215
    %v1412 = vunpack.c.l.b16 %v216
    %v1413 = vunpack.c.h.b16 %v216
    %v1414 = vunpack.c.l.b16 %v217
    %v1415 = vunpack.c.h.b16 %v217
    %v1416 = vunpack.c.l.b16 %v218
    %v1417 = vunpack.c.h.b16 %v218
    %v1418 = vunpack.c.l.b16 %v219
    %v1419 = vunpack.c.h.b16 %v219
    %v1420 = vunpack.c.l.b16 %v220
    %v1421 = vunpack.c.h.b16 %v220
    %v1422 = vunpack.c.l.b16 %v221
    %v1423 = vunpack.c.h.b16 %v221
    %v1424 = vunpack.c.l.b16 %v222
    %v1425 = vunpack.c.h.b16 %v222
    %v1426 = vunpack.c.l.b16 %v223
    %v1427 = vunpack.c.h.b16 %v223
    %v1428 = vunpack.c.l.b16 %v224
    %v1429 = vunpack.c.h.b16 %v224
    %v1430 = vunpack.c.l.b16 %v225
    %v1431 = vunpack.c.h.b16 %v225
    %v1432 = vunpack.c.l.b16 %v226
    %v1433 = vunpack.c.h.b16 %v226
    %v1434 = vunpack.c.l.b16 %v227
    %v1435 = vunpack.c.h.b16 %v227
    %v1436 = vunpack.c.l.b16 %v228
    %v1437 = vunpack.c.h.b16 %v228
    %v1438 = vunpack.c.l.b16 %v229
    %v1439 = vunpack.c.h.b16 %v229
    %v1440 = vunpack.c.l.b16 %v230
    %v1441 = vunpack.c.h.b16 %v230
    %v1442 = vunpack.c.l.b16 %v231
    %v1443 = vunpack.c.h.b16 %v231
    %v1444 = vunpack.c.l.b16 %v232
    %v1445 = vunpack.c.h.b16 %v232
    %v1446 = vunpack.c.l.b16 %v233
    %v1447 = vunpack.c.h.b16 %v233
    %v1448 = vunpack.c.l.b16 %v234
    %v1449 = vunpack.c.h.b16 %v234
    %v1450 = vunpack.c.l.b16 %v235
    %v1451 = vunpack.c.h.b16 %v235
    %v1452 = vunpack.c.l.b16 %v236
    %v1453 = vunpack.c.h.b16 %v236
    %v1454 = vunpack.c.l.b16 %v237
    %v1455 = vunpack.c.h.b16 %v237
    %v1456 = vunpack.c.l.b16 %v238
    %v1457 = vunpack.c.h.b16 %v238
    %v1458 = vunpack.c.l.b16 %v239
    %v1459 = vunpack.c.h.b16 %v239
    %v1460 = vunpack.c.l.b16 %v240
    %v1461 = vunpack.c.h.b16 %v240
    %v1462 = vunpack.c.l.b16 %v241
    %v1463 = vunpack.c.h.b16 %v241
    %v1464 = vunpack.c.l.b16 %v242
    %v1465 = vunpack.c.h.b16 %v242
    %v1466 = vunpack.c.l.b16 %v243
    %v1467 = vunpack.c.h.b16 %v243
    %v1468 = vunpack.c.l.b16 %v244
    %v1469 = vunpack.c.h.b16 %v244
    %v1470 = vunpack.c.l.b16 %v245
    %v1471 = vunpack.c.h.b16 %v245
    %v1472 = vunpack.c.l.b16 %v246
    %v1473 = vunpack.c.h.b16 %v246
    %v1474 = vunpack.c.l.b16 %v247
    %v1475 = vunpack.c.h.b16 %v247
    %v1476 = vunpack.c.l.b16 %v248
    %v1477 = vunpack.c.h.b16 %v248
    %v1478 = vunpack.c.l.b16 %v249
    %v1479 = vunpack.c.h.b16 %v249
    %v1480 = vunpack.c.l.b16 %v250
    %v1481 = vunpack.c.h.b16 %v250
    %v1482 = vunpack.c.l.b16 %v251
    %v1483 = vunpack.c.h.b16 %v251
    %v1484 = vunpack.c.l.b16 %v252
    %v1485 = vunpack.c.h.b16 %v252
    %v1486 = vunpack.c.l.b16 %v253
    %v1487 = vunpack.c.h.b16 %v253
    %v1488 = vunpack.c.l.b16 %v254
    %v1489 = vunpack.c.h.b16 %v254
    %v1490 = vunpack.c.l.b16 %v255
    %v1491 = vunpack.c.h.b16 %v255
    %v1492 = vunpack.c.l.b16 %v256
    %v1493 = vunpack.c.h.b16 %v256
    %v1494 = vunpack.c.l.b16 %v257
    %v1495 = vunpack.c.h.b16 %v257
    %v1496 = vunpack.c.l.b16 %v258
    %v1497 = vunpack.c.h.b16 %v258
    %v1498 = vunpack.c.l.b16 %v259
    %v1499 = vunpack.c.h.b16 %v259
    %v1500 = vunpack.c.l.b16 %v260
    %v1501 = vunpack.c.h.b16 %v260
    %v1502 = vunpack.c.l.b16 %v261
    %v1503 = vunpack.c.h.b16 %v261
    %v1504 = vunpack.c.l.b16 %v262
    %v1505 = vunpack.c.h.b16 %v262
    %v1506 = vunpack.c.l.b16 %v263
    %v1507 = vunpack.c.h.b16 %v263
    %v1508 = vunpack.c.l.b16 %v264
    %v1509 = vunpack.c.h.b16 %v264
    %v1510 = vunpack.c.l.b16 %v265
    %v1511 = vunpack.c.h.b16 %v265
    %v1512 = vunpack.c.l.b16 %v266
    %v1513 = vunpack.c.h.b16 %v266
    %v1514 = vunpack.c.l.b16 %v267
    %v1515 = vunpack.c.h.b16 %v267
    %v1516 = vunpack.c.l.b16 %v268
    %v1517 = vunpack.c.h.b16 %v268
    %v1518 = vunpack.c.l.b16 %v269
    %v1519 = vunpack.c.h.b16 %v269
    %v1520 = vunpack.c.l.b16 %v270
    %v1521 = vunpack.c.h.b16 %v270
    %v1522 = vunpack.c.l.b16 %v271
    %v1523 = vunpack.c.h.b16 %v271
    %v1524 = vunpack.c.l.b16 %v272
    %v1525 = vunpack.c.h.b16 %v272
    %v1526 = vunpack.c.l.b16 %v273
    %v1527 = vunpack.c.h.b16 %v273
    %v1528 = vunpack.c.l.b16 %v274
    %v1529 = vunpack.c.h.b16 %v274
    %v1530 = vunpack.c.l.b16 %v275
    %v1531 = vunpack.c.h.b16 %v275
    %v1532 = vunpack.c.l.b16 %v276
    %v1533 = vunpack.c.h.b16 %v276
    %v1534 = vunpack.c.l.b16 %v277
    %v1535 = vunpack.c.h.b16 %v277
    %v1536 = vunpack.c.l.b16 %v278
    %v1537 = vunpack.c.h.b16 %v278
    %v1538 = vunpack.c.l.b16 %v279
    %v1539 = vunpack.c.h.b16 %v279
    %v1540 = vunpack.c.l.b16 %v280
    %v1541 = vunpack.c.h.b16 %v280
    %v1542 = vunpack.c.l.b16 %v281
    %v1543 = vunpack.c.h.b16 %v281
    %v1544 = vunpack.c.l.b16 %v282
    %v1545 = vunpack.c.h.b16 %v282
    %v1546 = vunpack.c.l.b16 %v283
    %v1547 = vunpack.c.h.b16 %v283
    %v1548 = vunpack.c.l.b16 %v284
    %v1549 = vunpack.c.h.b16 %v284
    %v1550 = vunpack.c.l.b16 %v285
    %v1551 = vunpack.c.h.b16 %v285
    %v1552 = vunpack.c.l.b16 %v286
    %v1553 = vunpack.c.h.b16 %v286
    %v1554 = vunpack.c.l.b16 %v287
    %v1555 = vunpack.c.h.b16 %v287
    %v1556 = vunpack.c.l.b16 %v288
    %v1557 = vunpack.c.h.b16 %v288
    %v1558 = vunpack.c.l.b16 %v289
    %v1559 = vunpack.c.h.b16 %v289
    %v1560 = vunpack.c.l.b16 %v290
    %v1561 = vunpack.c.h.b16 %v290
    %v1562 = vunpack.c.l.b16 %v291
    %v1563 = vunpack.c.h.b16 %v291
    %v1564 = vunpack.c.l.b16 %v292
    %v1565 = vunpack.c.h.b16 %v292
    %v1566 = vunpack.c.l.b16 %v293
    %v1567 = vunpack.c.h.b16 %v293
    %v1568 = vunpack.c.l.b16 %v294
    %v1569 = vunpack.c.h.b16 %v294
    %v1570 = vunpack.c.l.b16 %v295
    %v1571 = vunpack.c.h.b16 %v295
    %v1572 = vunpack.c.l.b16 %v296
    %v1573 = vunpack.c.h.b16 %v296
    %v1574 = vunpack.c.l.b16 %v297
    %v1575 = vunpack.c.h.b16 %v297
    %v1576 = vunpack.c.l.b16 %v298
    %v1577 = vunpack.c.h.b16 %v298
    %v1578 = vunpack.c.l.b16 %v299
    %v1579 = vunpack.c.h.b16 %v299
    %v1580 = vunpack.c.l.b16 %v300
    %v1581 = vunpack.c.h.b16 %v300
    %v1582 = vunpack.c.l.b16 %v301
    %v1583 = vunpack.c.h.b16 %v301
    %v1584 = vunpack.c.l.b16 %v302
    %v1585 = vunpack.c.h.b16 %v302
    %v1586 = vunpack.c.l.b16 %v303
    %v1587 = vunpack.c.h.b16 %v303
    %v1588 = vunpack.c.l.b16 %v304
    %v1589 = vunpack.c.h.b16 %v304
    %v1590 = vunpack.c.l.b16 %v305
    %v1591 = vunpack.c.h.b16 %v305
    %v1592 = vunpack.c.l.b16 %v306
    %v1593 = vunpack.c.h.b16 %v306
    %v1594 = vunpack.c.l.b16 %v307
    %v1595 = vunpack.c.h.b16 %v307
    %v1596 = vunpack.c.l.b16 %v308
    %v1597 = vunpack.c.h.b16 %v308
    %v1598 = vunpack.c.l.b16 %v309
    %v1599 = vunpack.c.h.b16 %v309
    %v1600 = vunpack.c.l.b16 %v310
    %v1601 = vunpack.c.h.b16 %v310
    %v1602 = vunpack.c.l.b16 %v311
    %v1603 = vunpack.c.h.b16 %v311
    %v1604 = vunpack.c.l.b16 %v312
    %v1605 = vunpack.c.h.b16 %v312
    %v1606 = vunpack.c.l.b16 %v313
    %v1607 = vunpack.c.h.b16 %v313
    %v1608 = vunpack.c.l.b16 %v314
    %v1609 = vunpack.c.h.b16 %v314
    %v1610 = vunpack.c.l.b16 %v315
    %v1611 = vunpack.c.h.b16 %v315
    %v1612 = vunpack.c.l.b16 %v316
    %v1613 = vunpack.c.h.b16 %v316
    %v1614 = vunpack.c.l.b16 %v317
    %v1615 = vunpack.c.h.b16 %v317
    %v1616 = vunpack.c.l.b16 %v318
    %v1617 = vunpack.c.h.b16 %v318
    %v1618 = vunpack.c.l.b16 %v319
    %v1619 = vunpack.c.h.b16 %v319
    %v1620 = vunpack.c.l.b16 %v320
    %v1621 = vunpack.c.h.b16 %v320
    %v1622 = vunpack.c.l.b16 %v321
    %v1623 = vunpack.c.h.b16 %v321
    %v1624 = vunpack.c.l.b16 %v322
    %v1625 = vunpack.c.h.b16 %v322
    %v1626 = vunpack.c.l.b16 %v323
    %v1627 = vunpack.c.h.b16 %v323
    %v1628 = vunpack.c.l.b16 %v324
    %v1629 = vunpack.c.h.b16 %v324
    %v1630 = vunpack.c.l.b16 %v325
    %v1631 = vunpack.c.h.b16 %v325
    %v1632 = vunpack.c.l.b16 %v326
    %v1633 = vunpack.c.h.b16 %v326
    %v1634 = vunpack.c.l.b16 %v327
    %v1635 = vunpack.c.h.b16 %v327
    %v1636 = vunpack.c.l.b16 %v328
    %v1637 = vunpack.c.h.b16 %v328
    %v1638 = vunpack.c.l.b16 %v329
    %v1639 = vunpack.c.h.b16 %v329
    %v1640 = vunpack.c.l.b16 %v330
    %v1641 = vunpack.c.h.b16 %v330
    %v1642 = vunpack.c.l.b16 %v331
    %v1643 = vunpack.c.h.b16 %v331
    %v1644 = vunpack.c.l.b16 %v332
    %v1645 = vunpack.c.h.b16 %v332
    %v1646 = vunpack.c.l.b16 %v333
    %v1647 = vunpack.c.h.b16 %v333
    %v1648 = vunpack.c.l.b16 %v334
    %v1649 = vunpack.c.h.b16 %v334
    %v1650 = vunpack.c.l.b16 %v335
    %v1651 = vunpack.c.h.b16 %v335
    %v1652 = vunpack.c.l.b16 %v336
    %v1653 = vunpack.c.h.b16 %v336
    %v1654 = vunpack.c.l.b16 %v337
    %v1655 = vunpack.c.h.b16 %v337
    %v1656 = vunpack.c.l.b16 %v338
    %v1657 = vunpack.c.h.b16 %v338
    %v1658 = vunpack.c.l.b16 %v339
    %v1659 = vunpack.c.h.b16 %v339
    %v1660 = vunpack.c.l.b16 %v340
    %v1661 = vunpack.c.h.b16 %v340
    %v1662 = vunpack.c.l.b16 %v341
    %v1663 = vunpack.c.h.b16 %v341
    %v1664 = vunpack.c.l.b16 %v342
    %v1665 = vunpack.c.h.b16 %v342
    %v1666 = vunpack.c.l.b16 %v343
    %v1667 = vunpack.c.h.b16 %v343
    %v1668 = vunpack.c.l.b16 %v344
    %v1669 = vunpack.c.h.b16 %v344
    %v1670 = vunpack.c.l.b16 %v345
    %v1671 = vunpack.c.h.b16 %v345
    %v1672 = vunpack.c.l.b16 %v346
    %v1673 = vunpack.c.h.b16 %v346
    %v1674 = vunpack.c.l.b16 %v347
    %v1675 = vunpack.c.h.b16 %v347
    %v1676 = vunpack.c.l.b16 %v348
    %v1677 = vunpack.c.h.b16 %v348
    %v1678 = vunpack.c.l.b16 %v349
    %v1679 = vunpack.c.h.b16 %v349
    %v1680 = vunpack.c.l.b16 %v350
    %v1681 = vunpack.c.h.b16 %v350
    %v1682 = vunpack.c.l.b16 %v351
    %v1683 = vunpack.c.h.b16 %v351
    %v1684 = vunpack.c.l.b16 %v352
    %v1685 = vunpack.c.h.b16 %v352
    %v1686 = vunpack.c.l.b16 %v353
    %v1687 = vunpack.c.h.b16 %v353
    %v1688 = vunpack.c.l.b16 %v354
    %v1689 = vunpack.c.h.b16 %v354
    %v1690 = vunpack.c.l.b16 %v355
    %v1691 = vunpack.c.h.b16 %v355
    %v1692 = vunpack.c.l.b16 %v356
    %v1693 = vunpack.c.h.b16 %v356
    %v1694 = vunpack.c.l.b16 %v357
    %v1695 = vunpack.c.h.b16 %v357
    %v1696 = vunpack.c.l.b16 %v358
    %v1697 = vunpack.c.h.b16 %v358
    %v1698 = vunpack.c.l.b16 %v359
    %v1699 = vunpack.c.h.b16 %v359
    %v1700 = vunpack.c.l.b16 %v360
    %v1701 = vunpack.c.h.b16 %v360
    %v1702 = vunpack.c.l.b16 %v361
    %v1703 = vunpack.c.h.b16 %v361
    %v1704 = vunpack.c.l.b16 %v362
    %v1705 = vunpack.c.h.b16 %v362
    %v1706 = vunpack.c.l.b16 %v363
    %v1707 = vunpack.c.h.b16 %v363
    %v1708 = vunpack.c.l.b16 %v364
    %v1709 = vunpack.c.h.b16 %v364
    %v1710 = vunpack.c.l.b16 %v365
    %v1711 = vunpack.c.h.b16 %v365
    %v1712 = vunpack.c.l.b16 %v366
    %v1713 = vunpack.c.h.b16 %v366
    %v1714 = vunpack.c.l.b16 %v367
    %v1715 = vunpack.c.h.b16 %v367
    %v1716 = vunpack.c.l.b16 %v368
    %v1717 = vunpack.c.h.b16 %v368
    %v1718 = vunpack.c.l.b16 %v369
    %v1719 = vunpack.c.h.b16 %v369
    %v1720 = vunpack.c.l.b16 %v370
    %v1721 = vunpack.c.h.b16 %v370
    %v1722 = vunpack.c.l.b16 %v371
    %v1723 = vunpack.c.h.b16 %v371
    %v1724 = vunpack.c.l.b16 %v372
    %v1725 = vunpack.c.h.b16 %v372
    %v1726 = vunpack.c.l.b16 %v373
    %v1727 = vunpack.c.h.b16 %v373
    %v1728 = vunpack.c.l.b16 %v374
    %v1729 = vunpack.c.h.b16 %v374
    %v1730 = vunpack.c.l.b16 %v375
    %v1731 = vunpack.c.h.b16 %v375
    %v1732 = vunpack.c.l.b16 %v376
    %v1733 = vunpack.c.h.b16 %v376
    %v1734 = vunpack.c.l.b16 %v377
    %v1735 = vunpack.c.h.b16 %v377
    %v1736 = vunpack.c.l.b16 %v378
    %v1737 = vunpack.c.h.b16 %v378
    %v1738 = vunpack.c.l.b16 %v379
    %v1739 = vunpack.c.h.b16 %v379
    %v1740 = vunpack.c.l.b16 %v380
    %v1741 = vunpack.c.h.b16 %v380
    %v1742 = vunpack.c.l.b16 %v381
    %v1743 = vunpack.c.h.b16 %v381
    %v1744 = vunpack.c.l.b16 %v382
    %v1745 = vunpack.c.h.b16 %v382
    %v1746 = vunpack.c.l.b16 %v383
    %v1747 = vunpack.c.h.b16 %v383
    %v1748 = vunpack.c.l.b16 %v384
    %v1749 = vunpack.c.h.b16 %v384
    %v1750 = vunpack.c.l.b16 %v385
    %v1751 = vunpack.c.h.b16 %v385
    %v1752 = vunpack.c.l.b16 %v386
    %v1753 = vunpack.c.h.b16 %v386
    %v1754 = vunpack.c.l.b16 %v387
    %v1755 = vunpack.c.h.b16 %v387
    %v1756 = vunpack.c.l.b16 %v388
    %v1757 = vunpack.c.h.b16 %v388
    %v1758 = vunpack.c.l.b16 %v389
    %v1759 = vunpack.c.h.b16 %v389
    %v1760 = vunpack.c.l.b16 %v390
    %v1761 = vunpack.c.h.b16 %v390
    %v1762 = vunpack.c.l.b16 %v391
    %v1763 = vunpack.c.h.b16 %v391
    %v1764 = vunpack.c.l.b16 %v392
    %v1765 = vunpack.c.h.b16 %v392
    %v1766 = vunpack.c.l.b16 %v393
    %v1767 = vunpack.c.h.b16 %v393
    %v1768 = vunpack.c.l.b16 %v394
    %v1769 = vunpack.c.h.b16 %v394
    %v1770 = vunpack.c.l.b16 %v395
    %v1771 = vunpack.c.h.b16 %v395
    %v1772 = vunpack.c.l.b16 %v396
    %v1773 = vunpack.c.h.b16 %v396
    %v1774 = vunpack.c.l.b16 %v397
    %v1775 = vunpack.c.h.b16 %v397
    %v1776 = vunpack.c.l.b16 %v398
    %v1777 = vunpack.c.h.b16 %v398
    %v1778 = vunpack.c.l.b16 %v399
    %v1779 = vunpack.c.h.b16 %v399
    %v1780 = vunpack.c.l.b16 %v400
    %v1781 = vunpack.c.h.b16 %v400
    %v1782 = vunpack.c.l.b16 %v401
    %v1783 = vunpack.c.h.b16 %v401
    %v1784 = vunpack.c.l.b16 %v402
    %v1785 = vunpack.c.h.b16 %v402
    %v1786 = vunpack.c.l.b16 %v403
    %v1787 = vunpack.c.h.b16 %v403
    %v1788 = vunpack.c.l.b16 %v404
    %v1789 = vunpack.c.h.b16 %v404
    %v1790 = vunpack.c.l.b16 %v405
    %v1791 = vunpack.c.h.b16 %v405
    %v1792 = vunpack.c.l.b16 %v406
    %v1793 = vunpack.c.h.b16 %v406
    %v1794 = vunpack.c.l.b16 %v407
    %v1795 = vunpack.c.h.b16 %v407
    %v1796 = vunpack.c.l.b16 %v408
    %v1797 = vunpack.c.h.b16 %v408
    %v1798 = vunpack.c.l.b16 %v409
    %v1799 = vunpack.c.h.b16 %v409
    %v1800 = vunpack.c.l.b16 %v410
    %v1801 = vunpack.c.h.b16 %v410
    %v1802 = vunpack.c.l.b16 %v411
    %v1803 = vunpack.c.h.b16 %v411
    %v1804 = vunpack.c.l.b16 %v412
    %v1805 = vunpack.c.h.b16 %v412
    %v1806 = vunpack.c.l.b16 %v413
    %v1807 = vunpack.c.h.b16 %v413
    %v1808 = vunpack.c.l.b16 %v414
    %v1809 = vunpack.c.h.b16 %v414
    %v1810 = vunpack.c.l.b16 %v415
    %v1811 = vunpack.c.h.b16 %v415
    %v1812 = vunpack.c.l.b16 %v416
    %v1813 = vunpack.c.h.b16 %v416
    %v1814 = vunpack.c.l.b16 %v417
    %v1815 = vunpack.c.h.b16 %v417
    %v1816 = vunpack.c.l.b16 %v418
    %v1817 = vunpack.c.h.b16 %v418
    %v1818 = vunpack.c.l.b16 %v419
    %v1819 = vunpack.c.h.b16 %v419
    %v1820 = vunpack.c.l.b16 %v420
    %v1821 = vunpack.c.h.b16 %v420
    %v1822 = vunpack.c.l.b16 %v421
    %v1823 = vunpack.c.h.b16 %v421
    %v1824 = vunpack.c.l.b16 %v422
    %v1825 = vunpack.c.h.b16 %v422
    %v1826 = vunpack.c.l.b16 %v423
    %v1827 = vunpack.c.h.b16 %v423
    %v1828 = vunpack.c.l.b16 %v424
    %v1829 = vunpack.c.h.b16 %v424
    %v1830 = vunpack.c.l.b16 %v425
    %v1831 = vunpack.c.h.b16 %v425
    %v1832 = vunpack.c.l.b16 %v426
    %v1833 = vunpack.c.h.b16 %v426
    %v1834 = vunpack.c.l.b16 %v427
    %v1835 = vunpack.c.h.b16 %v427
    %v1836 = vunpack.c.l.b16 %v428
    %v1837 = vunpack.c.h.b16 %v428
    %v1838 = vunpack.c.l.b16 %v429
    %v1839 = vunpack.c.h.b16 %v429
    %v1840 = vunpack.c.l.b16 %v430
    %v1841 = vunpack.c.h.b16 %v430
    %v1842 = vunpack.c.l.b16 %v431
    %v1843 = vunpack.c.h.b16 %v431
    %v1844 = vunpack.c.l.b16 %v432
    %v1845 = vunpack.c.h.b16 %v432
    %v1846 = vunpack.c.l.b16 %v433
    %v1847 = vunpack.c.h.b16 %v433
    %v1848 = vunpack.c.l.b16 %v434
    %v1849 = vunpack.c.h.b16 %v434
    %v1850 = vunpack.c.l.b16 %v435
    %v1851 = vunpack.c.h.b16 %v435
    %v1852 = vunpack.c.l.b16 %v436
    %v1853 = vunpack.c.h.b16 %v436
    %v1854 = vunpack.c.l.b16 %v437
    %v1855 = vunpack.c.h.b16 %v437
    %v1856 = vunpack.c.l.b16 %v438
    %v1857 = vunpack.c.h.b16 %v438
    %v1858 = vunpack.c.l.b16 %v439
    %v1859 = vunpack.c.h.b16 %v439
    %v1860 = vunpack.c.l.b16 %v440
    %v1861 = vunpack.c.h.b16 %v440
    %v1862 = vunpack.c.l.b16 %v441
    %v1863 = vunpack.c.h.b16 %v441
    %v1864 = vunpack.c.l.b16 %v442
    %v1865 = vunpack.c.h.b16 %v442
    %v1866 = vunpack.c.l.b16 %v443
    %v1867 = vunpack.c.h.b16 %v443
    %v1868 = vunpack.c.l.b16 %v444
    %v1869 = vunpack.c.h.b16 %v444
    %v1870 = vunpack.c.l.b16 %v445
    %v1871 = vunpack.c.h.b16 %v445
    %v1872 = vunpack.c.l.b16 %v446
    %v1873 = vunpack.c.h.b16 %v446
    %v1874 = vunpack.c.l.b16 %v447
    %v1875 = vunpack.c.h.b16 %v447
    %v1876 = vunpack.c.l.b16 %v448
    %v1877 = vunpack.c.h.b16 %v448
    %v1878 = vunpack.c.l.b16 %v449
    %v1879 = vunpack.c.h.b16 %v449
    %v1880 = vunpack.c.l.b16 %v450
    %v1881 = vunpack.c.h.b16 %v450
    %v1882 = vunpack.c.l.b16 %v451
    %v1883 = vunpack.c.h.b16 %v451
    %v1884 = vunpack.c.l.b16 %v452
    %v1885 = vunpack.c.h.b16 %v452
    %v1886 = vunpack.c.l.b16 %v453
    %v1887 = vunpack.c.h.b16 %v453
    %v1888 = vunpack.c.l.b16 %v454
    %v1889 = vunpack.c.h.b16 %v454
    %v1890 = vunpack.c.l.b16 %v455
    %v1891 = vunpack.c.h.b16 %v455
    %v1892 = vunpack.c.l.b16 %v456
    %v1893 = vunpack.c.h.b16 %v456
    %v1894 = vunpack.c.l.b16 %v457
    %v1895 = vunpack.c.h.b16 %v457
    %v1896 = vunpack.c.l.b16 %v458
    %v1897 = vunpack.c.h.b16 %v458
    %v1898 = vunpack.c.l.b16 %v459
    %v1899 = vunpack.c.h.b16 %v459
    %v1900 = vunpack.c.l.b16 %v460
    %v1901 = vunpack.c.h.b16 %v460
    %v1902 = vunpack.c.l.b16 %v461
    %v1903 = vunpack.c.h.b16 %v461
    %v1904 = vunpack.c.l.b16 %v462
    %v1905 = vunpack.c.h.b16 %v462
    %v1906 = vunpack.c.l.b16 %v463
    %v1907 = vunpack.c.h.b16 %v463
    %v1908 = vunpack.c.l.b16 %v464
    %v1909 = vunpack.c.h.b16 %v464
    %v1910 = vunpack.c.l.b16 %v465
    %v1911 = vunpack.c.h.b16 %v465
    %v1912 = vunpack.c.l.b16 %v466
    %v1913 = vunpack.c.h.b16 %v466
    %v1914 = vunpack.c.l.b16 %v467
    %v1915 = vunpack.c.h.b16 %v467
    %v1916 = vunpack.c.l.b16 %v468
    %v1917 = vunpack.c.h.b16 %v468
    %v1918 = vunpack.c.l.b16 %v469
    %v1919 = vunpack.c.h.b16 %v469
    %v1920 = vunpack.c.l.b16 %v470
    %v1921 = vunpack.c.h.b16 %v470
    %v1922 = vunpack.c.l.b16 %v471
    %v1923 = vunpack.c.h.b16 %v471
    %v1924 = vunpack.c.l.b16 %v472
    %v1925 = vunpack.c.h.b16 %v472
    %v1926 = vunpack.c.l.b16 %v473
    %v1927 = vunpack.c.h.b16 %v473
    %v1928 = vunpack.c.l.b16 %v474
    %v1929 = vunpack.c.h.b16 %v474
    %v1930 = vunpack.c.l.b16 %v475
    %v1931 = vunpack.c.h.b16 %v475
    %v1932 = vunpack.c.l.b16 %v476
    %v1933 = vunpack.c.h.b16 %v476
    %v1934 = vunpack.c.l.b16 %v477
    %v1935 = vunpack.c.h.b16 %v477
    %v1936 = vunpack.c.l.b16 %v478
    %v1937 = vunpack.c.h.b16 %v478
    %v1938 = vunpack.c.l.b16 %v479
    %v1939 = vunpack.c.h.b16 %v479
    %v1940 = vunpack.c.l.b16 %v480
    %v1941 = vunpack.c.h.b16 %v480
    %v1942 = vunpack.c.l.b16 %v481
    %v1943 = vunpack.c.h.b16 %v481
    %v1944 = vunpack.c.l.b16 %v482
    %v1945 = vunpack.c.h.b16 %v482
    %v1946 = vunpack.c.l.b16 %v483
    %v1947 = vunpack.c.h.b16 %v483
    %v1948 = vunpack.c.l.b16 %v484
    %v1949 = vunpack.c.h.b16 %v484
    %v1950 = vunpack.c.l.b16 %v485
    %v1951 = vunpack.c.h.b16 %v485
    %v1952 = vunpack.c.l.b16 %v486
    %v1953 = vunpack.c.h.b16 %v486
    %v1954 = vunpack.c.l.b16 %v487
    %v1955 = vunpack.c.h.b16 %v487
    %v1956 = vunpack.c.l.b16 %v488
    %v1957 = vunpack.c.h.b16 %v488
    %v1958 = vunpack.c.l.b16 %v489
    %v1959 = vunpack.c.h.b16 %v489
    %v1960 = vunpack.c.l.b16 %v490
    %v1961 = vunpack.c.h.b16 %v490
    %v1962 = vunpack.c.l.b16 %v491
    %v1963 = vunpack.c.h.b16 %v491
    %v1964 = vunpack.c.l.b16 %v492
    %v1965 = vunpack.c.h.b16 %v492
    %v1966 = vunpack.c.l.b16 %v493
    %v1967 = vunpack.c.h.b16 %v493
    %v1968 = vunpack.c.l.b16 %v494
    %v1969 = vunpack.c.h.b16 %v494
    %v1970 = vunpack.c.l.b16 %v495
    %v1971 = vunpack.c.h.b16 %v495
    %v1972 = vunpack.c.l.b16 %v496
    %v1973 = vunpack.c.h.b16 %v496
    %v1974 = vunpack.c.l.b16 %v497
    %v1975 = vunpack.c.h.b16 %v497
    %v1976 = vunpack.c.l.b16 %v498
    %v1977 = vunpack.c.h.b16 %v498
    %v1978 = vunpack.c.l.b16 %v499
    %v1979 = vunpack.c.h.b16 %v499
    %v1980 = vunpack.c.l.b16 %v500
    %v1981 = vunpack.c.h.b16 %v500
    %v1982 = vunpack.c.l.b16 %v501
    %v1983 = vunpack.c.h.b16 %v501
    %v1984 = vunpack.c.l.b16 %v502
    %v1985 = vunpack.c.h.b16 %v502
    %v1986 = vunpack.c.l.b16 %v503
    %v1987 = vunpack.c.h.b16 %v503
    %v1988 = vunpack.c.l.b16 %v504
    %v1989 = vunpack.c.h.b16 %v504
    %v1990 = vunpack.c.l.b16 %v505
    %v1991 = vunpack.c.h.b16 %v505
    %v1992 = vunpack.c.l.b16 %v506
    %v1993 = vunpack.c.h.b16 %v506
    %v1994 = vunpack.c.l.b16 %v507
    %v1995 = vunpack.c.h.b16 %v507
    %v1996 = vunpack.c.l.b16 %v508
    %v1997 = vunpack.c.h.b16 %v508
    %v1998 = vunpack.c.l.b16 %v509
    %v1999 = vunpack.c.h.b16 %v509
    %v2000 = vunpack.c.l.b16 %v510
    %v2001 = vunpack.c.h.b16 %v510
    %v2002 = vunpack.c.l.b16 %v511
    %v2003 = vunpack.c.h.b16 %v511
    %v2004 = vunpack.c.l.b16 %v512
    %v2005 = vunpack.c.h.b16 %v512
    %v2006 = vunpack.c.l.b16 %v513
    %v2007 = vunpack.c.h.b16 %v513
    %v2008 = vunpack.c.l.b16 %v514
    %v2009 = vunpack.c.h.b16 %v514
    %v2010 = vunpack.c.l.b16 %v515
    %v2011 = vunpack.c.h.b16 %v515
    %v2012 = vunpack.c.l.b16 %v516
    %v2013 = vunpack.c.h.b16 %v516
    %v2014 = vunpack.c.l.b16 %v517
    %v2015 = vunpack.c.h.b16 %v517
    %v2016 = vunpack.c.l.b16 %v518
    %v2017 = vunpack.c.h.b16 %v518
    %v2018 = vunpack.c.l.b16 %v519
    %v2019 = vunpack.c.h.b16 %v519
    %v2020 = vunpack.c.l.b16 %v520
    %v2021 = vunpack.c.h.b16 %v520
    %v2022 = vunpack.c.l.b16 %v521
    %v2023 = vunpack.c.h.b16 %v521
    %v2024 = vunpack.c.l.b16 %v522
    %v2025 = vunpack.c.h.b16 %v522
    %v2026 = vunpack.c.l.b16 %v523
    %v2027 = vunpack.c.h.b16 %v523
    %v2028 = vunpack.c.l.b16 %v524
    %v2029 = vunpack.c.h.b16 %v524
    %v2030 = vunpack.c.l.b16 %v525
    %v2031 = vunpack.c.h.b16 %v525
    %v2032 = vunpack.c.l.b16 %v526
    %v2033 = vunpack.c.h.b16 %v526
    %v2034 = vunpack.c.l.b16 %v527
    %v2035 = vunpack.c.h.b16 %v527
    %v2036 = vunpack.c.l.b16 %v528
    %v2037 = vunpack.c.h.b16 %v528
    %v2038 = vunpack.c.l.b16 %v529
    %v2039 = vunpack.c.h.b16 %v529
    %v2040 = vunpack.c.l.b16 %v530
    %v2041 = vunpack.c.h.b16 %v530
    %v2042 = vunpack.c.l.b16 %v531
    %v2043 = vunpack.c.h.b16 %v531
    %v2044 = vunpack.c.l.b16 %v532
    %v2045 = vunpack.c.h.b16 %v532
    %v2046 = vunpack.c.l.b16 %v533
    %v2047 = vunpack.c.h.b16 %v533
    %v2048 = vunpack.c.l.b16 %v534
    %v2049 = vunpack.c.h.b16 %v534
    %v2050 = vunpack.c.l.b16 %v535
    %v2051 = vunpack.c.h.b16 %v535
    %v2052 = vunpack.c.l.b16 %v536
    %v2053 = vunpack.c.h.b16 %v536
    %v2054 = vunpack.c.l.b16 %v537
    %v2055 = vunpack.c.h.b16 %v537
    %v2056 = vunpack.c.l.b16 %v538
    %v2057 = vunpack.c.h.b16 %v538
    %v2058 = vunpack.c.l.b16 %v539
    %v2059 = vunpack.c.h.b16 %v539
    %v2060 = vunpack.c.l.b16 %v540
    %v2061 = vunpack.c.h.b16 %v540
    %v2062 = vunpack.c.l.b16 %v541
    %v2063 = vunpack.c.h.b16 %v541
    %v2064 = vunpack.c.l.b16 %v542
    %v2065 = vunpack.c.h.b16 %v542
    %v2066 = vunpack.c.l.b16 %v543
    %v2067 = vunpack.c.h.b16 %v543
    %v2068 = vunpack.c.l.b16 %v544
    %v2069 = vunpack.c.h.b16 %v544
    %v2070 = vunpack.c.l.b16 %v545
    %v2071 = vunpack.c.h.b16 %v545
    %v2072 = vunpack.c.l.b16 %v546
    %v2073 = vunpack.c.h.b16 %v546
    %v2074 = vunpack.c.l.b16 %v547
    %v2075 = vunpack.c.h.b16 %v547
    %v2076 = vunpack.c.l.b16 %v548
    %v2077 = vunpack.c.h.b16 %v548
    %v2078 = vunpack.c.l.b16 %v549
    %v2079 = vunpack.c.h.b16 %v549
    %v2080 = vunpack.c.l.b16 %v550
    %v2081 = vunpack.c.h.b16 %v550
    %v2082 = vunpack.c.l.b16 %v551
    %v2083 = vunpack.c.h.b16 %v551
    %v2084 = vunpack.c.l.b16 %v552
    %v2085 = vunpack.c.h.b16 %v552
    %v2086 = vunpack.c.l.b16 %v553
    %v2087 = vunpack.c.h.b16 %v553
    %v2088 = vunpack.c.l.b16 %v554
    %v2089 = vunpack.c.h.b16 %v554
    %v2090 = vunpack.c.l.b16 %v555
    %v2091 = vunpack.c.h.b16 %v555
    %v2092 = vunpack.c.l.b16 %v556
    %v2093 = vunpack.c.h.b16 %v556
    %v2094 = vunpack.c.l.b16 %v557
    %v2095 = vunpack.c.h.b16 %v557
    %v2096 = vunpack.c.l.b16 %v558
    %v2097 = vunpack.c.h.b16 %v558
    %v2098 = vunpack.c.l.b16 %v559
    %v2099 = vunpack.c.h.b16 %v559
    %v2100 = vunpack.c.l.b16 %v560
    %v2101 = vunpack.c.h.b16 %v560
    %v2102 = vunpack.c.l.b16 %v561
    %v2103 = vunpack.c.h.b16 %v561
    %v2104 = vunpack.c.l.b16 %v562
    %v2105 = vunpack.c.h.b16 %v562
    %v2106 = vunpack.c.l.b16 %v563
    %v2107 = vunpack.c.h.b16 %v563
    %v2108 = vunpack.c.l.b16 %v564
    %v2109 = vunpack.c.h.b16 %v564
    %v2110 = vunpack.c.l.b16 %v565
    %v2111 = vunpack.c.h.b16 %v565
    %v2112 = vunpack.c.l.b16 %v566
    %v2113 = vunpack.c.h.b16 %v566
    %v2114 = vunpack.c.l.b16 %v567
    %v2115 = vunpack.c.h.b16 %v567
    %v2116 = vunpack.c.l.b16 %v568
    %v2117 = vunpack.c.h.b16 %v568
    %v2118 = vunpack.c.l.b16 %v569
    %v2119 = vunpack.c.h.b16 %v569
    %v2120 = vunpack.c.l.b16 %v570
    %v2121 = vunpack.c.h.b16 %v570
    %v2122 = vunpack.c.l.b16 %v571
    %v2123 = vunpack.c.h.b16 %v571
    %v2124 = vunpack.c.l.b16 %v572
    %v2125 = vunpack.c.h.b16 %v572
    %v2126 = vunpack.c.l.b16 %v573
    %v2127 = vunpack.c.h.b16 %v573
    %v2128 = vunpack.c.l.b16 %v574
    %v2129 = vunpack.c.h.b16 %v574
    %v2130 = vunpack.c.l.b16 %v575
    %v2131 = vunpack.c.h.b16 %v575
    %v2132 = vunpack.c.l.b16 %v576
    %v2133 = vunpack.c.h.b16 %v576
    %v2134 = vunpack.c.l.b16 %v577
    %v2135 = vunpack.c.h.b16 %v577
    %v2136 = vunpack.c.l.b16 %v578
    %v2137 = vunpack.c.h.b16 %v578
    %v2138 = vunpack.c.l.b16 %v579
    %v2139 = vunpack.c.h.b16 %v579
    %v2140 = vunpack.c.l.b16 %v580
    %v2141 = vunpack.c.h.b16 %v580
    %v2142 = vunpack.c.l.b16 %v581
    %v2143 = vunpack.c.h.b16 %v581
    %v2144 = vunpack.c.l.b16 %v582
    %v2145 = vunpack.c.h.b16 %v582
    %v2146 = vunpack.c.l.b16 %v583
    %v2147 = vunpack.c.h.b16 %v583
    %v2148 = vunpack.c.l.b16 %v584
    %v2149 = vunpack.c.h.b16 %v584
    %v2150 = vunpack.c.l.b16 %v585
    %v2151 = vunpack.c.h.b16 %v585
    %v2152 = vunpack.c.l.b16 %v586
    %v2153 = vunpack.c.h.b16 %v586
    %v2154 = vunpack.c.l.b16 %v587
    %v2155 = vunpack.c.h.b16 %v587
    %v2156 = vunpack.c.l.b16 %v588
    %v2157 = vunpack.c.h.b16 %v588
    %v2158 = vunpack.c.l.b16 %v589
    %v2159 = vunpack.c.h.b16 %v589
    %v2160 = vunpack.c.l.b16 %v590
    %v2161 = vunpack.c.h.b16 %v590
    %v2162 = vunpack.c.l.b16 %v591
    %v2163 = vunpack.c.h.b16 %v591
    %v2164 = vpack.c.b16 %v1148, %v1140
    %v2165 = vpack.c.b16 %v1149, %v1141
    %v2166 = vpack.c.b16 %v1150, %v1142
    %v2167 = vpack.c.b16 %v1151, %v1143
    %v2168 = vpack.c.b16 %v1152, %v1144
    %v2169 = vpack.c.b16 %v1153, %v1145
    %v2170 = vpack.c.b16 %v1154, %v1146
    %v2171 = vpack.c.b16 %v1155, %v1147
    %v2172 = vpack.c.b16 %v1164, %v1156
    %v2173 = vpack.c.b16 %v1165, %v1157
    %v2174 = vpack.c.b16 %v1166, %v1158
    %v2175 = vpack.c.b16 %v1167, %v1159
    %v2176 = vpack.c.b16 %v1168, %v1160
    %v2177 = vpack.c.b16 %v1169, %v1161
    %v2178 = vpack.c.b16 %v1170, %v1162
    %v2179 = vpack.c.b16 %v1171, %v1163
    %v2180 = vpack.c.b16 %v1180, %v1172
    %v2181 = vpack.c.b16 %v1181, %v1173
    %v2182 = vpack.c.b16 %v1182, %v1174
    %v2183 = vpack.c.b16 %v1183, %v1175
    %v2184 = vpack.c.b16 %v1184, %v1176
    %v2185 = vpack.c.b16 %v1185, %v1177
    %v2186 = vpack.c.b16 %v1186, %v1178
    %v2187 = vpack.c.b16 %v1187, %v1179
    %v2188 = vpack.c.b16 %v1196, %v1188
    %v2189 = vpack.c.b16 %v1197, %v1189
    %v2190 = vpack.c.b16 %v1198, %v1190
    %v2191 = vpack.c.b16 %v1199, %v1191
    %v2192 = vpack.c.b16 %v1200, %v1192
    %v2193 = vpack.c.b16 %v1201, %v1193
    %v2194 = vpack.c.b16 %v1202, %v1194
    %v2195 = vpack.c.b16 %v1203, %v1195
    %v2196 = vpack.c.b16 %v1212, %v1204
    %v2197 = vpack.c.b16 %v1213, %v1205
    %v2198 = vpack.c.b16 %v1214, %v1206
    %v2199 = vpack.c.b16 %v1215, %v1207
    %v2200 = vpack.c.b16 %v1216, %v1208
    %v2201 = vpack.c.b16 %v1217, %v1209
    %v2202 = vpack.c.b16 %v1218, %v1210
    %v2203 = vpack.c.b16 %v1219, %v1211
    %v2204 = vpack.c.b16 %v1228, %v1220
    %v2205 = vpack.c.b16 %v1229, %v1221
    %v2206 = vpack.c.b16 %v1230, %v1222
    %v2207 = vpack.c.b16 %v1231, %v1223
    %v2208 = vpack.c.b16 %v1232, %v1224
    %v2209 = vpack.c.b16 %v1233, %v1225
    %v2210 = vpack.c.b16 %v1234, %v1226
    %v2211 = vpack.c.b16 %v1235, %v1227
    %v2212 = vpack.c.b16 %v1244, %v1236
    %v2213 = vpack.c.b16 %v1245, %v1237
    %v2214 = vpack.c.b16 %v1246, %v1238
    %v2215 = vpack.c.b16 %v1247, %v1239
    %v2216 = vpack.c.b16 %v1248, %v1240
    %v2217 = vpack.c.b16 %v1249, %v1241
    %v2218 = vpack.c.b16 %v1250, %v1242
    %v2219 = vpack.c.b16 %v1251, %v1243
    %v2220 = vpack.c.b16 %v1260, %v1252
    %v2221 = vpack.c.b16 %v1261, %v1253
    %v2222 = vpack.c.b16 %v1262, %v1254
    %v2223 = vpack.c.b16 %v1263, %v1255
    %v2224 = vpack.c.b16 %v1264, %v1256
    %v2225 = vpack.c.b16 %v1265, %v1257
    %v2226 = vpack.c.b16 %v1266, %v1258
    %v2227 = vpack.c.b16 %v1267, %v1259
    %v2228 = vpack.c.b16 %v1276, %v1268
    %v2229 = vpack.c.b16 %v1277, %v1269
    %v2230 = vpack.c.b16 %v1278, %v1270
    %v2231 = vpack.c.b16 %v1279, %v1271
    %v2232 = vpack.c.b16 %v1280, %v1272
    %v2233 = vpack.c.b16 %v1281, %v1273
    %v2234 = vpack.c.b16 %v1282, %v1274
    %v2235 = vpack.c.b16 %v1283, %v1275
    %v2236 = vpack.c.b16 %v1292, %v1284
    %v2237 = vpack.c.b16 %v1293, %v1285
    %v2238 = vpack.c.b16 %v1294, %v1286
    %v2239 = vpack.c.b16 %v1295, %v1287
    %v2240 = vpack.c.b16 %v1296, %v1288
    %v2241 = vpack.c.b16 %v1297, %v1289
    %v2242 = vpack.c.b16 %v1298, %v1290
    %v2243 = vpack.c.b16 %v1299, %v1291
    %v2244 = vpack.c.b16 %v1308, %v1300
    %v2245 = vpack.c.b16 %v1309, %v1301
    %v2246 = vpack.c.b16 %v1310, %v1302
    %v2247 = vpack.c.b16 %v1311, %v1303
    %v2248 = vpack.c.b16 %v1312, %v1304
    %v2249 = vpack.c.b16 %v1313, %v1305
    %v2250 = vpack.c.b16 %v1314, %v1306
    %v2251 = vpack.c.b16 %v1315, %v1307
    %v2252 = vpack.c.b16 %v1324, %v1316
    %v2253 = vpack.c.b16 %v1325, %v1317
    %v2254 = vpack.c.b16 %v1326, %v1318
    %v2255 = vpack.c.b16 %v1327, %v1319
    %v2256 = vpack.c.b16 %v1328, %v1320
    %v2257 = vpack.c.b16 %v1329, %v1321
    %v2258 = vpack.c.b16 %v1330, %v1322
    %v2259 = vpack.c.b16 %v1331, %v1323
    %v2260 = vpack.c.b16 %v1340, %v1332
    %v2261 = vpack.c.b16 %v1341, %v1333
    %v2262 = vpack.c.b16 %v1342, %v1334
    %v2263 = vpack.c.b16 %v1343, %v1335
    %v2264 = vpack.c.b16 %v1344, %v1336
    %v2265 = vpack.c.b16 %v1345, %v1337
    %v2266 = vpack.c.b16 %v1346, %v1338
    %v2267 = vpack.c.b16 %v1347, %v1339
    %v2268 = vpack.c.b16 %v1356, %v1348
    %v2269 = vpack.c.b16 %v1357, %v1349
    %v2270 = vpack.c.b16 %v1358, %v1350
    %v2271 = vpack.c.b16 %v1359, %v1351
    %v2272 = vpack.c.b16 %v1360, %v1352
    %v2273 = vpack.c.b16 %v1361, %v1353
    %v2274 = vpack.c.b16 %v1362, %v1354
    %v2275 = vpack.c.b16 %v1363, %v1355
    %v2276 = vpack.c.b16 %v1372, %v1364
    %v2277 = vpack.c.b16 %v1373, %v1365
    %v2278 = vpack.c.b16 %v1374, %v1366
    %v2279 = vpack.c.b16 %v1375, %v1367
    %v2280 = vpack.c.b16 %v1376, %v1368
    %v2281 = vpack.c.b16 %v1377, %v1369
    %v2282 = vpack.c.b16 %v1378, %v1370
    %v2283 = vpack.c.b16 %v1379, %v1371
    %v2284 = vpack.c.b16 %v1388, %v1380
    %v2285 = vpack.c.b16 %v1389, %v1381
    %v2286 = vpack.c.b16 %v1390, %v1382
    %v2287 = vpack.c.b16 %v1391, %v1383
    %v2288 = vpack.c.b16 %v1392, %v1384
    %v2289 = vpack.c.b16 %v1393, %v1385
    %v2290 = vpack.c.b16 %v1394, %v1386
    %v2291 = vpack.c.b16 %v1395, %v1387
    %v2292 = vpack.c.b16 %v1404, %v1396
    %v2293 = vpack.c.b16 %v1405, %v1397
    %v2294 = vpack.c.b16 %v1406, %v1398
    %v2295 = vpack.c.b16 %v1407, %v1399
    %v2296 = vpack.c.b16 %v1408, %v1400
    %v2297 = vpack.c.b16 %v1409, %v1401
    %v2298 = vpack.c.b16 %v1410, %v1402
    %v2299 = vpack.c.b16 %v1411, %v1403
    %v2300 = vpack.c.b16 %v1420, %v1412
    %v2301 = vpack.c.b16 %v1421, %v1413
    %v2302 = vpack.c.b16 %v1422, %v1414
    %v2303 = vpack.c.b16 %v1423, %v1415
    %v2304 = vpack.c.b16 %v1424, %v1416
    %v2305 = vpack.c.b16 %v1425, %v1417
    %v2306 = vpack.c.b16 %v1426, %v1418
    %v2307 = vpack.c.b16 %v1427, %v1419
    %v2308 = vpack.c.b16 %v1436, %v1428
    %v2309 = vpack.c.b16 %v1437, %v1429
    %v2310 = vpack.c.b16 %v1438, %v1430
    %v2311 = vpack.c.b16 %v1439, %v1431
    %v2312 = vpack.c.b16 %v1440, %v1432
    %v2313 = vpack.c.b16 %v1441, %v1433
    %v2314 = vpack.c.b16 %v1442, %v1434
    %v2315 = vpack.c.b16 %v1443, %v1435
    %v2316 = vpack.c.b16 %v1452, %v1444
    %v2317 = vpack.c.b16 %v1453, %v1445
    %v2318 = vpack.c.b16 %v1454, %v1446
    %v2319 = vpack.c.b16 %v1455, %v1447
    %v2320 = vpack.c.b16 %v1456, %v1448
    %v2321 = vpack.c.b16 %v1457, %v1449
    %v2322 = vpack.c.b16 %v1458, %v1450
    %v2323 = vpack.c.b16 %v1459, %v1451
    %v2324 = vpack.c.b16 %v1468, %v1460
    %v2325 = vpack.c.b16 %v1469, %v1461
    %v2326 = vpack.c.b16 %v1470, %v1462
    %v2327 = vpack.c.b16 %v1471, %v1463
    %v2328 = vpack.c.b16 %v1472, %v1464
    %v2329 = vpack.c.b16 %v1473, %v1465
    %v2330 = vpack.c.b16 %v1474, %v1466
    %v2331 = vpack.c.b16 %v1475, %v1467
    %v2332 = vpack.c.b16 %v1484, %v1476
    %v2333 = vpack.c.b16 %v1485, %v1477
    %v2334 = vpack.c.b16 %v1486, %v1478
    %v2335 = vpack.c.b16 %v1487, %v1479
    %v2336 = vpack.c.b16 %v1488, %v1480
    %v2337 = vpack.c.b16 %v1489, %v1481
    %v2338 = vpack.c.b16 %v1490, %v1482
    %v2339 = vpack.c.b16 %v1491, %v1483
    %v2340 = vpack.c.b16 %v1500, %v1492
    %v2341 = vpack.c.b16 %v1501, %v1493
    %v2342 = vpack.c.b16 %v1502, %v1494
    %v2343 = vpack.c.b16 %v1503, %v1495
    %v2344 = vpack.c.b16 %v1504, %v1496
    %v2345 = vpack.c.b16 %v1505, %v1497
    %v2346 = vpack.c.b16 %v1506, %v1498
    %v2347 = vpack.c.b16 %v1507, %v1499
    %v2348 = vpack.c.b16 %v1516, %v1508
    %v2349 = vpack.c.b16 %v1517, %v1509
    %v2350 = vpack.c.b16 %v1518, %v1510
    %v2351 = vpack.c.b16 %v1519, %v1511
    %v2352 = vpack.c.b16 %v1520, %v1512
    %v2353 = vpack.c.b16 %v1521, %v1513
    %v2354 = vpack.c.b16 %v1522, %v1514
    %v2355 = vpack.c.b16 %v1523, %v1515
    %v2356 = vpack.c.b16 %v1532, %v1524
    %v2357 = vpack.c.b16 %v1533, %v1525
    %v2358 = vpack.c.b16 %v1534, %v1526
    %v2359 = vpack.c.b16 %v1535, %v1527
    %v2360 = vpack.c.b16 %v1536, %v1528
    %v2361 = vpack.c.b16 %v1537, %v1529
    %v2362 = vpack.c.b16 %v1538, %v1530
    %v2363 = vpack.c.b16 %v1539, %v1531
    %v2364 = vpack.c.b16 %v1548, %v1540
    %v2365 = vpack.c.b16 %v1549, %v1541
    %v2366 = vpack.c.b16 %v1550, %v1542
    %v2367 = vpack.c.b16 %v1551, %v1543
    %v2368 = vpack.c.b16 %v1552, %v1544
    %v2369 = vpack.c.b16 %v1553, %v1545
    %v2370 = vpack.c.b16 %v1554, %v1546
    %v2371 = vpack.c.b16 %v1555, %v1547
    %v2372 = vpack.c.b16 %v1564, %v1556
    %v2373 = vpack.c.b16 %v1565, %v1557
    %v2374 = vpack.c.b16 %v1566, %v1558
    %v2375 = vpack.c.b16 %v1567, %v1559
    %v2376 = vpack.c.b16 %v1568, %v1560
    %v2377 = vpack.c.b16 %v1569, %v1561
    %v2378 = vpack.c.b16 %v1570, %v1562
    %v2379 = vpack.c.b16 %v1571, %v1563
    %v2380 = vpack.c.b16 %v1580, %v1572
    %v2381 = vpack.c.b16 %v1581, %v1573
    %v2382 = vpack.c.b16 %v1582, %v1574
    %v2383 = vpack.c.b16 %v1583, %v1575
    %v2384 = vpack.c.b16 %v1584, %v1576
    %v2385 = vpack.c.b16 %v1585, %v1577
    %v2386 = vpack.c.b16 %v1586, %v1578
    %v2387 = vpack.c.b16 %v1587, %v1579
    %v2388 = vpack.c.b16 %v1596, %v1588
    %v2389 = vpack.c.b16 %v1597, %v1589
    %v2390 = vpack.c.b16 %v1598, %v1590
    %v2391 = vpack.c.b16 %v1599, %v1591
    %v2392 = vpack.c.b16 %v1600, %v1592
    %v2393 = vpack.c.b16 %v1601, %v1593
    %v2394 = vpack.c.b16 %v1602, %v1594
    %v2395 = vpack.c.b16 %v1603, %v1595
    %v2396 = vpack.c.b16 %v1612, %v1604
    %v2397 = vpack.c.b16 %v1613, %v1605
    %v2398 = vpack.c.b16 %v1614, %v1606
    %v2399 = vpack.c.b16 %v1615, %v1607
    %v2400 = vpack.c.b16 %v1616, %v1608
    %v2401 = vpack.c.b16 %v1617, %v1609
    %v2402 = vpack.c.b16 %v1618, %v1610
    %v2403 = vpack.c.b16 %v1619, %v1611
    %v2404 = vpack.c.b16 %v1628, %v1620
    %v2405 = vpack.c.b16 %v1629, %v1621
    %v2406 = vpack.c.b16 %v1630, %v1622
    %v2407 = vpack.c.b16 %v1631, %v1623
    %v2408 = vpack.c.b16 %v1632, %v1624
    %v2409 = vpack.c.b16 %v1633, %v1625
    %v2410 = vpack.c.b16 %v1634, %v1626
    %v2411 = vpack.c.b16 %v1635, %v1627
    %v2412 = vpack.c.b16 %v1644, %v1636
    %v2413 = vpack.c.b16 %v1645, %v1637
    %v2414 = vpack.c.b16 %v1646, %v1638
    %v2415 = vpack.c.b16 %v1647, %v1639
    %v2416 = vpack.c.b16 %v1648, %v1640
    %v2417 = vpack.c.b16 %v1649, %v1641
    %v2418 = vpack.c.b16 %v1650, %v1642
    %v2419 = vpack.c.b16 %v1651, %v1643
    %v2420 = vpack.c.b16 %v1660, %v1652
    %v2421 = vpack.c.b16 %v1661, %v1653
    %v2422 = vpack.c.b16 %v1662, %v1654
    %v2423 = vpack.c.b16 %v1663, %v1655
    %v2424 = vpack.c.b16 %v1664, %v1656
    %v2425 = vpack.c.b16 %v1665, %v1657
    %v2426 = vpack.c.b16 %v1666, %v1658
    %v2427 = vpack.c.b16 %v1667, %v1659
    %v2428 = vpack.c.b16 %v1676, %v1668
    %v2429 = vpack.c.b16 %v1677, %v1669
    %v2430 = vpack.c.b16 %v1678, %v1670
    %v2431 = vpack.c.b16 %v1679, %v1671
    %v2432 = vpack.c.b16 %v1680, %v1672
    %v2433 = vpack.c.b16 %v1681, %v1673
    %v2434 = vpack.c.b16 %v1682, %v1674
    %v2435 = vpack.c.b16 %v1683, %v1675
    %v2436 = vpack.c.b16 %v1692, %v1684
    %v2437 = vpack.c.b16 %v1693, %v1685
    %v2438 = vpack.c.b16 %v1694, %v1686
    %v2439 = vpack.c.b16 %v1695, %v1687
    %v2440 = vpack.c.b16 %v1696, %v1688
    %v2441 = vpack.c.b16 %v1697, %v1689
    %v2442 = vpack.c.b16 %v1698, %v1690
    %v2443 = vpack.c.b16 %v1699, %v1691
    %v2444 = vpack.c.b16 %v1708, %v1700
    %v2445 = vpack.c.b16 %v1709, %v1701
    %v2446 = vpack.c.b16 %v1710, %v1702
    %v2447 = vpack.c.b16 %v1711, %v1703
    %v2448 = vpack.c.b16 %v1712, %v1704
    %v2449 = vpack.c.b16 %v1713, %v1705
    %v2450 = vpack.c.b16 %v1714, %v1706
    %v2451 = vpack.c.b16 %v1715, %v1707
    %v2452 = vpack.c.b16 %v1724, %v1716
    %v2453 = vpack.c.b16 %v1725, %v1717
    %v2454 = vpack.c.b16 %v1726, %v1718
    %v2455 = vpack.c.b16 %v1727, %v1719
    %v2456 = vpack.c.b16 %v1728, %v1720
    %v2457 = vpack.c.b16 %v1729, %v1721
    %v2458 = vpack.c.b16 %v1730, %v1722
    %v2459 = vpack.c.b16 %v1731, %v1723
    %v2460 = vpack.c.b16 %v1740, %v1732
    %v2461 = vpack.c.b16 %v1741, %v1733
    %v2462 = vpack.c.b16 %v1742, %v1734
    %v2463 = vpack.c.b16 %v1743, %v1735
    %v2464 = vpack.c.b16 %v1744, %v1736
    %v2465 = vpack.c.b16 %v1745, %v1737
    %v2466 = vpack.c.b16 %v1746, %v1738
    %v2467 = vpack.c.b16 %v1747, %v1739
    %v2468 = vpack.c.b16 %v1756, %v1748
    %v2469 = vpack.c.b16 %v1757, %v1749
    %v2470 = vpack.c.b16 %v1758, %v1750
    %v2471 = vpack.c.b16 %v1759, %v1751
    %v2472 = vpack.c.b16 %v1760, %v1752
    %v2473 = vpack.c.b16 %v1761, %v1753
    %v2474 = vpack.c.b16 %v1762, %v1754
    %v2475 = vpack.c.b16 %v1763, %v1755
    %v2476 = vpack.c.b16 %v1772, %v1764
    %v2477 = vpack.c.b16 %v1773, %v1765
    %v2478 = vpack.c.b16 %v1774, %v1766
    %v2479 = vpack.c.b16 %v1775, %v1767
    %v2480 = vpack.c.b16 %v1776, %v1768
    %v2481 = vpack.c.b16 %v1777, %v1769
    %v2482 = vpack.c.b16 %v1778, %v1770
    %v2483 = vpack.c.b16 %v1779, %v1771
    %v2484 = vpack.c.b16 %v1788, %v1780
    %v2485 = vpack.c.b16 %v1789, %v1781
    %v2486 = vpack.c.b16 %v1790, %v1782
    %v2487 = vpack.c.b16 %v1791, %v1783
    %v2488 = vpack.c.b16 %v1792, %v1784
    %v2489 = vpack.c.b16 %v1793, %v1785
    %v2490 = vpack.c.b16 %v1794, %v1786
    %v2491 = vpack.c.b16 %v1795, %v1787
    %v2492 = vpack.c.b16 %v1804, %v1796
    %v2493 = vpack.c.b16 %v1805, %v1797
    %v2494 = vpack.c.b16 %v1806, %v1798
    %v2495 = vpack.c.b16 %v1807, %v1799
    %v2496 = vpack.c.b16 %v1808, %v1800
    %v2497 = vpack.c.b16 %v1809, %v1801
    %v2498 = vpack.c.b16 %v1810, %v1802
    %v2499 = vpack.c.b16 %v1811, %v1803
    %v2500 = vpack.c.b16 %v1820, %v1812
    %v2501 = vpack.c.b16 %v1821, %v1813
    %v2502 = vpack.c.b16 %v1822, %v1814
    %v2503 = vpack.c.b16 %v1823, %v1815
    %v2504 = vpack.c.b16 %v1824, %v1816
    %v2505 = vpack.c.b16 %v1825, %v1817
    %v2506 = vpack.c.b16 %v1826, %v1818
    %v2507 = vpack.c.b16 %v1827, %v1819
    %v2508 = vpack.c.b16 %v1836, %v1828
    %v2509 = vpack.c.b16 %v1837, %v1829
    %v2510 = vpack.c.b16 %v1838, %v1830
    %v2511 = vpack.c.b16 %v1839, %v1831
    %v2512 = vpack.c.b16 %v1840, %v1832
    %v2513 = vpack.c.b16 %v1841, %v1833
    %v2514 = vpack.c.b16 %v1842, %v1834
    %v2515 = vpack.c.b16 %v1843, %v1835
    %v2516 = vpack.c.b16 %v1852, %v1844
    %v2517 = vpack.c.b16 %v1853, %v1845
    %v2518 = vpack.c.b16 %v1854, %v1846
    %v2519 = vpack.c.b16 %v1855, %v1847
    %v2520 = vpack.c.b16 %v1856, %v1848
    %v2521 = vpack.c.b16 %v1857, %v1849
    %v2522 = vpack.c.b16 %v1858, %v1850
    %v2523 = vpack.c.b16 %v1859, %v1851
    %v2524 = vpack.c.b16 %v1868, %v1860
    %v2525 = vpack.c.b16 %v1869, %v1861
    %v2526 = vpack.c.b16 %v1870, %v1862
    %v2527 = vpack.c.b16 %v1871, %v1863
    %v2528 = vpack.c.b16 %v1872, %v1864
    %v2529 = vpack.c.b16 %v1873, %v1865
    %v2530 = vpack.c.b16 %v1874, %v1866
    %v2531 = vpack.c.b16 %v1875, %v1867
    %v2532 = vpack.c.b16 %v1884, %v1876
    %v2533 = vpack.c.b16 %v1885, %v1877
    %v2534 = vpack.c.b16 %v1886, %v1878
    %v2535 = vpack.c.b16 %v1887, %v1879
    %v2536 = vpack.c.b16 %v1888, %v1880
    %v2537 = vpack.c.b16 %v1889, %v1881
    %v2538 = vpack.c.b16 %v1890, %v1882
    %v2539 = vpack.c.b16 %v1891, %v1883
    %v2540 = vpack.c.b16 %v1900, %v1892
    %v2541 = vpack.c.b16 %v1901, %v1893
    %v2542 = vpack.c.b16 %v1902, %v1894
    %v2543 = vpack.c.b16 %v1903, %v1895
    %v2544 = vpack.c.b16 %v1904, %v1896
    %v2545 = vpack.c.b16 %v1905, %v1897
    %v2546 = vpack.c.b16 %v1906, %v1898
    %v2547 = vpack.c.b16 %v1907, %v1899
    %v2548 = vpack.c.b16 %v1916, %v1908
    %v2549 = vpack.c.b16 %v1917, %v1909
    %v2550 = vpack.c.b16 %v1918, %v1910
    %v2551 = vpack.c.b16 %v1919, %v1911
    %v2552 = vpack.c.b16 %v1920, %v1912
    %v2553 = vpack.c.b16 %v1921, %v1913
    %v2554 = vpack.c.b16 %v1922, %v1914
    %v2555 = vpack.c.b16 %v1923, %v1915
    %v2556 = vpack.c.b16 %v1932, %v1924
    %v2557 = vpack.c.b16 %v1933, %v1925
    %v2558 = vpack.c.b16 %v1934, %v1926
    %v2559 = vpack.c.b16 %v1935, %v1927
    %v2560 = vpack.c.b16 %v1936, %v1928
    %v2561 = vpack.c.b16 %v1937, %v1929
    %v2562 = vpack.c.b16 %v1938, %v1930
    %v2563 = vpack.c.b16 %v1939, %v1931
    %v2564 = vpack.c.b16 %v1948, %v1940
    %v2565 = vpack.c.b16 %v1949, %v1941
    %v2566 = vpack.c.b16 %v1950, %v1942
    %v2567 = vpack.c.b16 %v1951, %v1943
    %v2568 = vpack.c.b16 %v1952, %v1944
    %v2569 = vpack.c.b16 %v1953, %v1945
    %v2570 = vpack.c.b16 %v1954, %v1946
    %v2571 = vpack.c.b16 %v1955, %v1947
    %v2572 = vpack.c.b16 %v1964, %v1956
    %v2573 = vpack.c.b16 %v1965, %v1957
    %v2574 = vpack.c.b16 %v1966, %v1958
    %v2575 = vpack.c.b16 %v1967, %v1959
    %v2576 = vpack.c.b16 %v1968, %v1960
    %v2577 = vpack.c.b16 %v1969, %v1961
    %v2578 = vpack.c.b16 %v1970, %v1962
    %v2579 = vpack.c.b16 %v1971, %v1963
    %v2580 = vpack.c.b16 %v1980, %v1972
    %v2581 = vpack.c.b16 %v1981, %v1973
    %v2582 = vpack.c.b16 %v1982, %v1974
    %v2583 = vpack.c.b16 %v1983, %v1975
    %v2584 = vpack.c.b16 %v1984, %v1976
    %v2585 = vpack.c.b16 %v1985, %v1977
    %v2586 = vpack.c.b16 %v1986, %v1978
    %v2587 = vpack.c.b16 %v1987, %v1979
    %v2588 = vpack.c.b16 %v1996, %v1988
    %v2589 = vpack.c.b16 %v1997, %v1989
    %v2590 = vpack.c.b16 %v1998, %v1990
    %v2591 = vpack.c.b16 %v1999, %v1991
    %v2592 = vpack.c.b16 %v2000, %v1992
    %v2593 = vpack.c.b16 %v2001, %v1993
    %v2594 = vpack.c.b16 %v2002, %v1994
    %v2595 = vpack.c.b16 %v2003, %v1995
    %v2596 = vpack.c.b16 %v2012, %v2004
    %v2597 = vpack.c.b16 %v2013, %v2005
    %v2598 = vpack.c.b16 %v2014, %v2006
    %v2599 = vpack.c.b16 %v2015, %v2007
    %v2600 = vpack.c.b16 %v2016, %v2008
    %v2601 = vpack.c.b16 %v2017, %v2009
    %v2602 = vpack.c.b16 %v2018, %v2010
    %v2603 = vpack.c.b16 %v2019, %v2011
    %v2604 = vpack.c.b16 %v2028, %v2020
    %v2605 = vpack.c.b16 %v2029, %v2021
    %v2606 = vpack.c.b16 %v2030, %v2022
    %v2607 = vpack.c.b16 %v2031, %v2023
    %v2608 = vpack.c.b16 %v2032, %v2024
    %v2609 = vpack.c.b16 %v2033, %v2025
    %v2610 = vpack.c.b16 %v2034, %v2026
    %v2611 = vpack.c.b16 %v2035, %v2027
    %v2612 = vpack.c.b16 %v2044, %v2036
    %v2613 = vpack.c.b16 %v2045, %v2037
    %v2614 = vpack.c.b16 %v2046, %v2038
    %v2615 = vpack.c.b16 %v2047, %v2039
    %v2616 = vpack.c.b16 %v2048, %v2040
    %v2617 = vpack.c.b16 %v2049, %v2041
    %v2618 = vpack.c.b16 %v2050, %v2042
    %v2619 = vpack.c.b16 %v2051, %v2043
    %v2620 = vpack.c.b16 %v2060, %v2052
    %v2621 = vpack.c.b16 %v2061, %v2053
    %v2622 = vpack.c.b16 %v2062, %v2054
    %v2623 = vpack.c.b16 %v2063, %v2055
    %v2624 = vpack.c.b16 %v2064, %v2056
    %v2625 = vpack.c.b16 %v2065, %v2057
    %v2626 = vpack.c.b16 %v2066, %v2058
    %v2627 = vpack.c.b16 %v2067, %v2059
    %v2628 = vpack.c.b16 %v2076, %v2068
    %v2629 = vpack.c.b16 %v2077, %v2069
    %v2630 = vpack.c.b16 %v2078, %v2070
    %v2631 = vpack.c.b16 %v2079, %v2071
    %v2632 = vpack.c.b16 %v2080, %v2072
    %v2633 = vpack.c.b16 %v2081, %v2073
    %v2634 = vpack.c.b16 %v2082, %v2074
    %v2635 = vpack.c.b16 %v2083, %v2075
    %v2636 = vpack.c.b16 %v2092, %v2084
    %v2637 = vpack.c.b16 %v2093, %v2085
    %v2638 = vpack.c.b16 %v2094, %v2086
    %v2639 = vpack.c.b16 %v2095, %v2087
    %v2640 = vpack.c.b16 %v2096, %v2088
    %v2641 = vpack.c.b16 %v2097, %v2089
    %v2642 = vpack.c.b16 %v2098, %v2090
    %v2643 = vpack.c.b16 %v2099, %v2091
    %v2644 = vpack.c.b16 %v2108, %v2100
    %v2645 = vpack.c.b16 %v2109, %v2101
    %v2646 = vpack.c.b16 %v2110, %v2102
    %v2647 = vpack.c.b16 %v2111, %v2103
    %v2648 = vpack.c.b16 %v2112, %v2104
    %v2649 = vpack.c.b16 %v2113, %v2105
    %v2650 = vpack.c.b16 %v2114, %v2106
    %v2651 = vpack.c.b16 %v2115, %v2107
    %v2652 = vpack.c.b16 %v2124, %v2116
    %v2653 = vpack.c.b16 %v2125, %v2117
    %v2654 = vpack.c.b16 %v2126, %v2118
    %v2655 = vpack.c.b16 %v2127, %v2119
    %v2656 = vpack.c.b16 %v2128, %v2120
    %v2657 = vpack.c.b16 %v2129, %v2121
    %v2658 = vpack.c.b16 %v2130, %v2122
    %v2659 = vpack.c.b16 %v2131, %v2123
    %v2660 = vpack.c.b16 %v2140, %v2132
    %v2661 = vpack.c.b16 %v2141, %v2133
    %v2662 = vpack.c.b16 %v2142, %v2134
    %v2663 = vpack.c.b16 %v2143, %v2135
    %v2664 = vpack.c.b16 %v2144, %v2136
    %v2665 = vpack.c.b16 %v2145, %v2137
    %v2666 = vpack.c.b16 %v2146, %v2138
    %v2667 = vpack.c.b16 %v2147, %v2139
    %v2668 = vpack.c.b16 %v2156, %v2148
    %v2669 = vpack.c.b16 %v2157, %v2149
    %v2670 = vpack.c.b16 %v2158, %v2150
    %v2671 = vpack.c.b16 %v2159, %v2151
    %v2672 = vpack.c.b16 %v2160, %v2152
    %v2673 = vpack.c.b16 %v2161, %v2153
    %v2674 = vpack.c.b16 %v2162, %v2154
    %v2675 = vpack.c.b16 %v2163, %v2155
    %3188 = vmatpush.bf16.msra.mxu0 %v2220
    %3189 = vmatpush.bf16.msra.mxu0 %v2212
    %3190 = vmatpush.bf16.msra.mxu0 %v2204
    %3191 = vmatpush.bf16.msra.mxu0 %v2196
    %3192 = vmatpush.bf16.msra.mxu0 %v2188
    %3193 = vmatpush.bf16.msra.mxu0 %v2180
    %3194 = vmatpush.bf16.msra.mxu0 %v2172
    %3195 = vmatpush.bf16.msra.mxu0 %v2164
    %3196 = vmatmul.bf16.gmra.mxu0 %v612
    %v3197 = vpop.f32.mrf.mxu0
    %v3198 = vadd.f32 %v594, %v3197
    %v3199 = vpop.f32.mrf.mxu0
    %3200 = vdwg.mxu0
    %3201 = vmatpush.bf16.msra.mxu0 %v2284
    %3202 = vmatpush.bf16.msra.mxu0 %v2276
    %3203 = vmatpush.bf16.msra.mxu0 %v2268
    %3204 = vmatpush.bf16.msra.mxu0 %v2260
    %3205 = vmatpush.bf16.msra.mxu0 %v2252
    %3206 = vmatpush.bf16.msra.mxu0 %v2244
    %3207 = vmatpush.bf16.msra.mxu0 %v2236
    %3208 = vmatpush.bf16.msra.mxu0 %v2228
    %3209 = vmatmul.bf16.gmra.mxu0 %v613
    %v3210 = vpop.f32.mrf.mxu0
    %v3211 = vadd.f32 %v3198, %v3210
    %v3212 = vpop.f32.mrf.mxu0
    %3213 = vdwg.mxu0
    %3214 = vmatpush.bf16.msra.mxu0 %v2348
    %3215 = vmatpush.bf16.msra.mxu0 %v2340
    %3216 = vmatpush.bf16.msra.mxu0 %v2332
    %3217 = vmatpush.bf16.msra.mxu0 %v2324
    %3218 = vmatpush.bf16.msra.mxu0 %v2316
    %3219 = vmatpush.bf16.msra.mxu0 %v2308
    %3220 = vmatpush.bf16.msra.mxu0 %v2300
    %3221 = vmatpush.bf16.msra.mxu0 %v2292
    %3222 = vmatmul.bf16.gmra.mxu0 %v614
    %v3223 = vpop.f32.mrf.mxu0
    %v3224 = vadd.f32 %v3211, %v3223
    %v3225 = vpop.f32.mrf.mxu0
    %3226 = vdwg.mxu0
    %3227 = vmatpush.bf16.msra.mxu0 %v2412
    %3228 = vmatpush.bf16.msra.mxu0 %v2404
    %3229 = vmatpush.bf16.msra.mxu0 %v2396
    %3230 = vmatpush.bf16.msra.mxu0 %v2388
    %3231 = vmatpush.bf16.msra.mxu0 %v2380
    %3232 = vmatpush.bf16.msra.mxu0 %v2372
    %3233 = vmatpush.bf16.msra.mxu0 %v2364
    %3234 = vmatpush.bf16.msra.mxu0 %v2356
    %3235 = vmatmul.bf16.gmra.mxu0 %v615
    %v3236 = vpop.f32.mrf.mxu0
    %v3237 = vadd.f32 %v3224, %v3236
    %v3238 = vpop.f32.mrf.mxu0
    %3239 = vdwg.mxu0
    %3240 = vmatpush.bf16.msra.mxu0 %v2476
    %3241 = vmatpush.bf16.msra.mxu0 %v2468
    %3242 = vmatpush.bf16.msra.mxu0 %v2460
    %3243 = vmatpush.bf16.msra.mxu0 %v2452
    %3244 = vmatpush.bf16.msra.mxu0 %v2444
    %3245 = vmatpush.bf16.msra.mxu0 %v2436
    %3246 = vmatpush.bf16.msra.mxu0 %v2428
    %3247 = vmatpush.bf16.msra.mxu0 %v2420
    %3248 = vmatmul.bf16.gmra.mxu0 %v616
    %v3249 = vpop.f32.mrf.mxu0
    %v3250 = vadd.f32 %v3237, %v3249
    %v3251 = vpop.f32.mrf.mxu0
    %3252 = vdwg.mxu0
    %3253 = vmatpush.bf16.msra.mxu0 %v2540
    %3254 = vmatpush.bf16.msra.mxu0 %v2532
    %3255 = vmatpush.bf16.msra.mxu0 %v2524
    %3256 = vmatpush.bf16.msra.mxu0 %v2516
    %3257 = vmatpush.bf16.msra.mxu0 %v2508
    %3258 = vmatpush.bf16.msra.mxu0 %v2500
    %3259 = vmatpush.bf16.msra.mxu0 %v2492
    %3260 = vmatpush.bf16.msra.mxu0 %v2484
    %3261 = vmatmul.bf16.gmra.mxu0 %v617
    %v3262 = vpop.f32.mrf.mxu0
    %v3263 = vadd.f32 %v3250, %v3262
    %v3264 = vpop.f32.mrf.mxu0
    %3265 = vdwg.mxu0
    %3266 = vmatpush.bf16.msra.mxu0 %v2604
    %3267 = vmatpush.bf16.msra.mxu0 %v2596
    %3268 = vmatpush.bf16.msra.mxu0 %v2588
    %3269 = vmatpush.bf16.msra.mxu0 %v2580
    %3270 = vmatpush.bf16.msra.mxu0 %v2572
    %3271 = vmatpush.bf16.msra.mxu0 %v2564
    %3272 = vmatpush.bf16.msra.mxu0 %v2556
    %3273 = vmatpush.bf16.msra.mxu0 %v2548
    %3274 = vmatmul.bf16.gmra.mxu0 %v618
    %v3275 = vpop.f32.mrf.mxu0
    %v3276 = vadd.f32 %v3263, %v3275
    %v3277 = vpop.f32.mrf.mxu0
    %3278 = vdwg.mxu0
    %3279 = vmatpush.bf16.msra.mxu0 %v2668
    %3280 = vmatpush.bf16.msra.mxu0 %v2660
    %3281 = vmatpush.bf16.msra.mxu0 %v2652
    %3282 = vmatpush.bf16.msra.mxu0 %v2644
    %3283 = vmatpush.bf16.msra.mxu0 %v2636
    %3284 = vmatpush.bf16.msra.mxu0 %v2628
    %3285 = vmatpush.bf16.msra.mxu0 %v2620
    %3286 = vmatpush.bf16.msra.mxu0 %v2612
    %3287 = vmatmul.bf16.gmra.mxu0 %v619
    %v3288 = vpop.f32.mrf.mxu0
    %v3289 = vadd.f32 %v3276, %v3288
    %v3290 = vpop.f32.mrf.mxu0
    %3291 = vdwg.mxu0
    %3292 = vmatpush.bf16.msra.mxu0 %v2221
    %3293 = vmatpush.bf16.msra.mxu0 %v2213
    %3294 = vmatpush.bf16.msra.mxu0 %v2205
    %3295 = vmatpush.bf16.msra.mxu0 %v2197
    %3296 = vmatpush.bf16.msra.mxu0 %v2189
    %3297 = vmatpush.bf16.msra.mxu0 %v2181
    %3298 = vmatpush.bf16.msra.mxu0 %v2173
    %3299 = vmatpush.bf16.msra.mxu0 %v2165
    %3300 = vmatmul.bf16.gmra.mxu0 %v612
    %v3301 = vpop.f32.mrf.mxu0
    %v3302 = vadd.f32 %v595, %v3301
    %v3303 = vpop.f32.mrf.mxu0
    %3304 = vdwg.mxu0
    %3305 = vmatpush.bf16.msra.mxu0 %v2285
    %3306 = vmatpush.bf16.msra.mxu0 %v2277
    %3307 = vmatpush.bf16.msra.mxu0 %v2269
    %3308 = vmatpush.bf16.msra.mxu0 %v2261
    %3309 = vmatpush.bf16.msra.mxu0 %v2253
    %3310 = vmatpush.bf16.msra.mxu0 %v2245
    %3311 = vmatpush.bf16.msra.mxu0 %v2237
    %3312 = vmatpush.bf16.msra.mxu0 %v2229
    %3313 = vmatmul.bf16.gmra.mxu0 %v613
    %v3314 = vpop.f32.mrf.mxu0
    %v3315 = vadd.f32 %v3302, %v3314
    %v3316 = vpop.f32.mrf.mxu0
    %3317 = vdwg.mxu0
    %3318 = vmatpush.bf16.msra.mxu0 %v2349
    %3319 = vmatpush.bf16.msra.mxu0 %v2341
    %3320 = vmatpush.bf16.msra.mxu0 %v2333
    %3321 = vmatpush.bf16.msra.mxu0 %v2325
    %3322 = vmatpush.bf16.msra.mxu0 %v2317
    %3323 = vmatpush.bf16.msra.mxu0 %v2309
    %3324 = vmatpush.bf16.msra.mxu0 %v2301
    %3325 = vmatpush.bf16.msra.mxu0 %v2293
    %3326 = vmatmul.bf16.gmra.mxu0 %v614
    %v3327 = vpop.f32.mrf.mxu0
    %v3328 = vadd.f32 %v3315, %v3327
    %v3329 = vpop.f32.mrf.mxu0
    %3330 = vdwg.mxu0
    %3331 = vmatpush.bf16.msra.mxu0 %v2413
    %3332 = vmatpush.bf16.msra.mxu0 %v2405
    %3333 = vmatpush.bf16.msra.mxu0 %v2397
    %3334 = vmatpush.bf16.msra.mxu0 %v2389
    %3335 = vmatpush.bf16.msra.mxu0 %v2381
    %3336 = vmatpush.bf16.msra.mxu0 %v2373
    %3337 = vmatpush.bf16.msra.mxu0 %v2365
    %3338 = vmatpush.bf16.msra.mxu0 %v2357
    %3339 = vmatmul.bf16.gmra.mxu0 %v615
    %v3340 = vpop.f32.mrf.mxu0
    %v3341 = vadd.f32 %v3328, %v3340
    %v3342 = vpop.f32.mrf.mxu0
    %3343 = vdwg.mxu0
    %3344 = vmatpush.bf16.msra.mxu0 %v2477
    %3345 = vmatpush.bf16.msra.mxu0 %v2469
    %3346 = vmatpush.bf16.msra.mxu0 %v2461
    %3347 = vmatpush.bf16.msra.mxu0 %v2453
    %3348 = vmatpush.bf16.msra.mxu0 %v2445
    %3349 = vmatpush.bf16.msra.mxu0 %v2437
    %3350 = vmatpush.bf16.msra.mxu0 %v2429
    %3351 = vmatpush.bf16.msra.mxu0 %v2421
    %3352 = vmatmul.bf16.gmra.mxu0 %v616
    %v3353 = vpop.f32.mrf.mxu0
    %v3354 = vadd.f32 %v3341, %v3353
    %v3355 = vpop.f32.mrf.mxu0
    %3356 = vdwg.mxu0
    %3357 = vmatpush.bf16.msra.mxu0 %v2541
    %3358 = vmatpush.bf16.msra.mxu0 %v2533
    %3359 = vmatpush.bf16.msra.mxu0 %v2525
    %3360 = vmatpush.bf16.msra.mxu0 %v2517
    %3361 = vmatpush.bf16.msra.mxu0 %v2509
    %3362 = vmatpush.bf16.msra.mxu0 %v2501
    %3363 = vmatpush.bf16.msra.mxu0 %v2493
    %3364 = vmatpush.bf16.msra.mxu0 %v2485
    %3365 = vmatmul.bf16.gmra.mxu0 %v617
    %v3366 = vpop.f32.mrf.mxu0
    %v3367 = vadd.f32 %v3354, %v3366
    %v3368 = vpop.f32.mrf.mxu0
    %3369 = vdwg.mxu0
    %3370 = vmatpush.bf16.msra.mxu0 %v2605
    %3371 = vmatpush.bf16.msra.mxu0 %v2597
    %3372 = vmatpush.bf16.msra.mxu0 %v2589
    %3373 = vmatpush.bf16.msra.mxu0 %v2581
    %3374 = vmatpush.bf16.msra.mxu0 %v2573
    %3375 = vmatpush.bf16.msra.mxu0 %v2565
    %3376 = vmatpush.bf16.msra.mxu0 %v2557
    %3377 = vmatpush.bf16.msra.mxu0 %v2549
    %3378 = vmatmul.bf16.gmra.mxu0 %v618
    %v3379 = vpop.f32.mrf.mxu0
    %v3380 = vadd.f32 %v3367, %v3379
    %v3381 = vpop.f32.mrf.mxu0
    %3382 = vdwg.mxu0
    %3383 = vmatpush.bf16.msra.mxu0 %v2669
    %3384 = vmatpush.bf16.msra.mxu0 %v2661
    %3385 = vmatpush.bf16.msra.mxu0 %v2653
    %3386 = vmatpush.bf16.msra.mxu0 %v2645
    %3387 = vmatpush.bf16.msra.mxu0 %v2637
    %3388 = vmatpush.bf16.msra.mxu0 %v2629
    %3389 = vmatpush.bf16.msra.mxu0 %v2621
    %3390 = vmatpush.bf16.msra.mxu0 %v2613
    %3391 = vmatmul.bf16.gmra.mxu0 %v619
    %v3392 = vpop.f32.mrf.mxu0
    %v3393 = vadd.f32 %v3380, %v3392
    %v3394 = vpop.f32.mrf.mxu0
    %3395 = vdwg.mxu0
    %3396 = vmatpush.bf16.msra.mxu0 %v2222
    %3397 = vmatpush.bf16.msra.mxu0 %v2214
    %3398 = vmatpush.bf16.msra.mxu0 %v2206
    %3399 = vmatpush.bf16.msra.mxu0 %v2198
    %3400 = vmatpush.bf16.msra.mxu0 %v2190
    %3401 = vmatpush.bf16.msra.mxu0 %v2182
    %3402 = vmatpush.bf16.msra.mxu0 %v2174
    %3403 = vmatpush.bf16.msra.mxu0 %v2166
    %3404 = vmatmul.bf16.gmra.mxu0 %v612
    %v3405 = vpop.f32.mrf.mxu0
    %v3406 = vadd.f32 %v596, %v3405
    %v3407 = vpop.f32.mrf.mxu0
    %3408 = vdwg.mxu0
    %3409 = vmatpush.bf16.msra.mxu0 %v2286
    %3410 = vmatpush.bf16.msra.mxu0 %v2278
    %3411 = vmatpush.bf16.msra.mxu0 %v2270
    %3412 = vmatpush.bf16.msra.mxu0 %v2262
    %3413 = vmatpush.bf16.msra.mxu0 %v2254
    %3414 = vmatpush.bf16.msra.mxu0 %v2246
    %3415 = vmatpush.bf16.msra.mxu0 %v2238
    %3416 = vmatpush.bf16.msra.mxu0 %v2230
    %3417 = vmatmul.bf16.gmra.mxu0 %v613
    %v3418 = vpop.f32.mrf.mxu0
    %v3419 = vadd.f32 %v3406, %v3418
    %v3420 = vpop.f32.mrf.mxu0
    %3421 = vdwg.mxu0
    %3422 = vmatpush.bf16.msra.mxu0 %v2350
    %3423 = vmatpush.bf16.msra.mxu0 %v2342
    %3424 = vmatpush.bf16.msra.mxu0 %v2334
    %3425 = vmatpush.bf16.msra.mxu0 %v2326
    %3426 = vmatpush.bf16.msra.mxu0 %v2318
    %3427 = vmatpush.bf16.msra.mxu0 %v2310
    %3428 = vmatpush.bf16.msra.mxu0 %v2302
    %3429 = vmatpush.bf16.msra.mxu0 %v2294
    %3430 = vmatmul.bf16.gmra.mxu0 %v614
    %v3431 = vpop.f32.mrf.mxu0
    %v3432 = vadd.f32 %v3419, %v3431
    %v3433 = vpop.f32.mrf.mxu0
    %3434 = vdwg.mxu0
    %3435 = vmatpush.bf16.msra.mxu0 %v2414
    %3436 = vmatpush.bf16.msra.mxu0 %v2406
    %3437 = vmatpush.bf16.msra.mxu0 %v2398
    %3438 = vmatpush.bf16.msra.mxu0 %v2390
    %3439 = vmatpush.bf16.msra.mxu0 %v2382
    %3440 = vmatpush.bf16.msra.mxu0 %v2374
    %3441 = vmatpush.bf16.msra.mxu0 %v2366
    %3442 = vmatpush.bf16.msra.mxu0 %v2358
    %3443 = vmatmul.bf16.gmra.mxu0 %v615
    %v3444 = vpop.f32.mrf.mxu0
    %v3445 = vadd.f32 %v3432, %v3444
    %v3446 = vpop.f32.mrf.mxu0
    %3447 = vdwg.mxu0
    %3448 = vmatpush.bf16.msra.mxu0 %v2478
    %3449 = vmatpush.bf16.msra.mxu0 %v2470
    %3450 = vmatpush.bf16.msra.mxu0 %v2462
    %3451 = vmatpush.bf16.msra.mxu0 %v2454
    %3452 = vmatpush.bf16.msra.mxu0 %v2446
    %3453 = vmatpush.bf16.msra.mxu0 %v2438
    %3454 = vmatpush.bf16.msra.mxu0 %v2430
    %3455 = vmatpush.bf16.msra.mxu0 %v2422
    %3456 = vmatmul.bf16.gmra.mxu0 %v616
    %v3457 = vpop.f32.mrf.mxu0
    %v3458 = vadd.f32 %v3445, %v3457
    %v3459 = vpop.f32.mrf.mxu0
    %3460 = vdwg.mxu0
    %3461 = vmatpush.bf16.msra.mxu0 %v2542
    %3462 = vmatpush.bf16.msra.mxu0 %v2534
    %3463 = vmatpush.bf16.msra.mxu0 %v2526
    %3464 = vmatpush.bf16.msra.mxu0 %v2518
    %3465 = vmatpush.bf16.msra.mxu0 %v2510
    %3466 = vmatpush.bf16.msra.mxu0 %v2502
    %3467 = vmatpush.bf16.msra.mxu0 %v2494
    %3468 = vmatpush.bf16.msra.mxu0 %v2486
    %3469 = vmatmul.bf16.gmra.mxu0 %v617
    %v3470 = vpop.f32.mrf.mxu0
    %v3471 = vadd.f32 %v3458, %v3470
    %v3472 = vpop.f32.mrf.mxu0
    %3473 = vdwg.mxu0
    %3474 = vmatpush.bf16.msra.mxu0 %v2606
    %3475 = vmatpush.bf16.msra.mxu0 %v2598
    %3476 = vmatpush.bf16.msra.mxu0 %v2590
    %3477 = vmatpush.bf16.msra.mxu0 %v2582
    %3478 = vmatpush.bf16.msra.mxu0 %v2574
    %3479 = vmatpush.bf16.msra.mxu0 %v2566
    %3480 = vmatpush.bf16.msra.mxu0 %v2558
    %3481 = vmatpush.bf16.msra.mxu0 %v2550
    %3482 = vmatmul.bf16.gmra.mxu0 %v618
    %v3483 = vpop.f32.mrf.mxu0
    %v3484 = vadd.f32 %v3471, %v3483
    %v3485 = vpop.f32.mrf.mxu0
    %3486 = vdwg.mxu0
    %3487 = vmatpush.bf16.msra.mxu0 %v2670
    %3488 = vmatpush.bf16.msra.mxu0 %v2662
    %3489 = vmatpush.bf16.msra.mxu0 %v2654
    %3490 = vmatpush.bf16.msra.mxu0 %v2646
    %3491 = vmatpush.bf16.msra.mxu0 %v2638
    %3492 = vmatpush.bf16.msra.mxu0 %v2630
    %3493 = vmatpush.bf16.msra.mxu0 %v2622
    %3494 = vmatpush.bf16.msra.mxu0 %v2614
    %3495 = vmatmul.bf16.gmra.mxu0 %v619
    %v3496 = vpop.f32.mrf.mxu0
    %v3497 = vadd.f32 %v3484, %v3496
    %v3498 = vpop.f32.mrf.mxu0
    %3499 = vdwg.mxu0
    %3500 = vmatpush.bf16.msra.mxu0 %v2223
    %3501 = vmatpush.bf16.msra.mxu0 %v2215
    %3502 = vmatpush.bf16.msra.mxu0 %v2207
    %3503 = vmatpush.bf16.msra.mxu0 %v2199
    %3504 = vmatpush.bf16.msra.mxu0 %v2191
    %3505 = vmatpush.bf16.msra.mxu0 %v2183
    %3506 = vmatpush.bf16.msra.mxu0 %v2175
    %3507 = vmatpush.bf16.msra.mxu0 %v2167
    %3508 = vmatmul.bf16.gmra.mxu0 %v612
    %v3509 = vpop.f32.mrf.mxu0
    %v3510 = vadd.f32 %v597, %v3509
    %v3511 = vpop.f32.mrf.mxu0
    %3512 = vdwg.mxu0
    %3513 = vmatpush.bf16.msra.mxu0 %v2287
    %3514 = vmatpush.bf16.msra.mxu0 %v2279
    %3515 = vmatpush.bf16.msra.mxu0 %v2271
    %3516 = vmatpush.bf16.msra.mxu0 %v2263
    %3517 = vmatpush.bf16.msra.mxu0 %v2255
    %3518 = vmatpush.bf16.msra.mxu0 %v2247
    %3519 = vmatpush.bf16.msra.mxu0 %v2239
    %3520 = vmatpush.bf16.msra.mxu0 %v2231
    %3521 = vmatmul.bf16.gmra.mxu0 %v613
    %v3522 = vpop.f32.mrf.mxu0
    %v3523 = vadd.f32 %v3510, %v3522
    %v3524 = vpop.f32.mrf.mxu0
    %3525 = vdwg.mxu0
    %3526 = vmatpush.bf16.msra.mxu0 %v2351
    %3527 = vmatpush.bf16.msra.mxu0 %v2343
    %3528 = vmatpush.bf16.msra.mxu0 %v2335
    %3529 = vmatpush.bf16.msra.mxu0 %v2327
    %3530 = vmatpush.bf16.msra.mxu0 %v2319
    %3531 = vmatpush.bf16.msra.mxu0 %v2311
    %3532 = vmatpush.bf16.msra.mxu0 %v2303
    %3533 = vmatpush.bf16.msra.mxu0 %v2295
    %3534 = vmatmul.bf16.gmra.mxu0 %v614
    %v3535 = vpop.f32.mrf.mxu0
    %v3536 = vadd.f32 %v3523, %v3535
    %v3537 = vpop.f32.mrf.mxu0
    %3538 = vdwg.mxu0
    %3539 = vmatpush.bf16.msra.mxu0 %v2415
    %3540 = vmatpush.bf16.msra.mxu0 %v2407
    %3541 = vmatpush.bf16.msra.mxu0 %v2399
    %3542 = vmatpush.bf16.msra.mxu0 %v2391
    %3543 = vmatpush.bf16.msra.mxu0 %v2383
    %3544 = vmatpush.bf16.msra.mxu0 %v2375
    %3545 = vmatpush.bf16.msra.mxu0 %v2367
    %3546 = vmatpush.bf16.msra.mxu0 %v2359
    %3547 = vmatmul.bf16.gmra.mxu0 %v615
    %v3548 = vpop.f32.mrf.mxu0
    %v3549 = vadd.f32 %v3536, %v3548
    %v3550 = vpop.f32.mrf.mxu0
    %3551 = vdwg.mxu0
    %3552 = vmatpush.bf16.msra.mxu0 %v2479
    %3553 = vmatpush.bf16.msra.mxu0 %v2471
    %3554 = vmatpush.bf16.msra.mxu0 %v2463
    %3555 = vmatpush.bf16.msra.mxu0 %v2455
    %3556 = vmatpush.bf16.msra.mxu0 %v2447
    %3557 = vmatpush.bf16.msra.mxu0 %v2439
    %3558 = vmatpush.bf16.msra.mxu0 %v2431
    %3559 = vmatpush.bf16.msra.mxu0 %v2423
    %3560 = vmatmul.bf16.gmra.mxu0 %v616
    %v3561 = vpop.f32.mrf.mxu0
    %v3562 = vadd.f32 %v3549, %v3561
    %v3563 = vpop.f32.mrf.mxu0
    %3564 = vdwg.mxu0
    %3565 = vmatpush.bf16.msra.mxu0 %v2543
    %3566 = vmatpush.bf16.msra.mxu0 %v2535
    %3567 = vmatpush.bf16.msra.mxu0 %v2527
    %3568 = vmatpush.bf16.msra.mxu0 %v2519
    %3569 = vmatpush.bf16.msra.mxu0 %v2511
    %3570 = vmatpush.bf16.msra.mxu0 %v2503
    %3571 = vmatpush.bf16.msra.mxu0 %v2495
    %3572 = vmatpush.bf16.msra.mxu0 %v2487
    %3573 = vmatmul.bf16.gmra.mxu0 %v617
    %v3574 = vpop.f32.mrf.mxu0
    %v3575 = vadd.f32 %v3562, %v3574
    %v3576 = vpop.f32.mrf.mxu0
    %3577 = vdwg.mxu0
    %3578 = vmatpush.bf16.msra.mxu0 %v2607
    %3579 = vmatpush.bf16.msra.mxu0 %v2599
    %3580 = vmatpush.bf16.msra.mxu0 %v2591
    %3581 = vmatpush.bf16.msra.mxu0 %v2583
    %3582 = vmatpush.bf16.msra.mxu0 %v2575
    %3583 = vmatpush.bf16.msra.mxu0 %v2567
    %3584 = vmatpush.bf16.msra.mxu0 %v2559
    %3585 = vmatpush.bf16.msra.mxu0 %v2551
    %3586 = vmatmul.bf16.gmra.mxu0 %v618
    %v3587 = vpop.f32.mrf.mxu0
    %v3588 = vadd.f32 %v3575, %v3587
    %v3589 = vpop.f32.mrf.mxu0
    %3590 = vdwg.mxu0
    %3591 = vmatpush.bf16.msra.mxu0 %v2671
    %3592 = vmatpush.bf16.msra.mxu0 %v2663
    %3593 = vmatpush.bf16.msra.mxu0 %v2655
    %3594 = vmatpush.bf16.msra.mxu0 %v2647
    %3595 = vmatpush.bf16.msra.mxu0 %v2639
    %3596 = vmatpush.bf16.msra.mxu0 %v2631
    %3597 = vmatpush.bf16.msra.mxu0 %v2623
    %3598 = vmatpush.bf16.msra.mxu0 %v2615
    %3599 = vmatmul.bf16.gmra.mxu0 %v619
    %v3600 = vpop.f32.mrf.mxu0
    %v3601 = vadd.f32 %v3588, %v3600
    %v3602 = vpop.f32.mrf.mxu0
    %3603 = vdwg.mxu0
    %3604 = vmatpush.bf16.msra.mxu0 %v2224
    %3605 = vmatpush.bf16.msra.mxu0 %v2216
    %3606 = vmatpush.bf16.msra.mxu0 %v2208
    %3607 = vmatpush.bf16.msra.mxu0 %v2200
    %3608 = vmatpush.bf16.msra.mxu0 %v2192
    %3609 = vmatpush.bf16.msra.mxu0 %v2184
    %3610 = vmatpush.bf16.msra.mxu0 %v2176
    %3611 = vmatpush.bf16.msra.mxu0 %v2168
    %3612 = vmatmul.bf16.gmra.mxu0 %v612
    %v3613 = vpop.f32.mrf.mxu0
    %v3614 = vadd.f32 %v598, %v3613
    %v3615 = vpop.f32.mrf.mxu0
    %3616 = vdwg.mxu0
    %3617 = vmatpush.bf16.msra.mxu0 %v2288
    %3618 = vmatpush.bf16.msra.mxu0 %v2280
    %3619 = vmatpush.bf16.msra.mxu0 %v2272
    %3620 = vmatpush.bf16.msra.mxu0 %v2264
    %3621 = vmatpush.bf16.msra.mxu0 %v2256
    %3622 = vmatpush.bf16.msra.mxu0 %v2248
    %3623 = vmatpush.bf16.msra.mxu0 %v2240
    %3624 = vmatpush.bf16.msra.mxu0 %v2232
    %3625 = vmatmul.bf16.gmra.mxu0 %v613
    %v3626 = vpop.f32.mrf.mxu0
    %v3627 = vadd.f32 %v3614, %v3626
    %v3628 = vpop.f32.mrf.mxu0
    %3629 = vdwg.mxu0
    %3630 = vmatpush.bf16.msra.mxu0 %v2352
    %3631 = vmatpush.bf16.msra.mxu0 %v2344
    %3632 = vmatpush.bf16.msra.mxu0 %v2336
    %3633 = vmatpush.bf16.msra.mxu0 %v2328
    %3634 = vmatpush.bf16.msra.mxu0 %v2320
    %3635 = vmatpush.bf16.msra.mxu0 %v2312
    %3636 = vmatpush.bf16.msra.mxu0 %v2304
    %3637 = vmatpush.bf16.msra.mxu0 %v2296
    %3638 = vmatmul.bf16.gmra.mxu0 %v614
    %v3639 = vpop.f32.mrf.mxu0
    %v3640 = vadd.f32 %v3627, %v3639
    %v3641 = vpop.f32.mrf.mxu0
    %3642 = vdwg.mxu0
    %3643 = vmatpush.bf16.msra.mxu0 %v2416
    %3644 = vmatpush.bf16.msra.mxu0 %v2408
    %3645 = vmatpush.bf16.msra.mxu0 %v2400
    %3646 = vmatpush.bf16.msra.mxu0 %v2392
    %3647 = vmatpush.bf16.msra.mxu0 %v2384
    %3648 = vmatpush.bf16.msra.mxu0 %v2376
    %3649 = vmatpush.bf16.msra.mxu0 %v2368
    %3650 = vmatpush.bf16.msra.mxu0 %v2360
    %3651 = vmatmul.bf16.gmra.mxu0 %v615
    %v3652 = vpop.f32.mrf.mxu0
    %v3653 = vadd.f32 %v3640, %v3652
    %v3654 = vpop.f32.mrf.mxu0
    %3655 = vdwg.mxu0
    %3656 = vmatpush.bf16.msra.mxu0 %v2480
    %3657 = vmatpush.bf16.msra.mxu0 %v2472
    %3658 = vmatpush.bf16.msra.mxu0 %v2464
    %3659 = vmatpush.bf16.msra.mxu0 %v2456
    %3660 = vmatpush.bf16.msra.mxu0 %v2448
    %3661 = vmatpush.bf16.msra.mxu0 %v2440
    %3662 = vmatpush.bf16.msra.mxu0 %v2432
    %3663 = vmatpush.bf16.msra.mxu0 %v2424
    %3664 = vmatmul.bf16.gmra.mxu0 %v616
    %v3665 = vpop.f32.mrf.mxu0
    %v3666 = vadd.f32 %v3653, %v3665
    %v3667 = vpop.f32.mrf.mxu0
    %3668 = vdwg.mxu0
    %3669 = vmatpush.bf16.msra.mxu0 %v2544
    %3670 = vmatpush.bf16.msra.mxu0 %v2536
    %3671 = vmatpush.bf16.msra.mxu0 %v2528
    %3672 = vmatpush.bf16.msra.mxu0 %v2520
    %3673 = vmatpush.bf16.msra.mxu0 %v2512
    %3674 = vmatpush.bf16.msra.mxu0 %v2504
    %3675 = vmatpush.bf16.msra.mxu0 %v2496
    %3676 = vmatpush.bf16.msra.mxu0 %v2488
    %3677 = vmatmul.bf16.gmra.mxu0 %v617
    %v3678 = vpop.f32.mrf.mxu0
    %v3679 = vadd.f32 %v3666, %v3678
    %v3680 = vpop.f32.mrf.mxu0
    %3681 = vdwg.mxu0
    %3682 = vmatpush.bf16.msra.mxu0 %v2608
    %3683 = vmatpush.bf16.msra.mxu0 %v2600
    %3684 = vmatpush.bf16.msra.mxu0 %v2592
    %3685 = vmatpush.bf16.msra.mxu0 %v2584
    %3686 = vmatpush.bf16.msra.mxu0 %v2576
    %3687 = vmatpush.bf16.msra.mxu0 %v2568
    %3688 = vmatpush.bf16.msra.mxu0 %v2560
    %3689 = vmatpush.bf16.msra.mxu0 %v2552
    %3690 = vmatmul.bf16.gmra.mxu0 %v618
    %v3691 = vpop.f32.mrf.mxu0
    %v3692 = vadd.f32 %v3679, %v3691
    %v3693 = vpop.f32.mrf.mxu0
    %3694 = vdwg.mxu0
    %3695 = vmatpush.bf16.msra.mxu0 %v2672
    %3696 = vmatpush.bf16.msra.mxu0 %v2664
    %3697 = vmatpush.bf16.msra.mxu0 %v2656
    %3698 = vmatpush.bf16.msra.mxu0 %v2648
    %3699 = vmatpush.bf16.msra.mxu0 %v2640
    %3700 = vmatpush.bf16.msra.mxu0 %v2632
    %3701 = vmatpush.bf16.msra.mxu0 %v2624
    %3702 = vmatpush.bf16.msra.mxu0 %v2616
    %3703 = vmatmul.bf16.gmra.mxu0 %v619
    %v3704 = vpop.f32.mrf.mxu0
    %v3705 = vadd.f32 %v3692, %v3704
    %v3706 = vpop.f32.mrf.mxu0
    %3707 = vdwg.mxu0
    %3708 = vmatpush.bf16.msra.mxu0 %v2225
    %3709 = vmatpush.bf16.msra.mxu0 %v2217
    %3710 = vmatpush.bf16.msra.mxu0 %v2209
    %3711 = vmatpush.bf16.msra.mxu0 %v2201
    %3712 = vmatpush.bf16.msra.mxu0 %v2193
    %3713 = vmatpush.bf16.msra.mxu0 %v2185
    %3714 = vmatpush.bf16.msra.mxu0 %v2177
    %3715 = vmatpush.bf16.msra.mxu0 %v2169
    %3716 = vmatmul.bf16.gmra.mxu0 %v612
    %v3717 = vpop.f32.mrf.mxu0
    %v3718 = vadd.f32 %v599, %v3717
    %v3719 = vpop.f32.mrf.mxu0
    %3720 = vdwg.mxu0
    %3721 = vmatpush.bf16.msra.mxu0 %v2289
    %3722 = vmatpush.bf16.msra.mxu0 %v2281
    %3723 = vmatpush.bf16.msra.mxu0 %v2273
    %3724 = vmatpush.bf16.msra.mxu0 %v2265
    %3725 = vmatpush.bf16.msra.mxu0 %v2257
    %3726 = vmatpush.bf16.msra.mxu0 %v2249
    %3727 = vmatpush.bf16.msra.mxu0 %v2241
    %3728 = vmatpush.bf16.msra.mxu0 %v2233
    %3729 = vmatmul.bf16.gmra.mxu0 %v613
    %v3730 = vpop.f32.mrf.mxu0
    %v3731 = vadd.f32 %v3718, %v3730
    %v3732 = vpop.f32.mrf.mxu0
    %3733 = vdwg.mxu0
    %3734 = vmatpush.bf16.msra.mxu0 %v2353
    %3735 = vmatpush.bf16.msra.mxu0 %v2345
    %3736 = vmatpush.bf16.msra.mxu0 %v2337
    %3737 = vmatpush.bf16.msra.mxu0 %v2329
    %3738 = vmatpush.bf16.msra.mxu0 %v2321
    %3739 = vmatpush.bf16.msra.mxu0 %v2313
    %3740 = vmatpush.bf16.msra.mxu0 %v2305
    %3741 = vmatpush.bf16.msra.mxu0 %v2297
    %3742 = vmatmul.bf16.gmra.mxu0 %v614
    %v3743 = vpop.f32.mrf.mxu0
    %v3744 = vadd.f32 %v3731, %v3743
    %v3745 = vpop.f32.mrf.mxu0
    %3746 = vdwg.mxu0
    %3747 = vmatpush.bf16.msra.mxu0 %v2417
    %3748 = vmatpush.bf16.msra.mxu0 %v2409
    %3749 = vmatpush.bf16.msra.mxu0 %v2401
    %3750 = vmatpush.bf16.msra.mxu0 %v2393
    %3751 = vmatpush.bf16.msra.mxu0 %v2385
    %3752 = vmatpush.bf16.msra.mxu0 %v2377
    %3753 = vmatpush.bf16.msra.mxu0 %v2369
    %3754 = vmatpush.bf16.msra.mxu0 %v2361
    %3755 = vmatmul.bf16.gmra.mxu0 %v615
    %v3756 = vpop.f32.mrf.mxu0
    %v3757 = vadd.f32 %v3744, %v3756
    %v3758 = vpop.f32.mrf.mxu0
    %3759 = vdwg.mxu0
    %3760 = vmatpush.bf16.msra.mxu0 %v2481
    %3761 = vmatpush.bf16.msra.mxu0 %v2473
    %3762 = vmatpush.bf16.msra.mxu0 %v2465
    %3763 = vmatpush.bf16.msra.mxu0 %v2457
    %3764 = vmatpush.bf16.msra.mxu0 %v2449
    %3765 = vmatpush.bf16.msra.mxu0 %v2441
    %3766 = vmatpush.bf16.msra.mxu0 %v2433
    %3767 = vmatpush.bf16.msra.mxu0 %v2425
    %3768 = vmatmul.bf16.gmra.mxu0 %v616
    %v3769 = vpop.f32.mrf.mxu0
    %v3770 = vadd.f32 %v3757, %v3769
    %v3771 = vpop.f32.mrf.mxu0
    %3772 = vdwg.mxu0
    %3773 = vmatpush.bf16.msra.mxu0 %v2545
    %3774 = vmatpush.bf16.msra.mxu0 %v2537
    %3775 = vmatpush.bf16.msra.mxu0 %v2529
    %3776 = vmatpush.bf16.msra.mxu0 %v2521
    %3777 = vmatpush.bf16.msra.mxu0 %v2513
    %3778 = vmatpush.bf16.msra.mxu0 %v2505
    %3779 = vmatpush.bf16.msra.mxu0 %v2497
    %3780 = vmatpush.bf16.msra.mxu0 %v2489
    %3781 = vmatmul.bf16.gmra.mxu0 %v617
    %v3782 = vpop.f32.mrf.mxu0
    %v3783 = vadd.f32 %v3770, %v3782
    %v3784 = vpop.f32.mrf.mxu0
    %3785 = vdwg.mxu0
    %3786 = vmatpush.bf16.msra.mxu0 %v2609
    %3787 = vmatpush.bf16.msra.mxu0 %v2601
    %3788 = vmatpush.bf16.msra.mxu0 %v2593
    %3789 = vmatpush.bf16.msra.mxu0 %v2585
    %3790 = vmatpush.bf16.msra.mxu0 %v2577
    %3791 = vmatpush.bf16.msra.mxu0 %v2569
    %3792 = vmatpush.bf16.msra.mxu0 %v2561
    %3793 = vmatpush.bf16.msra.mxu0 %v2553
    %3794 = vmatmul.bf16.gmra.mxu0 %v618
    %v3795 = vpop.f32.mrf.mxu0
    %v3796 = vadd.f32 %v3783, %v3795
    %v3797 = vpop.f32.mrf.mxu0
    %3798 = vdwg.mxu0
    %3799 = vmatpush.bf16.msra.mxu0 %v2673
    %3800 = vmatpush.bf16.msra.mxu0 %v2665
    %3801 = vmatpush.bf16.msra.mxu0 %v2657
    %3802 = vmatpush.bf16.msra.mxu0 %v2649
    %3803 = vmatpush.bf16.msra.mxu0 %v2641
    %3804 = vmatpush.bf16.msra.mxu0 %v2633
    %3805 = vmatpush.bf16.msra.mxu0 %v2625
    %3806 = vmatpush.bf16.msra.mxu0 %v2617
    %3807 = vmatmul.bf16.gmra.mxu0 %v619
    %v3808 = vpop.f32.mrf.mxu0
    %v3809 = vadd.f32 %v3796, %v3808
    %v3810 = vpop.f32.mrf.mxu0
    %3811 = vdwg.mxu0
    %3812 = vmatpush.bf16.msra.mxu0 %v2226
    %3813 = vmatpush.bf16.msra.mxu0 %v2218
    %3814 = vmatpush.bf16.msra.mxu0 %v2210
    %3815 = vmatpush.bf16.msra.mxu0 %v2202
    %3816 = vmatpush.bf16.msra.mxu0 %v2194
    %3817 = vmatpush.bf16.msra.mxu0 %v2186
    %3818 = vmatpush.bf16.msra.mxu0 %v2178
    %3819 = vmatpush.bf16.msra.mxu0 %v2170
    %3820 = vmatmul.bf16.gmra.mxu0 %v612
    %v3821 = vpop.f32.mrf.mxu0
    %v3822 = vadd.f32 %v600, %v3821
    %v3823 = vpop.f32.mrf.mxu0
    %3824 = vdwg.mxu0
    %3825 = vmatpush.bf16.msra.mxu0 %v2290
    %3826 = vmatpush.bf16.msra.mxu0 %v2282
    %3827 = vmatpush.bf16.msra.mxu0 %v2274
    %3828 = vmatpush.bf16.msra.mxu0 %v2266
    %3829 = vmatpush.bf16.msra.mxu0 %v2258
    %3830 = vmatpush.bf16.msra.mxu0 %v2250
    %3831 = vmatpush.bf16.msra.mxu0 %v2242
    %3832 = vmatpush.bf16.msra.mxu0 %v2234
    %3833 = vmatmul.bf16.gmra.mxu0 %v613
    %v3834 = vpop.f32.mrf.mxu0
    %v3835 = vadd.f32 %v3822, %v3834
    %v3836 = vpop.f32.mrf.mxu0
    %3837 = vdwg.mxu0
    %3838 = vmatpush.bf16.msra.mxu0 %v2354
    %3839 = vmatpush.bf16.msra.mxu0 %v2346
    %3840 = vmatpush.bf16.msra.mxu0 %v2338
    %3841 = vmatpush.bf16.msra.mxu0 %v2330
    %3842 = vmatpush.bf16.msra.mxu0 %v2322
    %3843 = vmatpush.bf16.msra.mxu0 %v2314
    %3844 = vmatpush.bf16.msra.mxu0 %v2306
    %3845 = vmatpush.bf16.msra.mxu0 %v2298
    %3846 = vmatmul.bf16.gmra.mxu0 %v614
    %v3847 = vpop.f32.mrf.mxu0
    %v3848 = vadd.f32 %v3835, %v3847
    %v3849 = vpop.f32.mrf.mxu0
    %3850 = vdwg.mxu0
    %3851 = vmatpush.bf16.msra.mxu0 %v2418
    %3852 = vmatpush.bf16.msra.mxu0 %v2410
    %3853 = vmatpush.bf16.msra.mxu0 %v2402
    %3854 = vmatpush.bf16.msra.mxu0 %v2394
    %3855 = vmatpush.bf16.msra.mxu0 %v2386
    %3856 = vmatpush.bf16.msra.mxu0 %v2378
    %3857 = vmatpush.bf16.msra.mxu0 %v2370
    %3858 = vmatpush.bf16.msra.mxu0 %v2362
    %3859 = vmatmul.bf16.gmra.mxu0 %v615
    %v3860 = vpop.f32.mrf.mxu0
    %v3861 = vadd.f32 %v3848, %v3860
    %v3862 = vpop.f32.mrf.mxu0
    %3863 = vdwg.mxu0
    %3864 = vmatpush.bf16.msra.mxu0 %v2482
    %3865 = vmatpush.bf16.msra.mxu0 %v2474
    %3866 = vmatpush.bf16.msra.mxu0 %v2466
    %3867 = vmatpush.bf16.msra.mxu0 %v2458
    %3868 = vmatpush.bf16.msra.mxu0 %v2450
    %3869 = vmatpush.bf16.msra.mxu0 %v2442
    %3870 = vmatpush.bf16.msra.mxu0 %v2434
    %3871 = vmatpush.bf16.msra.mxu0 %v2426
    %3872 = vmatmul.bf16.gmra.mxu0 %v616
    %v3873 = vpop.f32.mrf.mxu0
    %v3874 = vadd.f32 %v3861, %v3873
    %v3875 = vpop.f32.mrf.mxu0
    %3876 = vdwg.mxu0
    %3877 = vmatpush.bf16.msra.mxu0 %v2546
    %3878 = vmatpush.bf16.msra.mxu0 %v2538
    %3879 = vmatpush.bf16.msra.mxu0 %v2530
    %3880 = vmatpush.bf16.msra.mxu0 %v2522
    %3881 = vmatpush.bf16.msra.mxu0 %v2514
    %3882 = vmatpush.bf16.msra.mxu0 %v2506
    %3883 = vmatpush.bf16.msra.mxu0 %v2498
    %3884 = vmatpush.bf16.msra.mxu0 %v2490
    %3885 = vmatmul.bf16.gmra.mxu0 %v617
    %v3886 = vpop.f32.mrf.mxu0
    %v3887 = vadd.f32 %v3874, %v3886
    %v3888 = vpop.f32.mrf.mxu0
    %3889 = vdwg.mxu0
    %3890 = vmatpush.bf16.msra.mxu0 %v2610
    %3891 = vmatpush.bf16.msra.mxu0 %v2602
    %3892 = vmatpush.bf16.msra.mxu0 %v2594
    %3893 = vmatpush.bf16.msra.mxu0 %v2586
    %3894 = vmatpush.bf16.msra.mxu0 %v2578
    %3895 = vmatpush.bf16.msra.mxu0 %v2570
    %3896 = vmatpush.bf16.msra.mxu0 %v2562
    %3897 = vmatpush.bf16.msra.mxu0 %v2554
    %3898 = vmatmul.bf16.gmra.mxu0 %v618
    %v3899 = vpop.f32.mrf.mxu0
    %v3900 = vadd.f32 %v3887, %v3899
    %v3901 = vpop.f32.mrf.mxu0
    %3902 = vdwg.mxu0
    %3903 = vmatpush.bf16.msra.mxu0 %v2674
    %3904 = vmatpush.bf16.msra.mxu0 %v2666
    %3905 = vmatpush.bf16.msra.mxu0 %v2658
    %3906 = vmatpush.bf16.msra.mxu0 %v2650
    %3907 = vmatpush.bf16.msra.mxu0 %v2642
    %3908 = vmatpush.bf16.msra.mxu0 %v2634
    %3909 = vmatpush.bf16.msra.mxu0 %v2626
    %3910 = vmatpush.bf16.msra.mxu0 %v2618
    %3911 = vmatmul.bf16.gmra.mxu0 %v619
    %v3912 = vpop.f32.mrf.mxu0
    %v3913 = vadd.f32 %v3900, %v3912
    %v3914 = vpop.f32.mrf.mxu0
    %3915 = vdwg.mxu0
    %3916 = vmatpush.bf16.msra.mxu0 %v2227
    %3917 = vmatpush.bf16.msra.mxu0 %v2219
    %3918 = vmatpush.bf16.msra.mxu0 %v2211
    %3919 = vmatpush.bf16.msra.mxu0 %v2203
    %3920 = vmatpush.bf16.msra.mxu0 %v2195
    %3921 = vmatpush.bf16.msra.mxu0 %v2187
    %3922 = vmatpush.bf16.msra.mxu0 %v2179
    %3923 = vmatpush.bf16.msra.mxu0 %v2171
    %3924 = vmatmul.bf16.gmra.mxu0 %v612
    %v3925 = vpop.f32.mrf.mxu0
    %v3926 = vadd.f32 %v601, %v3925
    %v3927 = vpop.f32.mrf.mxu0
    %3928 = vdwg.mxu0
    %3929 = vmatpush.bf16.msra.mxu0 %v2291
    %3930 = vmatpush.bf16.msra.mxu0 %v2283
    %3931 = vmatpush.bf16.msra.mxu0 %v2275
    %3932 = vmatpush.bf16.msra.mxu0 %v2267
    %3933 = vmatpush.bf16.msra.mxu0 %v2259
    %3934 = vmatpush.bf16.msra.mxu0 %v2251
    %3935 = vmatpush.bf16.msra.mxu0 %v2243
    %3936 = vmatpush.bf16.msra.mxu0 %v2235
    %3937 = vmatmul.bf16.gmra.mxu0 %v613
    %v3938 = vpop.f32.mrf.mxu0
    %v3939 = vadd.f32 %v3926, %v3938
    %v3940 = vpop.f32.mrf.mxu0
    %3941 = vdwg.mxu0
    %3942 = vmatpush.bf16.msra.mxu0 %v2355
    %3943 = vmatpush.bf16.msra.mxu0 %v2347
    %3944 = vmatpush.bf16.msra.mxu0 %v2339
    %3945 = vmatpush.bf16.msra.mxu0 %v2331
    %3946 = vmatpush.bf16.msra.mxu0 %v2323
    %3947 = vmatpush.bf16.msra.mxu0 %v2315
    %3948 = vmatpush.bf16.msra.mxu0 %v2307
    %3949 = vmatpush.bf16.msra.mxu0 %v2299
    %3950 = vmatmul.bf16.gmra.mxu0 %v614
    %v3951 = vpop.f32.mrf.mxu0
    %v3952 = vadd.f32 %v3939, %v3951
    %v3953 = vpop.f32.mrf.mxu0
    %3954 = vdwg.mxu0
    %3955 = vmatpush.bf16.msra.mxu0 %v2419
    %3956 = vmatpush.bf16.msra.mxu0 %v2411
    %3957 = vmatpush.bf16.msra.mxu0 %v2403
    %3958 = vmatpush.bf16.msra.mxu0 %v2395
    %3959 = vmatpush.bf16.msra.mxu0 %v2387
    %3960 = vmatpush.bf16.msra.mxu0 %v2379
    %3961 = vmatpush.bf16.msra.mxu0 %v2371
    %3962 = vmatpush.bf16.msra.mxu0 %v2363
    %3963 = vmatmul.bf16.gmra.mxu0 %v615
    %v3964 = vpop.f32.mrf.mxu0
    %v3965 = vadd.f32 %v3952, %v3964
    %v3966 = vpop.f32.mrf.mxu0
    %3967 = vdwg.mxu0
    %3968 = vmatpush.bf16.msra.mxu0 %v2483
    %3969 = vmatpush.bf16.msra.mxu0 %v2475
    %3970 = vmatpush.bf16.msra.mxu0 %v2467
    %3971 = vmatpush.bf16.msra.mxu0 %v2459
    %3972 = vmatpush.bf16.msra.mxu0 %v2451
    %3973 = vmatpush.bf16.msra.mxu0 %v2443
    %3974 = vmatpush.bf16.msra.mxu0 %v2435
    %3975 = vmatpush.bf16.msra.mxu0 %v2427
    %3976 = vmatmul.bf16.gmra.mxu0 %v616
    %v3977 = vpop.f32.mrf.mxu0
    %v3978 = vadd.f32 %v3965, %v3977
    %v3979 = vpop.f32.mrf.mxu0
    %3980 = vdwg.mxu0
    %3981 = vmatpush.bf16.msra.mxu0 %v2547
    %3982 = vmatpush.bf16.msra.mxu0 %v2539
    %3983 = vmatpush.bf16.msra.mxu0 %v2531
    %3984 = vmatpush.bf16.msra.mxu0 %v2523
    %3985 = vmatpush.bf16.msra.mxu0 %v2515
    %3986 = vmatpush.bf16.msra.mxu0 %v2507
    %3987 = vmatpush.bf16.msra.mxu0 %v2499
    %3988 = vmatpush.bf16.msra.mxu0 %v2491
    %3989 = vmatmul.bf16.gmra.mxu0 %v617
    %v3990 = vpop.f32.mrf.mxu0
    %v3991 = vadd.f32 %v3978, %v3990
    %v3992 = vpop.f32.mrf.mxu0
    %3993 = vdwg.mxu0
    %3994 = vmatpush.bf16.msra.mxu0 %v2611
    %3995 = vmatpush.bf16.msra.mxu0 %v2603
    %3996 = vmatpush.bf16.msra.mxu0 %v2595
    %3997 = vmatpush.bf16.msra.mxu0 %v2587
    %3998 = vmatpush.bf16.msra.mxu0 %v2579
    %3999 = vmatpush.bf16.msra.mxu0 %v2571
    %4000 = vmatpush.bf16.msra.mxu0 %v2563
    %4001 = vmatpush.bf16.msra.mxu0 %v2555
    %4002 = vmatmul.bf16.gmra.mxu0 %v618
    %v4003 = vpop.f32.mrf.mxu0
    %v4004 = vadd.f32 %v3991, %v4003
    %v4005 = vpop.f32.mrf.mxu0
    %4006 = vdwg.mxu0
    %4007 = vmatpush.bf16.msra.mxu0 %v2675
    %4008 = vmatpush.bf16.msra.mxu0 %v2667
    %4009 = vmatpush.bf16.msra.mxu0 %v2659
    %4010 = vmatpush.bf16.msra.mxu0 %v2651
    %4011 = vmatpush.bf16.msra.mxu0 %v2643
    %4012 = vmatpush.bf16.msra.mxu0 %v2635
    %4013 = vmatpush.bf16.msra.mxu0 %v2627
    %4014 = vmatpush.bf16.msra.mxu0 %v2619
    %4015 = vmatmul.bf16.gmra.mxu0 %v619
    %v4016 = vpop.f32.mrf.mxu0
    %v4017 = vadd.f32 %v4004, %v4016
    %v4018 = vpop.f32.mrf.mxu0
    %4019 = vdwg.mxu0
    %v4020 = vmax.f32 %v3289, 0.0
    %v4021 = vmax.f32 %v3393, 0.0
    %v4022 = vmax.f32 %v3497, 0.0
    %v4023 = vmax.f32 %v3601, 0.0
    %v4024 = vmax.f32 %v3705, 0.0
    %v4025 = vmax.f32 %v3809, 0.0
    %v4026 = vmax.f32 %v3913, 0.0
    %v4027 = vmax.f32 %v4017, 0.0
    %v4028 = vld [vmem:[#allocation8] sm:$0xff]
    %v4030 = vperm.slane %v4028, 0
    %v4031 = vperm.slane %v4028, 1
    %v4032 = vperm.slane %v4028, 2
    %v4033 = vperm.slane %v4028, 3
    %v4034 = vperm.slane %v4028, 4
    %v4035 = vperm.slane %v4028, 5
    %v4036 = vperm.slane %v4028, 6
    %v4037 = vperm.slane %v4028, 7
    %v4046 = vmul.f32 %v4020, %v4030
    %v4047 = vmul.f32 %v4021, %v4031
    %v4048 = vmul.f32 %v4022, %v4032
    %v4049 = vmul.f32 %v4023, %v4033
    %v4050 = vmul.f32 %v4024, %v4034
    %v4051 = vmul.f32 %v4025, %v4035
    %v4052 = vmul.f32 %v4026, %v4036
    %v4053 = vmul.f32 %v4027, %v4037
    %vm4054 = vcmask 1041408
    %v4055 = vsel %vm4054, %v4046, 0.0
    %v4056 = vsel %vm4054, %v4047, 0.0
    %v4057 = vadd.f32 %v4055, %v4056
    %v4058 = vsel %vm4054, %v4048, 0.0
    %v4059 = vadd.f32 %v4057, %v4058
    %v4060 = vsel %vm4054, %v4049, 0.0
    %v4061 = vadd.f32 %v4059, %v4060
    %v4062 = vsel %vm4054, %v4050, 0.0
    %v4063 = vadd.f32 %v4061, %v4062
    %v4064 = vsel %vm4054, %v4051, 0.0
    %v4065 = vadd.f32 %v4063, %v4064
    %v4066 = vsel %vm4054, %v4052, 0.0
    %v4067 = vadd.f32 %v4065, %v4066
    %v4068 = vsel %vm4054, %v4053, 0.0
    %v4069 = vadd.f32 %v4067, %v4068
    %4070 = vadd.xlane.f32.xlu0 %v4069
    %v4071 = vpop.xlane.xlu0 %4070
    %v4072 = vld [vmem:[#allocation2] sm:$0x1]
    %v4074 = vperm.slane %v4072, 0
    %v4076 = vadd.f32 %v4071, %v4074
    %vm4077 = vcmask 1024
    %4078 = vst.msk [vmem:[%s5] sm:$0x3] %vm4077, %v4076
    // Predicated region
    $region38: #{tpu_custom_call.1} parent=1 // pred_check
      _
    $region39: #{tpu_custom_call.1} parent=1 // pred_check_branch
      %4080 = sbr.rel (0) target = $region41
    $region40: #{tpu_custom_call.1} parent=1 // pred_region
      _
    $region41: #{tpu_custom_call.1} parent=1 // pred_fallthru
      _
    // Predicated region
    $region42: #{tpu_custom_call.1} parent=1 // pred_check
      _
    $region43: #{tpu_custom_call.1} parent=1 // pred_check_branch
      %4082 = sbr.rel (0) target = $region45
    $region44: #{tpu_custom_call.1} parent=1 // pred_region
      _
    $region45: #{tpu_custom_call.1} parent=1 // pred_fallthru
      _
    %4083 = vsyncpa [#allocation4], 1
    %4084 = vsyncpa [#allocation6], 1
    %4085 = vsyncpa [#allocation9], 1

</llo_original>
